<compile_context>
chip_gen: v5e
topology: v5e:2x2
jax: 0.10.0
libtpu: 0.0.40
codegen_flags: <defaults>
</compile_context>

<pallas_src>
import math
from functools import lru_cache, partial

import numpy as np
import jax
import jax.numpy as jnp
from jax import lax
from jax.experimental import pallas as pl
from jax.experimental.pallas import tpu as pltpu


# tap order matches the torch kernel scan order: t = kh*3 + kw, (dh,dw) = (kh-1, kw-1)
_OFFSETS = tuple((dh, dw) for dh in (-1, 0, 1) for dw in (-1, 0, 1))
_POOL = 8                       # AdaptiveAvgPool2d((8, 8))
_NPOS = _POOL * _POOL           # 64 pooled positions


# ------------------------------ Pallas kernel -------------------------------

def _brain_kernel(x_ref, masks_ref, w1_ref, b1_ref, w2_ref, b2_ref, pmat_ref,
                  fw1_ref, fb1_ref, fw2_ref, fb2_ref,
                  dw1_ref, db1_ref, dw2_ref, db2_ref,
                  o_ref,
                  taps_ref, pooled_ref, feat_ref,
                  *, H, W, C, CP, C1, C2):
    """Whole EnhancedBugBrain forward for one agent, channel-major layout.

    x_ref:    (C, H*W)              f32  raw pixels (/255 folded into w1)
    masks:    (9, 1, H*W)           f32  per-tap zero-padding masks
    w1:       (C1, 9*CP)            bf16 K-stacked conv1 weights (already /255)
    w2:       (C2, 9*C1)            bf16 K-stacked conv2 weights
    b1/b2:    (C*, 1)               f32
    pmat:     (H*W, 64)             bf16 adaptive-avg-pool matrix (transposed)
    fw1:      (8, (C2//8)*64, Hd)   bf16 fc1 weights, rows permuted to feat layout
    fb1/fb2:  (1, Hd)               f32
    fw2:      (Hd, Hd)              bf16
    dw1/dw2:  (Hd, Hd//2)/(Hd//2,4) bf16 ; db1/db2 f32
    o_ref:    (1, 4)                f32  [tanh(v), tanh(r), sigmoid(e), sigmoid(m)]
    scratch:  taps (>=9*max(CP,C1), H*W) bf16, pooled (C2,64) f32,
              feat (8, (C2//8)*64) bf16
    """
    hw = H * W

    def build_taps(src, cin, cpad):
        # K-stacked im2col: taps[t*cpad + ci, q] = src[ci, q + dh*W + dw]
        # with zero-padded borders (masks) and zero pad channels.
        # TODO(synk): on v6e/v7x an early bf16 cast before the rolls would halve
        #             XLU/VPU traffic; kept f32 so the same code is optimal on v5e.
        if cpad != cin:
            taps_ref[0:9 * cpad, :] = jnp.zeros((9 * cpad, hw), jnp.bfloat16)
        for t, (dh, dw) in enumerate(_OFFSETS):
            s = dh * W + dw
            v = src if s == 0 else pltpu.roll(src, (-s) % hw, axis=1)
            if not (dh == 0 and dw == 0):
                v = v * masks_ref[t]                      # zero-padding at borders
            taps_ref[t * cpad:t * cpad + cin, :] = v.astype(jnp.bfloat16)

    # ---- conv1 + ReLU (one MXU matmul, K = 9*CP) ----
    build_taps(x_ref[...], C, CP)
    y1 = jnp.dot(w1_ref[...], taps_ref[0:9 * CP, :],
                 preferred_element_type=jnp.float32) + b1_ref[...]
    y1 = jnp.maximum(y1, 0.0)                             # (C1, HW) f32

    # ---- conv2 + ReLU (one MXU matmul, K = 9*C1) ----
    build_taps(y1, C1, C1)
    y2 = jnp.dot(w2_ref[...], taps_ref[0:9 * C1, :],
                 preferred_element_type=jnp.float32) + b2_ref[...]
    y2 = jnp.maximum(y2, 0.0)                             # (C2, HW) f32

    # ---- AdaptiveAvgPool2d((8,8)) as one MXU matmul ----
    pooled_ref[...] = jnp.dot(y2.astype(jnp.bfloat16), pmat_ref[...],
                              preferred_element_type=jnp.float32)    # (C2, 64)

    # ---- (C2, 64) -> (8, (C2//8)*64) lane-dense relayout.
    # feat[s, g*64 + p] = pooled[g*8 + s, p]; fw1 rows are permuted host-side
    # to match, so no (1, C2*64) flatten/relayout is ever materialized.
    ngrp = C2 // 8
    for g in range(ngrp):
        feat_ref[:, g * _NPOS:(g + 1) * _NPOS] = (
            pooled_ref[g * 8:(g + 1) * 8, :].astype(jnp.bfloat16))

    # ---- feature_net: fc1 as 8 partial matmuls over feat's sublane rows ----
    h = fb1_ref[...]
    for r in range(8):
        h = h + jnp.dot(feat_ref[r:r + 1, :], fw1_ref[r],
                        preferred_element_type=jnp.float32)
    h = jnp.maximum(h, 0.0)
    h = jnp.dot(h.astype(jnp.bfloat16), fw2_ref[...],
                preferred_element_type=jnp.float32) + fb2_ref[...]
    h = jnp.maximum(h, 0.0)

    # ---- decision_net + output activations ----
    d = jnp.dot(h.astype(jnp.bfloat16), dw1_ref[...],
                preferred_element_type=jnp.float32) + db1_ref[...]
    d = jnp.maximum(d, 0.0)
    d = jnp.dot(d.astype(jnp.bfloat16), dw2_ref[...],
                preferred_element_type=jnp.float32) + db2_ref[...]   # (1, 4)

    col = lax.broadcasted_iota(jnp.int32, d.shape, 1)
    # columns 0,1 -> tanh (velocity, rotation); columns 2,3 -> sigmoid (eat, mate)
    o_ref[...] = jnp.where(col < 2, jnp.tanh(d), jax.nn.sigmoid(d))


# --------------------------- host-side constants ----------------------------

@lru_cache(maxsize=None)
def _spatial_constants(H, W, out_h=_POOL, out_w=_POOL):
    """Per-(H,W) constants: conv boundary masks and the adaptive-pool matrix."""
    hw = H * W
    idx = np.arange(hw)
    hs, ws = idx // W, idx % W
    masks = np.zeros((9, 1, hw), np.float32)
    for t, (dh, dw) in enumerate(_OFFSETS):
        valid = (hs + dh >= 0) & (hs + dh < H) & (ws + dw >= 0) & (ws + dw < W)
        masks[t, 0] = valid.astype(np.float32)

    pmat = np.zeros((out_h * out_w, hw), np.float32)
    for hp in range(out_h):
        h0, h1 = (hp * H) // out_h, -(-((hp + 1) * H) // out_h)
        for wp in range(out_w):
            w0, w1 = (wp * W) // out_w, -(-((wp + 1) * W) // out_w)
            inv = 1.0 / ((h1 - h0) * (w1 - w0))
            for h in range(h0, h1):
                pmat[hp * out_w + wp, h * W + w0:h * W + w1] = inv
    return np.ascontiguousarray(pmat.T), masks           # (HW, 64), (9, 1, HW)


# ------------------------------ init / forward ------------------------------

def init_params(key, input_channels=3, hidden_dim=64):
    """Xavier-uniform weights / zero biases, matching the module's __init__.

    Returns (kernel_params, reference_params): kernel layouts + logical bf16
    weights used only by the pure-JAX correctness reference.
    """
    c1, c2 = hidden_dim // 2, hidden_dim
    assert c2 % 8 == 0 and hidden_dim % 8 == 0
    cp = -(-input_channels // 8) * 8                      # pad conv1 Cin to sublane multiple
    ks = jax.random.split(key, 6)

    def xavier(k, shape, fan_in, fan_out):
        b = math.sqrt(6.0 / (fan_in + fan_out))
        return jax.random.uniform(k, shape, jnp.float32, -b, b)

    # logical (torch-layout) weights
    w1 = xavier(ks[0], (c1, input_channels, 3, 3), input_channels * 9, c1 * 9) / 255.0
    w2 = xavier(ks[1], (c2, c1, 3, 3), c1 * 9, c2 * 9)
    fw1 = xavier(ks[2], (c2 * _NPOS, hidden_dim), c2 * _NPOS, hidden_dim)
    fw2 = xavier(ks[3], (hidden_dim, hidden_dim), hidden_dim, hidden_dim)
    dw1 = xavier(ks[4], (hidden_dim, hidden_dim // 2), hidden_dim, hidden_dim // 2)
    dw2 = xavier(ks[5], (hidden_dim // 2, 4), hidden_dim // 2, 4)

    # ---- kernel layouts ----
    # conv taps K-stacked: w*s[cout, t*cpad + cin] = w[cout, cin, kh, kw], t = kh*3 + kw
    w1_tap = jnp.transpose(w1, (2, 3, 0, 1)).reshape(9, c1, input_channels)
    w1_tap = jnp.pad(w1_tap, ((0, 0), (0, 0), (0, cp - input_channels)))
    w1s = jnp.transpose(w1_tap, (1, 0, 2)).reshape(c1, 9 * cp)
    w2_tap = jnp.transpose(w2, (2, 3, 0, 1)).reshape(9, c2, c1)
    w2s = jnp.transpose(w2_tap, (1, 0, 2)).reshape(c2, 9 * c1)
    # fc1 rows permuted to the kernel feat layout:
    #   feat[s, g*64 + p] = pooled[g*8 + s, p]  ->  fw1k[s, g*64+p, :] = fw1[(g*8+s)*64 + p, :]
    fw1k = jnp.transpose(fw1.reshape(c2 // 8, 8, _NPOS, hidden_dim),
                         (1, 0, 2, 3)).reshape(8, (c2 // 8) * _NPOS, hidden_dim)

    bf = lambda a: a.astype(jnp.bfloat16)
    zc = lambda n: jnp.zeros((n, 1), jnp.float32)
    zr = lambda n: jnp.zeros((1, n), jnp.float32)
    kern = dict(w1s=bf(w1s), b1=zc(c1), w2s=bf(w2s), b2=zc(c2),
                fw1=bf(fw1k), fb1=zr(hidden_dim), fw2=bf(fw2), fb2=zr(hidden_dim),
                dw1=bf(dw1), db1=zr(hidden_dim // 2), dw2=bf(dw2), db2=zr(4))
    ref = dict(w1=bf(w1), b1=zc(c1), w2=bf(w2), b2=zc(c2),
               fw1=bf(fw1), fb1=zr(hidden_dim), fw2=bf(fw2), fb2=zr(hidden_dim),
               dw1=bf(dw1), db1=zr(hidden_dim // 2), dw2=bf(dw2), db2=zr(4))
    return kern, ref


@jax.jit
def _forward_core(params, x):
    """x: (B, C, H, W) f32 raw pixels -> (B, 4) = [tanh(v), tanh(r), sig(e), sig(m)]."""
    B, C, H, W = x.shape
    hw = H * W
    c1, cp9 = params["w1s"].shape
    cp = cp9 // 9
    c2 = params["w2s"].shape[0]
    hidden = params["fw2"].shape[0]

    pmat_t, masks = _spatial_constants(H, W)              # trace-time host constants
    pmat_bf = jnp.asarray(pmat_t, dtype=jnp.bfloat16)     # (HW, 64)
    masks = jnp.asarray(masks)                            # (9, 1, HW) f32

    x_flat = x.reshape(B, C, hw)                          # free NCHW reshape

    def full(shape):                                      # whole-array block, DMA'd once
        return pl.BlockSpec(shape, lambda b, _s=shape: (0,) * len(_s))

    in_specs = [
        pl.BlockSpec((None, C, hw), lambda b: (b, 0, 0)),     # x, per-agent block
        full((9, 1, hw)),                                     # masks
        full((c1, 9 * cp)), full((c1, 1)),                    # conv1
        full((c2, 9 * c1)), full((c2, 1)),                    # conv2
        full((hw, _NPOS)),                                    # pool matrix
        full((8, (c2 // 8) * _NPOS, hidden)), full((1, hidden)),   # fc1
        full((hidden, hidden)), full((1, hidden)),            # fc2
        full((hidden, hidden // 2)), full((1, hidden // 2)),  # dec1
        full((hidden // 2, 4)), full((1, 4)),                 # dec2
    ]

    out = pl.pallas_call(
        partial(_brain_kernel, H=H, W=W, C=C, CP=cp, C1=c1, C2=c2),
        grid=(B,),
        out_shape=jax.ShapeDtypeStruct((B, 1, 4), jnp.float32),
        in_specs=in_specs,
        out_specs=pl.BlockSpec((None, 1, 4), lambda b: (b, 0, 0)),
        scratch_shapes=[
            pltpu.VMEM((max(9 * cp, 9 * c1), hw), jnp.bfloat16),   # K-stacked conv taps
            pltpu.VMEM((c2, _NPOS), jnp.float32),                  # pooled feature map
            pltpu.VMEM((8, (c2 // 8) * _NPOS), jnp.bfloat16),      # lane-dense features
        ],
        compiler_params=pltpu.CompilerParams(
            dimension_semantics=("parallel",)),           # agents shard across v7x's 2 TCs
    )(x_flat, masks, params["w1s"], params["b1"], params["w2s"], params["b2"],
      pmat_bf, params["fw1"], params["fb1"], params["fw2"], params["fb2"],
      params["dw1"], params["db1"], params["dw2"], params["db2"])
    return out.reshape(B, 4)


def enhanced_bug_brain_forward(params, vision_input):
    """Mirrors EnhancedBugBrain.forward for a single agent (batch == 1)."""
    x = jnp.asarray(vision_input, jnp.float32)
    if x.ndim == 3:
        x = x[None]
    assert x.shape[0] == 1, "`.item()` in the reference forward implies batch == 1"
    out = _forward_core(params, x)                        # (1, 4) on device
    host = np.asarray(out)                                # ONE blocking D2H transfer
    velocity, rotation = host[:, 0], host[:, 1]
    eating, mating = float(host[0, 2]), float(host[0, 3])  # mirrors .item()
    # TODO(synk): the PyTorch module also appends `features` to a host-side
    #             memory deque (no effect on the returned values); not reproduced.
    return velocity, rotation, eating, mating


def enhanced_bug_brain_forward_batch(params, vision_inputs):
    """Multi-agent fast path: (B, C, H, W) -> (B, 4) in one fused launch."""
    return _forward_core(params, jnp.asarray(vision_inputs, jnp.float32))


# ------------------------- pure-JAX reference check -------------------------

@jax.jit
def _reference_forward(ref, x):
    """Non-Pallas forward of the same module (same bf16 weight rounding)."""
    B, C, H, W = x.shape
    dn = ("NCHW", "OIHW", "NCHW")
    y = lax.conv_general_dilated(x.astype(jnp.bfloat16), ref["w1"], (1, 1),
                                 ((1, 1), (1, 1)), dimension_numbers=dn,
                                 preferred_element_type=jnp.float32)
    y = jnp.maximum(y + ref["b1"].reshape(1, -1, 1, 1), 0.0)
    y = lax.conv_general_dilated(y.astype(jnp.bfloat16), ref["w2"], (1, 1),
                                 ((1, 1), (1, 1)), dimension_numbers=dn,
                                 preferred_element_type=jnp.float32)
    y = jnp.maximum(y + ref["b2"].reshape(1, -1, 1, 1), 0.0)
    c2 = y.shape[1]
    y = y.astype(jnp.bfloat16).astype(jnp.float32)        # match kernel rounding point
    pooled = y.reshape(B, c2, _POOL, H // _POOL, _POOL, W // _POOL).mean(axis=(3, 5))
    feat = pooled.reshape(B, c2 * _NPOS)                  # (c, hp, wp) flatten order
    h = jnp.maximum(jnp.dot(feat.astype(jnp.bfloat16), ref["fw1"],
                            preferred_element_type=jnp.float32) + ref["fb1"], 0.0)
    h = jnp.maximum(jnp.dot(h.astype(jnp.bfloat16), ref["fw2"],
                            preferred_element_type=jnp.float32) + ref["fb2"], 0.0)
    d = jnp.maximum(jnp.dot(h.astype(jnp.bfloat16), ref["dw1"],
                            preferred_element_type=jnp.float32) + ref["db1"], 0.0)
    d = jnp.dot(d.astype(jnp.bfloat16), ref["dw2"],
                preferred_element_type=jnp.float32) + ref["db2"]
    return jnp.concatenate([jnp.tanh(d[:, :2]), jax.nn.sigmoid(d[:, 2:])], axis=1)


# ----------------------------------- main ------------------------------------

if __name__ == "__main__":
    key = jax.random.PRNGKey(0)
    pkey, xkey1, xkey2 = jax.random.split(key, 3)
    params, ref_params = init_params(pkey, input_channels=3, hidden_dim=64)

    # single-agent path (mirrors the PyTorch forward, batch == 1), 16x16 pixels
    x1 = jax.random.uniform(xkey1, (1, 3, 16, 16), jnp.float32, 0.0, 255.0)
    vel, rot, eat, mate = enhanced_bug_brain_forward(params, x1)
    assert vel.shape == (1,) and rot.shape == (1,)
    assert isinstance(eat, float) and isinstance(mate, float)
    assert -1.0 <= float(vel[0]) <= 1.0 and 0.0 <= eat <= 1.0

    # batched (multi-agent) path: one launch, grid over agents
    xb = jax.random.uniform(xkey2, (2, 3, 16, 16), jnp.float32, 0.0, 255.0)
    outb = jax.block_until_ready(enhanced_bug_brain_forward_batch(params, xb))
    assert outb.shape == (2, 4)

    # correctness vs a pure-JAX reference of the same module
    refb = jax.block_until_ready(_reference_forward(ref_params, xb))
    np.testing.assert_allclose(np.asarray(outb), np.asarray(refb), atol=2e-2, rtol=0)
    ref1 = _reference_forward(ref_params, x1)
    np.testing.assert_allclose(
        np.array([vel[0], rot[0], eat, mate], np.float32),
        np.asarray(ref1)[0], atol=2e-2, rtol=0)

    print("KERNEL_OK")
</pallas_src>

<mosaic_0001>
module attributes {stable_mosaic.version = 11 : i64} {
  func.func @_brain_kernel(%arg0: i32, %arg1: memref<1x3x256xf32, #tpu.memory_space<vmem>>, %arg2: memref<9x1x256xf32, #tpu.memory_space<vmem>>, %arg3: memref<32x72xbf16, #tpu.memory_space<vmem>>, %arg4: memref<32x1xf32, #tpu.memory_space<vmem>>, %arg5: memref<64x288xbf16, #tpu.memory_space<vmem>>, %arg6: memref<64x1xf32, #tpu.memory_space<vmem>>, %arg7: memref<256x64xbf16, #tpu.memory_space<vmem>>, %arg8: memref<8x512x64xbf16, #tpu.memory_space<vmem>>, %arg9: memref<1x64xf32, #tpu.memory_space<vmem>>, %arg10: memref<64x64xbf16, #tpu.memory_space<vmem>>, %arg11: memref<1x64xf32, #tpu.memory_space<vmem>>, %arg12: memref<64x32xbf16, #tpu.memory_space<vmem>>, %arg13: memref<1x32xf32, #tpu.memory_space<vmem>>, %arg14: memref<32x4xbf16, #tpu.memory_space<vmem>>, %arg15: memref<1x4xf32, #tpu.memory_space<vmem>>, %arg16: memref<1x1x4xf32, #tpu.memory_space<vmem>>, %arg17: memref<288x256xbf16, #tpu.memory_space<vmem>>, %arg18: memref<64x64xf32, #tpu.memory_space<vmem>>, %arg19: memref<8x512xbf16, #tpu.memory_space<vmem>>) attributes {dimension_semantics = [#tpu.dimension_semantics<parallel>], iteration_bounds = array<i64: 1>, scalar_prefetch = 0 : i64, scratch_operands = 3 : i64, tpu.core_type = #tpu.core_type<tc>, window_params = [{transform_indices = @transform_0, window_bounds = array<i64: 1, 3, 256>}, {pipeline_mode = #tpu.pipeline_mode<synchronous>, transform_indices = @transform_1, window_bounds = array<i64: 9, 1, 256>}, {pipeline_mode = #tpu.pipeline_mode<synchronous>, transform_indices = @transform_2, window_bounds = array<i64: 32, 72>}, {pipeline_mode = #tpu.pipeline_mode<synchronous>, transform_indices = @transform_3, window_bounds = array<i64: 32, 1>}, {pipeline_mode = #tpu.pipeline_mode<synchronous>, transform_indices = @transform_4, window_bounds = array<i64: 64, 288>}, {pipeline_mode = #tpu.pipeline_mode<synchronous>, transform_indices = @transform_5, window_bounds = array<i64: 64, 1>}, {pipeline_mode = #tpu.pipeline_mode<synchronous>, transform_indices = @transform_6, window_bounds = array<i64: 256, 64>}, {pipeline_mode = #tpu.pipeline_mode<synchronous>, transform_indices = @transform_7, window_bounds = array<i64: 8, 512, 64>}, {pipeline_mode = #tpu.pipeline_mode<synchronous>, transform_indices = @transform_8, window_bounds = array<i64: 1, 64>}, {pipeline_mode = #tpu.pipeline_mode<synchronous>, transform_indices = @transform_9, window_bounds = array<i64: 64, 64>}, {pipeline_mode = #tpu.pipeline_mode<synchronous>, transform_indices = @transform_10, window_bounds = array<i64: 1, 64>}, {pipeline_mode = #tpu.pipeline_mode<synchronous>, transform_indices = @transform_11, window_bounds = array<i64: 64, 32>}, {pipeline_mode = #tpu.pipeline_mode<synchronous>, transform_indices = @transform_12, window_bounds = array<i64: 1, 32>}, {pipeline_mode = #tpu.pipeline_mode<synchronous>, transform_indices = @transform_13, window_bounds = array<i64: 32, 4>}, {pipeline_mode = #tpu.pipeline_mode<synchronous>, transform_indices = @transform_14, window_bounds = array<i64: 1, 4>}, {transform_indices = @transform_15, window_bounds = array<i64: 1, 1, 4>}]} {
    %c0 = arith.constant 0 : index
    %c0_0 = arith.constant 0 : index
    %c0_1 = arith.constant 0 : index
    %0 = vector.load %arg1[%c0, %c0_0, %c0_1] : memref<1x3x256xf32, #tpu.memory_space<vmem>>, vector<1x3x256xf32>
    %1 = vector.shape_cast %0 : vector<1x3x256xf32> to vector<3x256xf32>
    %cst = arith.constant 0.000000e+00 : bf16
    %2 = vector.broadcast %cst : bf16 to vector<72x256xbf16>
    %c0_2 = arith.constant 0 : index
    %c0_3 = arith.constant 0 : index
    %3 = vector.load %arg17[%c0_2, %c0_3] : memref<288x256xbf16, #tpu.memory_space<vmem>>, vector<72x256xbf16>
    tpu.vector_store %arg17[%c0_2, %c0_3], %2 {strides = array<i32>} : memref<288x256xbf16, #tpu.memory_space<vmem>>, vector<72x256xbf16>,
    %c17_i32 = arith.constant 17 : i32
    %4 = tpu.dynamic_rotate %1 by %c17_i32 dim 1 : vector<3x256xf32>, i32 -> vector<3x256xf32>
    %c0_4 = arith.constant 0 : index
    %c0_5 = arith.constant 0 : index
    %c0_6 = arith.constant 0 : index
    %5 = vector.load %arg2[%c0_4, %c0_5, %c0_6] : memref<9x1x256xf32, #tpu.memory_space<vmem>>, vector<1x1x256xf32>
    %6 = vector.shape_cast %5 : vector<1x1x256xf32> to vector<1x256xf32>
    %7 = vector.broadcast %6 : vector<1x256xf32> to vector<3x256xf32>
    %8 = arith.mulf %4, %7 : vector<3x256xf32>
    %9 = arith.truncf %8 : vector<3x256xf32> to vector<3x256xbf16>
    %c0_7 = arith.constant 0 : index
    %c0_8 = arith.constant 0 : index
    %10 = vector.load %arg17[%c0_7, %c0_8] : memref<288x256xbf16, #tpu.memory_space<vmem>>, vector<3x256xbf16>
    tpu.vector_store %arg17[%c0_7, %c0_8], %9 {strides = array<i32>} : memref<288x256xbf16, #tpu.memory_space<vmem>>, vector<3x256xbf16>,
    %c16_i32 = arith.constant 16 : i32
    %11 = tpu.dynamic_rotate %1 by %c16_i32 dim 1 : vector<3x256xf32>, i32 -> vector<3x256xf32>
    %c1 = arith.constant 1 : index
    %c0_9 = arith.constant 0 : index
    %c0_10 = arith.constant 0 : index
    %12 = vector.load %arg2[%c1, %c0_9, %c0_10] : memref<9x1x256xf32, #tpu.memory_space<vmem>>, vector<1x1x256xf32>
    %13 = vector.shape_cast %12 : vector<1x1x256xf32> to vector<1x256xf32>
    %14 = vector.broadcast %13 : vector<1x256xf32> to vector<3x256xf32>
    %15 = arith.mulf %11, %14 : vector<3x256xf32>
    %16 = arith.truncf %15 : vector<3x256xf32> to vector<3x256xbf16>
    %c8 = arith.constant 8 : index
    %c0_11 = arith.constant 0 : index
    %17 = vector.load %arg17[%c8, %c0_11] : memref<288x256xbf16, #tpu.memory_space<vmem>>, vector<3x256xbf16>
    tpu.vector_store %arg17[%c8, %c0_11], %16 {strides = array<i32>} : memref<288x256xbf16, #tpu.memory_space<vmem>>, vector<3x256xbf16>,
    %c15_i32 = arith.constant 15 : i32
    %18 = tpu.dynamic_rotate %1 by %c15_i32 dim 1 : vector<3x256xf32>, i32 -> vector<3x256xf32>
    %c2 = arith.constant 2 : index
    %c0_12 = arith.constant 0 : index
    %c0_13 = arith.constant 0 : index
    %19 = vector.load %arg2[%c2, %c0_12, %c0_13] : memref<9x1x256xf32, #tpu.memory_space<vmem>>, vector<1x1x256xf32>
    %20 = vector.shape_cast %19 : vector<1x1x256xf32> to vector<1x256xf32>
    %21 = vector.broadcast %20 : vector<1x256xf32> to vector<3x256xf32>
    %22 = arith.mulf %18, %21 : vector<3x256xf32>
    %23 = arith.truncf %22 : vector<3x256xf32> to vector<3x256xbf16>
    %c16 = arith.constant 16 : index
    %c0_14 = arith.constant 0 : index
    %24 = vector.load %arg17[%c16, %c0_14] : memref<288x256xbf16, #tpu.memory_space<vmem>>, vector<3x256xbf16>
    tpu.vector_store %arg17[%c16, %c0_14], %23 {strides = array<i32>} : memref<288x256xbf16, #tpu.memory_space<vmem>>, vector<3x256xbf16>,
    %c1_i32 = arith.constant 1 : i32
    %25 = tpu.dynamic_rotate %1 by %c1_i32 dim 1 : vector<3x256xf32>, i32 -> vector<3x256xf32>
    %c3 = arith.constant 3 : index
    %c0_15 = arith.constant 0 : index
    %c0_16 = arith.constant 0 : index
    %26 = vector.load %arg2[%c3, %c0_15, %c0_16] : memref<9x1x256xf32, #tpu.memory_space<vmem>>, vector<1x1x256xf32>
    %27 = vector.shape_cast %26 : vector<1x1x256xf32> to vector<1x256xf32>
    %28 = vector.broadcast %27 : vector<1x256xf32> to vector<3x256xf32>
    %29 = arith.mulf %25, %28 : vector<3x256xf32>
    %30 = arith.truncf %29 : vector<3x256xf32> to vector<3x256xbf16>
    %c24 = arith.constant 24 : index
    %c0_17 = arith.constant 0 : index
    %31 = vector.load %arg17[%c24, %c0_17] : memref<288x256xbf16, #tpu.memory_space<vmem>>, vector<3x256xbf16>
    tpu.vector_store %arg17[%c24, %c0_17], %30 {strides = array<i32>} : memref<288x256xbf16, #tpu.memory_space<vmem>>, vector<3x256xbf16>,
    %32 = arith.truncf %1 : vector<3x256xf32> to vector<3x256xbf16>
    %c32 = arith.constant 32 : index
    %c0_18 = arith.constant 0 : index
    %33 = vector.load %arg17[%c32, %c0_18] : memref<288x256xbf16, #tpu.memory_space<vmem>>, vector<3x256xbf16>
    tpu.vector_store %arg17[%c32, %c0_18], %32 {strides = array<i32>} : memref<288x256xbf16, #tpu.memory_space<vmem>>, vector<3x256xbf16>,
    %c255_i32 = arith.constant 255 : i32
    %34 = tpu.dynamic_rotate %1 by %c255_i32 dim 1 : vector<3x256xf32>, i32 -> vector<3x256xf32>
    %c5 = arith.constant 5 : index
    %c0_19 = arith.constant 0 : index
    %c0_20 = arith.constant 0 : index
    %35 = vector.load %arg2[%c5, %c0_19, %c0_20] : memref<9x1x256xf32, #tpu.memory_space<vmem>>, vector<1x1x256xf32>
    %36 = vector.shape_cast %35 : vector<1x1x256xf32> to vector<1x256xf32>
    %37 = vector.broadcast %36 : vector<1x256xf32> to vector<3x256xf32>
    %38 = arith.mulf %34, %37 : vector<3x256xf32>
    %39 = arith.truncf %38 : vector<3x256xf32> to vector<3x256xbf16>
    %c40 = arith.constant 40 : index
    %c0_21 = arith.constant 0 : index
    %40 = vector.load %arg17[%c40, %c0_21] : memref<288x256xbf16, #tpu.memory_space<vmem>>, vector<3x256xbf16>
    tpu.vector_store %arg17[%c40, %c0_21], %39 {strides = array<i32>} : memref<288x256xbf16, #tpu.memory_space<vmem>>, vector<3x256xbf16>,
    %c241_i32 = arith.constant 241 : i32
    %41 = tpu.dynamic_rotate %1 by %c241_i32 dim 1 : vector<3x256xf32>, i32 -> vector<3x256xf32>
    %c6 = arith.constant 6 : index
    %c0_22 = arith.constant 0 : index
    %c0_23 = arith.constant 0 : index
    %42 = vector.load %arg2[%c6, %c0_22, %c0_23] : memref<9x1x256xf32, #tpu.memory_space<vmem>>, vector<1x1x256xf32>
    %43 = vector.shape_cast %42 : vector<1x1x256xf32> to vector<1x256xf32>
    %44 = vector.broadcast %43 : vector<1x256xf32> to vector<3x256xf32>
    %45 = arith.mulf %41, %44 : vector<3x256xf32>
    %46 = arith.truncf %45 : vector<3x256xf32> to vector<3x256xbf16>
    %c48 = arith.constant 48 : index
    %c0_24 = arith.constant 0 : index
    %47 = vector.load %arg17[%c48, %c0_24] : memref<288x256xbf16, #tpu.memory_space<vmem>>, vector<3x256xbf16>
    tpu.vector_store %arg17[%c48, %c0_24], %46 {strides = array<i32>} : memref<288x256xbf16, #tpu.memory_space<vmem>>, vector<3x256xbf16>,
    %c240_i32 = arith.constant 240 : i32
    %48 = tpu.dynamic_rotate %1 by %c240_i32 dim 1 : vector<3x256xf32>, i32 -> vector<3x256xf32>
    %c7 = arith.constant 7 : index
    %c0_25 = arith.constant 0 : index
    %c0_26 = arith.constant 0 : index
    %49 = vector.load %arg2[%c7, %c0_25, %c0_26] : memref<9x1x256xf32, #tpu.memory_space<vmem>>, vector<1x1x256xf32>
    %50 = vector.shape_cast %49 : vector<1x1x256xf32> to vector<1x256xf32>
    %51 = vector.broadcast %50 : vector<1x256xf32> to vector<3x256xf32>
    %52 = arith.mulf %48, %51 : vector<3x256xf32>
    %53 = arith.truncf %52 : vector<3x256xf32> to vector<3x256xbf16>
    %c56 = arith.constant 56 : index
    %c0_27 = arith.constant 0 : index
    %54 = vector.load %arg17[%c56, %c0_27] : memref<288x256xbf16, #tpu.memory_space<vmem>>, vector<3x256xbf16>
    tpu.vector_store %arg17[%c56, %c0_27], %53 {strides = array<i32>} : memref<288x256xbf16, #tpu.memory_space<vmem>>, vector<3x256xbf16>,
    %c239_i32 = arith.constant 239 : i32
    %55 = tpu.dynamic_rotate %1 by %c239_i32 dim 1 : vector<3x256xf32>, i32 -> vector<3x256xf32>
    %c8_28 = arith.constant 8 : index
    %c0_29 = arith.constant 0 : index
    %c0_30 = arith.constant 0 : index
    %56 = vector.load %arg2[%c8_28, %c0_29, %c0_30] : memref<9x1x256xf32, #tpu.memory_space<vmem>>, vector<1x1x256xf32>
    %57 = vector.shape_cast %56 : vector<1x1x256xf32> to vector<1x256xf32>
    %58 = vector.broadcast %57 : vector<1x256xf32> to vector<3x256xf32>
    %59 = arith.mulf %55, %58 : vector<3x256xf32>
    %60 = arith.truncf %59 : vector<3x256xf32> to vector<3x256xbf16>
    %c64 = arith.constant 64 : index
    %c0_31 = arith.constant 0 : index
    %61 = vector.load %arg17[%c64, %c0_31] : memref<288x256xbf16, #tpu.memory_space<vmem>>, vector<3x256xbf16>
    tpu.vector_store %arg17[%c64, %c0_31], %60 {strides = array<i32>} : memref<288x256xbf16, #tpu.memory_space<vmem>>, vector<3x256xbf16>,
    %c0_32 = arith.constant 0 : index
    %c0_33 = arith.constant 0 : index
    %62 = vector.load %arg3[%c0_32, %c0_33] : memref<32x72xbf16, #tpu.memory_space<vmem>>, vector<32x72xbf16>
    %c0_34 = arith.constant 0 : index
    %c0_35 = arith.constant 0 : index
    %63 = vector.load %arg17[%c0_34, %c0_35] : memref<288x256xbf16, #tpu.memory_space<vmem>>, vector<72x256xbf16>
    %cst_36 = arith.constant dense<0.000000e+00> : vector<32x256xf32>
    %64 = tpu.matmul %62, %63, %cst_36 {dimension_numbers = #tpu.dot_dimension_numbers<[1], [0], [0], [1], [0, 0, 1, 1], [], []>} : vector<32x72xbf16>, vector<72x256xbf16>, vector<32x256xf32> -> vector<32x256xf32>
    %c0_37 = arith.constant 0 : index
    %c0_38 = arith.constant 0 : index
    %65 = vector.load %arg4[%c0_37, %c0_38] : memref<32x1xf32, #tpu.memory_space<vmem>>, vector<32x1xf32>
    %66 = vector.broadcast %65 : vector<32x1xf32> to vector<32x256xf32>
    %67 = arith.addf %64, %66 : vector<32x256xf32>
    %cst_39 = arith.constant 0.000000e+00 : f32
    %68 = vector.broadcast %cst_39 : f32 to vector<32x256xf32>
    %69 = arith.maximumf %67, %68 : vector<32x256xf32>
    %c17_i32_40 = arith.constant 17 : i32
    %70 = tpu.dynamic_rotate %69 by %c17_i32_40 dim 1 : vector<32x256xf32>, i32 -> vector<32x256xf32>
    %c0_41 = arith.constant 0 : index
    %c0_42 = arith.constant 0 : index
    %c0_43 = arith.constant 0 : index
    %71 = vector.load %arg2[%c0_41, %c0_42, %c0_43] : memref<9x1x256xf32, #tpu.memory_space<vmem>>, vector<1x1x256xf32>
    %72 = vector.shape_cast %71 : vector<1x1x256xf32> to vector<1x256xf32>
    %73 = vector.broadcast %72 : vector<1x256xf32> to vector<32x256xf32>
    %74 = arith.mulf %70, %73 : vector<32x256xf32>
    %75 = arith.truncf %74 : vector<32x256xf32> to vector<32x256xbf16>
    %c0_44 = arith.constant 0 : index
    %c0_45 = arith.constant 0 : index
    %76 = vector.load %arg17[%c0_44, %c0_45] : memref<288x256xbf16, #tpu.memory_space<vmem>>, vector<32x256xbf16>
    tpu.vector_store %arg17[%c0_44, %c0_45], %75 {strides = array<i32>} : memref<288x256xbf16, #tpu.memory_space<vmem>>, vector<32x256xbf16>,
    %c16_i32_46 = arith.constant 16 : i32
    %77 = tpu.dynamic_rotate %69 by %c16_i32_46 dim 1 : vector<32x256xf32>, i32 -> vector<32x256xf32>
    %c1_47 = arith.constant 1 : index
    %c0_48 = arith.constant 0 : index
    %c0_49 = arith.constant 0 : index
    %78 = vector.load %arg2[%c1_47, %c0_48, %c0_49] : memref<9x1x256xf32, #tpu.memory_space<vmem>>, vector<1x1x256xf32>
    %79 = vector.shape_cast %78 : vector<1x1x256xf32> to vector<1x256xf32>
    %80 = vector.broadcast %79 : vector<1x256xf32> to vector<32x256xf32>
    %81 = arith.mulf %77, %80 : vector<32x256xf32>
    %82 = arith.truncf %81 : vector<32x256xf32> to vector<32x256xbf16>
    %c32_50 = arith.constant 32 : index
    %c0_51 = arith.constant 0 : index
    %83 = vector.load %arg17[%c32_50, %c0_51] : memref<288x256xbf16, #tpu.memory_space<vmem>>, vector<32x256xbf16>
    tpu.vector_store %arg17[%c32_50, %c0_51], %82 {strides = array<i32>} : memref<288x256xbf16, #tpu.memory_space<vmem>>, vector<32x256xbf16>,
    %c15_i32_52 = arith.constant 15 : i32
    %84 = tpu.dynamic_rotate %69 by %c15_i32_52 dim 1 : vector<32x256xf32>, i32 -> vector<32x256xf32>
    %c2_53 = arith.constant 2 : index
    %c0_54 = arith.constant 0 : index
    %c0_55 = arith.constant 0 : index
    %85 = vector.load %arg2[%c2_53, %c0_54, %c0_55] : memref<9x1x256xf32, #tpu.memory_space<vmem>>, vector<1x1x256xf32>
    %86 = vector.shape_cast %85 : vector<1x1x256xf32> to vector<1x256xf32>
    %87 = vector.broadcast %86 : vector<1x256xf32> to vector<32x256xf32>
    %88 = arith.mulf %84, %87 : vector<32x256xf32>
    %89 = arith.truncf %88 : vector<32x256xf32> to vector<32x256xbf16>
    %c64_56 = arith.constant 64 : index
    %c0_57 = arith.constant 0 : index
    %90 = vector.load %arg17[%c64_56, %c0_57] : memref<288x256xbf16, #tpu.memory_space<vmem>>, vector<32x256xbf16>
    tpu.vector_store %arg17[%c64_56, %c0_57], %89 {strides = array<i32>} : memref<288x256xbf16, #tpu.memory_space<vmem>>, vector<32x256xbf16>,
    %c1_i32_58 = arith.constant 1 : i32
    %91 = tpu.dynamic_rotate %69 by %c1_i32_58 dim 1 : vector<32x256xf32>, i32 -> vector<32x256xf32>
    %c3_59 = arith.constant 3 : index
    %c0_60 = arith.constant 0 : index
    %c0_61 = arith.constant 0 : index
    %92 = vector.load %arg2[%c3_59, %c0_60, %c0_61] : memref<9x1x256xf32, #tpu.memory_space<vmem>>, vector<1x1x256xf32>
    %93 = vector.shape_cast %92 : vector<1x1x256xf32> to vector<1x256xf32>
    %94 = vector.broadcast %93 : vector<1x256xf32> to vector<32x256xf32>
    %95 = arith.mulf %91, %94 : vector<32x256xf32>
    %96 = arith.truncf %95 : vector<32x256xf32> to vector<32x256xbf16>
    %c96 = arith.constant 96 : index
    %c0_62 = arith.constant 0 : index
    %97 = vector.load %arg17[%c96, %c0_62] : memref<288x256xbf16, #tpu.memory_space<vmem>>, vector<32x256xbf16>
    tpu.vector_store %arg17[%c96, %c0_62], %96 {strides = array<i32>} : memref<288x256xbf16, #tpu.memory_space<vmem>>, vector<32x256xbf16>,
    %98 = arith.truncf %69 : vector<32x256xf32> to vector<32x256xbf16>
    %c128 = arith.constant 128 : index
    %c0_63 = arith.constant 0 : index
    %99 = vector.load %arg17[%c128, %c0_63] : memref<288x256xbf16, #tpu.memory_space<vmem>>, vector<32x256xbf16>
    tpu.vector_store %arg17[%c128, %c0_63], %98 {strides = array<i32>} : memref<288x256xbf16, #tpu.memory_space<vmem>>, vector<32x256xbf16>,
    %c255_i32_64 = arith.constant 255 : i32
    %100 = tpu.dynamic_rotate %69 by %c255_i32_64 dim 1 : vector<32x256xf32>, i32 -> vector<32x256xf32>
    %c5_65 = arith.constant 5 : index
    %c0_66 = arith.constant 0 : index
    %c0_67 = arith.constant 0 : index
    %101 = vector.load %arg2[%c5_65, %c0_66, %c0_67] : memref<9x1x256xf32, #tpu.memory_space<vmem>>, vector<1x1x256xf32>
    %102 = vector.shape_cast %101 : vector<1x1x256xf32> to vector<1x256xf32>
    %103 = vector.broadcast %102 : vector<1x256xf32> to vector<32x256xf32>
    %104 = arith.mulf %100, %103 : vector<32x256xf32>
    %105 = arith.truncf %104 : vector<32x256xf32> to vector<32x256xbf16>
    %c160 = arith.constant 160 : index
    %c0_68 = arith.constant 0 : index
    %106 = vector.load %arg17[%c160, %c0_68] : memref<288x256xbf16, #tpu.memory_space<vmem>>, vector<32x256xbf16>
    tpu.vector_store %arg17[%c160, %c0_68], %105 {strides = array<i32>} : memref<288x256xbf16, #tpu.memory_space<vmem>>, vector<32x256xbf16>,
    %c241_i32_69 = arith.constant 241 : i32
    %107 = tpu.dynamic_rotate %69 by %c241_i32_69 dim 1 : vector<32x256xf32>, i32 -> vector<32x256xf32>
    %c6_70 = arith.constant 6 : index
    %c0_71 = arith.constant 0 : index
    %c0_72 = arith.constant 0 : index
    %108 = vector.load %arg2[%c6_70, %c0_71, %c0_72] : memref<9x1x256xf32, #tpu.memory_space<vmem>>, vector<1x1x256xf32>
    %109 = vector.shape_cast %108 : vector<1x1x256xf32> to vector<1x256xf32>
    %110 = vector.broadcast %109 : vector<1x256xf32> to vector<32x256xf32>
    %111 = arith.mulf %107, %110 : vector<32x256xf32>
    %112 = arith.truncf %111 : vector<32x256xf32> to vector<32x256xbf16>
    %c192 = arith.constant 192 : index
    %c0_73 = arith.constant 0 : index
    %113 = vector.load %arg17[%c192, %c0_73] : memref<288x256xbf16, #tpu.memory_space<vmem>>, vector<32x256xbf16>
    tpu.vector_store %arg17[%c192, %c0_73], %112 {strides = array<i32>} : memref<288x256xbf16, #tpu.memory_space<vmem>>, vector<32x256xbf16>,
    %c240_i32_74 = arith.constant 240 : i32
    %114 = tpu.dynamic_rotate %69 by %c240_i32_74 dim 1 : vector<32x256xf32>, i32 -> vector<32x256xf32>
    %c7_75 = arith.constant 7 : index
    %c0_76 = arith.constant 0 : index
    %c0_77 = arith.constant 0 : index
    %115 = vector.load %arg2[%c7_75, %c0_76, %c0_77] : memref<9x1x256xf32, #tpu.memory_space<vmem>>, vector<1x1x256xf32>
    %116 = vector.shape_cast %115 : vector<1x1x256xf32> to vector<1x256xf32>
    %117 = vector.broadcast %116 : vector<1x256xf32> to vector<32x256xf32>
    %118 = arith.mulf %114, %117 : vector<32x256xf32>
    %119 = arith.truncf %118 : vector<32x256xf32> to vector<32x256xbf16>
    %c224 = arith.constant 224 : index
    %c0_78 = arith.constant 0 : index
    %120 = vector.load %arg17[%c224, %c0_78] : memref<288x256xbf16, #tpu.memory_space<vmem>>, vector<32x256xbf16>
    tpu.vector_store %arg17[%c224, %c0_78], %119 {strides = array<i32>} : memref<288x256xbf16, #tpu.memory_space<vmem>>, vector<32x256xbf16>,
    %c239_i32_79 = arith.constant 239 : i32
    %121 = tpu.dynamic_rotate %69 by %c239_i32_79 dim 1 : vector<32x256xf32>, i32 -> vector<32x256xf32>
    %c8_80 = arith.constant 8 : index
    %c0_81 = arith.constant 0 : index
    %c0_82 = arith.constant 0 : index
    %122 = vector.load %arg2[%c8_80, %c0_81, %c0_82] : memref<9x1x256xf32, #tpu.memory_space<vmem>>, vector<1x1x256xf32>
    %123 = vector.shape_cast %122 : vector<1x1x256xf32> to vector<1x256xf32>
    %124 = vector.broadcast %123 : vector<1x256xf32> to vector<32x256xf32>
    %125 = arith.mulf %121, %124 : vector<32x256xf32>
    %126 = arith.truncf %125 : vector<32x256xf32> to vector<32x256xbf16>
    %c256 = arith.constant 256 : index
    %c0_83 = arith.constant 0 : index
    %127 = vector.load %arg17[%c256, %c0_83] : memref<288x256xbf16, #tpu.memory_space<vmem>>, vector<32x256xbf16>
    tpu.vector_store %arg17[%c256, %c0_83], %126 {strides = array<i32>} : memref<288x256xbf16, #tpu.memory_space<vmem>>, vector<32x256xbf16>,
    %c0_84 = arith.constant 0 : index
    %c0_85 = arith.constant 0 : index
    %128 = vector.load %arg5[%c0_84, %c0_85] : memref<64x288xbf16, #tpu.memory_space<vmem>>, vector<64x288xbf16>
    %c0_86 = arith.constant 0 : index
    %c0_87 = arith.constant 0 : index
    %129 = vector.load %arg17[%c0_86, %c0_87] : memref<288x256xbf16, #tpu.memory_space<vmem>>, vector<288x256xbf16>
    %cst_88 = arith.constant dense<0.000000e+00> : vector<64x256xf32>
    %130 = tpu.matmul %128, %129, %cst_88 {dimension_numbers = #tpu.dot_dimension_numbers<[1], [0], [0], [1], [0, 0, 1, 1], [], []>} : vector<64x288xbf16>, vector<288x256xbf16>, vector<64x256xf32> -> vector<64x256xf32>
    %c0_89 = arith.constant 0 : index
    %c0_90 = arith.constant 0 : index
    %131 = vector.load %arg6[%c0_89, %c0_90] : memref<64x1xf32, #tpu.memory_space<vmem>>, vector<64x1xf32>
    %132 = vector.broadcast %131 : vector<64x1xf32> to vector<64x256xf32>
    %133 = arith.addf %130, %132 : vector<64x256xf32>
    %cst_91 = arith.constant 0.000000e+00 : f32
    %134 = vector.broadcast %cst_91 : f32 to vector<64x256xf32>
    %135 = arith.maximumf %133, %134 : vector<64x256xf32>
    %136 = arith.truncf %135 : vector<64x256xf32> to vector<64x256xbf16>
    %c0_92 = arith.constant 0 : index
    %c0_93 = arith.constant 0 : index
    %137 = vector.load %arg7[%c0_92, %c0_93] : memref<256x64xbf16, #tpu.memory_space<vmem>>, vector<256x64xbf16>
    %cst_94 = arith.constant dense<0.000000e+00> : vector<64x64xf32>
    %138 = tpu.matmul %136, %137, %cst_94 {dimension_numbers = #tpu.dot_dimension_numbers<[1], [0], [0], [1], [0, 0, 1, 1], [], []>} : vector<64x256xbf16>, vector<256x64xbf16>, vector<64x64xf32> -> vector<64x64xf32>
    %c0_95 = arith.constant 0 : index
    %c0_96 = arith.constant 0 : index
    %139 = vector.load %arg18[%c0_95, %c0_96] : memref<64x64xf32, #tpu.memory_space<vmem>>, vector<64x64xf32>
    tpu.vector_store %arg18[%c0_95, %c0_96], %138 {strides = array<i32>} : memref<64x64xf32, #tpu.memory_space<vmem>>, vector<64x64xf32>,
    %c0_97 = arith.constant 0 : index
    %c0_98 = arith.constant 0 : index
    %140 = vector.load %arg18[%c0_97, %c0_98] : memref<64x64xf32, #tpu.memory_space<vmem>>, vector<8x64xf32>
    %141 = arith.truncf %140 : vector<8x64xf32> to vector<8x64xbf16>
    %c0_99 = arith.constant 0 : index
    %c0_100 = arith.constant 0 : index
    %142 = vector.load %arg19[%c0_99, %c0_100] : memref<8x512xbf16, #tpu.memory_space<vmem>>, vector<8x64xbf16>
    tpu.vector_store %arg19[%c0_99, %c0_100], %141 {strides = array<i32>} : memref<8x512xbf16, #tpu.memory_space<vmem>>, vector<8x64xbf16>,
    %c8_101 = arith.constant 8 : index
    %c0_102 = arith.constant 0 : index
    %143 = vector.load %arg18[%c8_101, %c0_102] : memref<64x64xf32, #tpu.memory_space<vmem>>, vector<8x64xf32>
    %144 = arith.truncf %143 : vector<8x64xf32> to vector<8x64xbf16>
    %c0_103 = arith.constant 0 : index
    %c64_104 = arith.constant 64 : index
    %145 = vector.load %arg19[%c0_103, %c64_104] : memref<8x512xbf16, #tpu.memory_space<vmem>>, vector<8x64xbf16>
    tpu.vector_store %arg19[%c0_103, %c64_104], %144 {strides = array<i32>} : memref<8x512xbf16, #tpu.memory_space<vmem>>, vector<8x64xbf16>,
    %c16_105 = arith.constant 16 : index
    %c0_106 = arith.constant 0 : index
    %146 = vector.load %arg18[%c16_105, %c0_106] : memref<64x64xf32, #tpu.memory_space<vmem>>, vector<8x64xf32>
    %147 = arith.truncf %146 : vector<8x64xf32> to vector<8x64xbf16>
    %c0_107 = arith.constant 0 : index
    %c128_108 = arith.constant 128 : index
    %148 = vector.load %arg19[%c0_107, %c128_108] : memref<8x512xbf16, #tpu.memory_space<vmem>>, vector<8x64xbf16>
    tpu.vector_store %arg19[%c0_107, %c128_108], %147 {strides = array<i32>} : memref<8x512xbf16, #tpu.memory_space<vmem>>, vector<8x64xbf16>,
    %c24_109 = arith.constant 24 : index
    %c0_110 = arith.constant 0 : index
    %149 = vector.load %arg18[%c24_109, %c0_110] : memref<64x64xf32, #tpu.memory_space<vmem>>, vector<8x64xf32>
    %150 = arith.truncf %149 : vector<8x64xf32> to vector<8x64xbf16>
    %c0_111 = arith.constant 0 : index
    %c192_112 = arith.constant 192 : index
    %151 = vector.load %arg19[%c0_111, %c192_112] : memref<8x512xbf16, #tpu.memory_space<vmem>>, vector<8x64xbf16>
    tpu.vector_store %arg19[%c0_111, %c192_112], %150 {strides = array<i32>} : memref<8x512xbf16, #tpu.memory_space<vmem>>, vector<8x64xbf16>,
    %c32_113 = arith.constant 32 : index
    %c0_114 = arith.constant 0 : index
    %152 = vector.load %arg18[%c32_113, %c0_114] : memref<64x64xf32, #tpu.memory_space<vmem>>, vector<8x64xf32>
    %153 = arith.truncf %152 : vector<8x64xf32> to vector<8x64xbf16>
    %c0_115 = arith.constant 0 : index
    %c256_116 = arith.constant 256 : index
    %154 = vector.load %arg19[%c0_115, %c256_116] : memref<8x512xbf16, #tpu.memory_space<vmem>>, vector<8x64xbf16>
    tpu.vector_store %arg19[%c0_115, %c256_116], %153 {strides = array<i32>} : memref<8x512xbf16, #tpu.memory_space<vmem>>, vector<8x64xbf16>,
    %c40_117 = arith.constant 40 : index
    %c0_118 = arith.constant 0 : index
    %155 = vector.load %arg18[%c40_117, %c0_118] : memref<64x64xf32, #tpu.memory_space<vmem>>, vector<8x64xf32>
    %156 = arith.truncf %155 : vector<8x64xf32> to vector<8x64xbf16>
    %c0_119 = arith.constant 0 : index
    %c320 = arith.constant 320 : index
    %157 = vector.load %arg19[%c0_119, %c320] : memref<8x512xbf16, #tpu.memory_space<vmem>>, vector<8x64xbf16>
    tpu.vector_store %arg19[%c0_119, %c320], %156 {strides = array<i32>} : memref<8x512xbf16, #tpu.memory_space<vmem>>, vector<8x64xbf16>,
    %c48_120 = arith.constant 48 : index
    %c0_121 = arith.constant 0 : index
    %158 = vector.load %arg18[%c48_120, %c0_121] : memref<64x64xf32, #tpu.memory_space<vmem>>, vector<8x64xf32>
    %159 = arith.truncf %158 : vector<8x64xf32> to vector<8x64xbf16>
    %c0_122 = arith.constant 0 : index
    %c384 = arith.constant 384 : index
    %160 = vector.load %arg19[%c0_122, %c384] : memref<8x512xbf16, #tpu.memory_space<vmem>>, vector<8x64xbf16>
    tpu.vector_store %arg19[%c0_122, %c384], %159 {strides = array<i32>} : memref<8x512xbf16, #tpu.memory_space<vmem>>, vector<8x64xbf16>,
    %c56_123 = arith.constant 56 : index
    %c0_124 = arith.constant 0 : index
    %161 = vector.load %arg18[%c56_123, %c0_124] : memref<64x64xf32, #tpu.memory_space<vmem>>, vector<8x64xf32>
    %162 = arith.truncf %161 : vector<8x64xf32> to vector<8x64xbf16>
    %c0_125 = arith.constant 0 : index
    %c448 = arith.constant 448 : index
    %163 = vector.load %arg19[%c0_125, %c448] : memref<8x512xbf16, #tpu.memory_space<vmem>>, vector<8x64xbf16>
    tpu.vector_store %arg19[%c0_125, %c448], %162 {strides = array<i32>} : memref<8x512xbf16, #tpu.memory_space<vmem>>, vector<8x64xbf16>,
    %c0_126 = arith.constant 0 : index
    %c0_127 = arith.constant 0 : index
    %164 = vector.load %arg9[%c0_126, %c0_127] : memref<1x64xf32, #tpu.memory_space<vmem>>, vector<1x64xf32>
    %c0_128 = arith.constant 0 : index
    %c0_129 = arith.constant 0 : index
    %165 = vector.load %arg19[%c0_128, %c0_129] : memref<8x512xbf16, #tpu.memory_space<vmem>>, vector<1x512xbf16>
    %c0_130 = arith.constant 0 : index
    %c0_131 = arith.constant 0 : index
    %c0_132 = arith.constant 0 : index
    %166 = vector.load %arg8[%c0_130, %c0_131, %c0_132] : memref<8x512x64xbf16, #tpu.memory_space<vmem>>, vector<1x512x64xbf16>
    %167 = vector.shape_cast %166 : vector<1x512x64xbf16> to vector<512x64xbf16>
    %cst_133 = arith.constant dense<0.000000e+00> : vector<1x64xf32>
    %168 = tpu.matmul %165, %167, %cst_133 {dimension_numbers = #tpu.dot_dimension_numbers<[1], [0], [0], [1], [0, 0, 1, 1], [], []>} : vector<1x512xbf16>, vector<512x64xbf16>, vector<1x64xf32> -> vector<1x64xf32>
    %169 = arith.addf %164, %168 : vector<1x64xf32>
    %c1_134 = arith.constant 1 : index
    %c0_135 = arith.constant 0 : index
    %170 = vector.load %arg19[%c1_134, %c0_135] : memref<8x512xbf16, #tpu.memory_space<vmem>>, vector<1x512xbf16>
    %c1_136 = arith.constant 1 : index
    %c0_137 = arith.constant 0 : index
    %c0_138 = arith.constant 0 : index
    %171 = vector.load %arg8[%c1_136, %c0_137, %c0_138] : memref<8x512x64xbf16, #tpu.memory_space<vmem>>, vector<1x512x64xbf16>
    %172 = vector.shape_cast %171 : vector<1x512x64xbf16> to vector<512x64xbf16>
    %cst_139 = arith.constant dense<0.000000e+00> : vector<1x64xf32>
    %173 = tpu.matmul %170, %172, %cst_139 {dimension_numbers = #tpu.dot_dimension_numbers<[1], [0], [0], [1], [0, 0, 1, 1], [], []>} : vector<1x512xbf16>, vector<512x64xbf16>, vector<1x64xf32> -> vector<1x64xf32>
    %174 = arith.addf %169, %173 : vector<1x64xf32>
    %c2_140 = arith.constant 2 : index
    %c0_141 = arith.constant 0 : index
    %175 = vector.load %arg19[%c2_140, %c0_141] : memref<8x512xbf16, #tpu.memory_space<vmem>>, vector<1x512xbf16>
    %c2_142 = arith.constant 2 : index
    %c0_143 = arith.constant 0 : index
    %c0_144 = arith.constant 0 : index
    %176 = vector.load %arg8[%c2_142, %c0_143, %c0_144] : memref<8x512x64xbf16, #tpu.memory_space<vmem>>, vector<1x512x64xbf16>
    %177 = vector.shape_cast %176 : vector<1x512x64xbf16> to vector<512x64xbf16>
    %cst_145 = arith.constant dense<0.000000e+00> : vector<1x64xf32>
    %178 = tpu.matmul %175, %177, %cst_145 {dimension_numbers = #tpu.dot_dimension_numbers<[1], [0], [0], [1], [0, 0, 1, 1], [], []>} : vector<1x512xbf16>, vector<512x64xbf16>, vector<1x64xf32> -> vector<1x64xf32>
    %179 = arith.addf %174, %178 : vector<1x64xf32>
    %c3_146 = arith.constant 3 : index
    %c0_147 = arith.constant 0 : index
    %180 = vector.load %arg19[%c3_146, %c0_147] : memref<8x512xbf16, #tpu.memory_space<vmem>>, vector<1x512xbf16>
    %c3_148 = arith.constant 3 : index
    %c0_149 = arith.constant 0 : index
    %c0_150 = arith.constant 0 : index
    %181 = vector.load %arg8[%c3_148, %c0_149, %c0_150] : memref<8x512x64xbf16, #tpu.memory_space<vmem>>, vector<1x512x64xbf16>
    %182 = vector.shape_cast %181 : vector<1x512x64xbf16> to vector<512x64xbf16>
    %cst_151 = arith.constant dense<0.000000e+00> : vector<1x64xf32>
    %183 = tpu.matmul %180, %182, %cst_151 {dimension_numbers = #tpu.dot_dimension_numbers<[1], [0], [0], [1], [0, 0, 1, 1], [], []>} : vector<1x512xbf16>, vector<512x64xbf16>, vector<1x64xf32> -> vector<1x64xf32>
    %184 = arith.addf %179, %183 : vector<1x64xf32>
    %c4 = arith.constant 4 : index
    %c0_152 = arith.constant 0 : index
    %185 = vector.load %arg19[%c4, %c0_152] : memref<8x512xbf16, #tpu.memory_space<vmem>>, vector<1x512xbf16>
    %c4_153 = arith.constant 4 : index
    %c0_154 = arith.constant 0 : index
    %c0_155 = arith.constant 0 : index
    %186 = vector.load %arg8[%c4_153, %c0_154, %c0_155] : memref<8x512x64xbf16, #tpu.memory_space<vmem>>, vector<1x512x64xbf16>
    %187 = vector.shape_cast %186 : vector<1x512x64xbf16> to vector<512x64xbf16>
    %cst_156 = arith.constant dense<0.000000e+00> : vector<1x64xf32>
    %188 = tpu.matmul %185, %187, %cst_156 {dimension_numbers = #tpu.dot_dimension_numbers<[1], [0], [0], [1], [0, 0, 1, 1], [], []>} : vector<1x512xbf16>, vector<512x64xbf16>, vector<1x64xf32> -> vector<1x64xf32>
    %189 = arith.addf %184, %188 : vector<1x64xf32>
    %c5_157 = arith.constant 5 : index
    %c0_158 = arith.constant 0 : index
    %190 = vector.load %arg19[%c5_157, %c0_158] : memref<8x512xbf16, #tpu.memory_space<vmem>>, vector<1x512xbf16>
    %c5_159 = arith.constant 5 : index
    %c0_160 = arith.constant 0 : index
    %c0_161 = arith.constant 0 : index
    %191 = vector.load %arg8[%c5_159, %c0_160, %c0_161] : memref<8x512x64xbf16, #tpu.memory_space<vmem>>, vector<1x512x64xbf16>
    %192 = vector.shape_cast %191 : vector<1x512x64xbf16> to vector<512x64xbf16>
    %cst_162 = arith.constant dense<0.000000e+00> : vector<1x64xf32>
    %193 = tpu.matmul %190, %192, %cst_162 {dimension_numbers = #tpu.dot_dimension_numbers<[1], [0], [0], [1], [0, 0, 1, 1], [], []>} : vector<1x512xbf16>, vector<512x64xbf16>, vector<1x64xf32> -> vector<1x64xf32>
    %194 = arith.addf %189, %193 : vector<1x64xf32>
    %c6_163 = arith.constant 6 : index
    %c0_164 = arith.constant 0 : index
    %195 = vector.load %arg19[%c6_163, %c0_164] : memref<8x512xbf16, #tpu.memory_space<vmem>>, vector<1x512xbf16>
    %c6_165 = arith.constant 6 : index
    %c0_166 = arith.constant 0 : index
    %c0_167 = arith.constant 0 : index
    %196 = vector.load %arg8[%c6_165, %c0_166, %c0_167] : memref<8x512x64xbf16, #tpu.memory_space<vmem>>, vector<1x512x64xbf16>
    %197 = vector.shape_cast %196 : vector<1x512x64xbf16> to vector<512x64xbf16>
    %cst_168 = arith.constant dense<0.000000e+00> : vector<1x64xf32>
    %198 = tpu.matmul %195, %197, %cst_168 {dimension_numbers = #tpu.dot_dimension_numbers<[1], [0], [0], [1], [0, 0, 1, 1], [], []>} : vector<1x512xbf16>, vector<512x64xbf16>, vector<1x64xf32> -> vector<1x64xf32>
    %199 = arith.addf %194, %198 : vector<1x64xf32>
    %c7_169 = arith.constant 7 : index
    %c0_170 = arith.constant 0 : index
    %200 = vector.load %arg19[%c7_169, %c0_170] : memref<8x512xbf16, #tpu.memory_space<vmem>>, vector<1x512xbf16>
    %c7_171 = arith.constant 7 : index
    %c0_172 = arith.constant 0 : index
    %c0_173 = arith.constant 0 : index
    %201 = vector.load %arg8[%c7_171, %c0_172, %c0_173] : memref<8x512x64xbf16, #tpu.memory_space<vmem>>, vector<1x512x64xbf16>
    %202 = vector.shape_cast %201 : vector<1x512x64xbf16> to vector<512x64xbf16>
    %cst_174 = arith.constant dense<0.000000e+00> : vector<1x64xf32>
    %203 = tpu.matmul %200, %202, %cst_174 {dimension_numbers = #tpu.dot_dimension_numbers<[1], [0], [0], [1], [0, 0, 1, 1], [], []>} : vector<1x512xbf16>, vector<512x64xbf16>, vector<1x64xf32> -> vector<1x64xf32>
    %204 = arith.addf %199, %203 : vector<1x64xf32>
    %cst_175 = arith.constant 0.000000e+00 : f32
    %205 = vector.broadcast %cst_175 : f32 to vector<1x64xf32>
    %206 = arith.maximumf %204, %205 : vector<1x64xf32>
    %207 = arith.truncf %206 : vector<1x64xf32> to vector<1x64xbf16>
    %c0_176 = arith.constant 0 : index
    %c0_177 = arith.constant 0 : index
    %208 = vector.load %arg10[%c0_176, %c0_177] : memref<64x64xbf16, #tpu.memory_space<vmem>>, vector<64x64xbf16>
    %cst_178 = arith.constant dense<0.000000e+00> : vector<1x64xf32>
    %209 = tpu.matmul %207, %208, %cst_178 {dimension_numbers = #tpu.dot_dimension_numbers<[1], [0], [0], [1], [0, 0, 1, 1], [], []>} : vector<1x64xbf16>, vector<64x64xbf16>, vector<1x64xf32> -> vector<1x64xf32>
    %c0_179 = arith.constant 0 : index
    %c0_180 = arith.constant 0 : index
    %210 = vector.load %arg11[%c0_179, %c0_180] : memref<1x64xf32, #tpu.memory_space<vmem>>, vector<1x64xf32>
    %211 = arith.addf %209, %210 : vector<1x64xf32>
    %cst_181 = arith.constant 0.000000e+00 : f32
    %212 = vector.broadcast %cst_181 : f32 to vector<1x64xf32>
    %213 = arith.maximumf %211, %212 : vector<1x64xf32>
    %214 = arith.truncf %213 : vector<1x64xf32> to vector<1x64xbf16>
    %c0_182 = arith.constant 0 : index
    %c0_183 = arith.constant 0 : index
    %215 = vector.load %arg12[%c0_182, %c0_183] : memref<64x32xbf16, #tpu.memory_space<vmem>>, vector<64x32xbf16>
    %cst_184 = arith.constant dense<0.000000e+00> : vector<1x32xf32>
    %216 = tpu.matmul %214, %215, %cst_184 {dimension_numbers = #tpu.dot_dimension_numbers<[1], [0], [0], [1], [0, 0, 1, 1], [], []>} : vector<1x64xbf16>, vector<64x32xbf16>, vector<1x32xf32> -> vector<1x32xf32>
    %c0_185 = arith.constant 0 : index
    %c0_186 = arith.constant 0 : index
    %217 = vector.load %arg13[%c0_185, %c0_186] : memref<1x32xf32, #tpu.memory_space<vmem>>, vector<1x32xf32>
    %218 = arith.addf %216, %217 : vector<1x32xf32>
    %cst_187 = arith.constant 0.000000e+00 : f32
    %219 = vector.broadcast %cst_187 : f32 to vector<1x32xf32>
    %220 = arith.maximumf %218, %219 : vector<1x32xf32>
    %221 = arith.truncf %220 : vector<1x32xf32> to vector<1x32xbf16>
    %c0_188 = arith.constant 0 : index
    %c0_189 = arith.constant 0 : index
    %222 = vector.load %arg14[%c0_188, %c0_189] : memref<32x4xbf16, #tpu.memory_space<vmem>>, vector<32x4xbf16>
    %cst_190 = arith.constant dense<0.000000e+00> : vector<1x4xf32>
    %223 = tpu.matmul %221, %222, %cst_190 {dimension_numbers = #tpu.dot_dimension_numbers<[1], [0], [0], [1], [0, 0, 1, 1], [], []>} : vector<1x32xbf16>, vector<32x4xbf16>, vector<1x4xf32> -> vector<1x4xf32>
    %c0_191 = arith.constant 0 : index
    %c0_192 = arith.constant 0 : index
    %224 = vector.load %arg15[%c0_191, %c0_192] : memref<1x4xf32, #tpu.memory_space<vmem>>, vector<1x4xf32>
    %225 = arith.addf %223, %224 : vector<1x4xf32>
    %226 = tpu.iota {dimensions = array<i32: 1>} : vector<1x4xi32>
    %c2_i32 = arith.constant 2 : i32
    %227 = vector.broadcast %c2_i32 : i32 to vector<1x4xi32>
    %228 = arith.cmpi slt, %226, %227 : vector<1x4xi32>
    %229 = math.tanh %225 : vector<1x4xf32>
    %230 = arith.negf %225 : vector<1x4xf32>
    %231 = math.exp %230 : vector<1x4xf32>
    %cst_193 = arith.constant 1.000000e+00 : f32
    %232 = vector.broadcast %cst_193 : f32 to vector<1x4xf32>
    %233 = arith.addf %232, %231 : vector<1x4xf32>
    %234 = arith.divf %232, %233 : vector<1x4xf32>
    %235 = arith.select %228, %229, %234 : vector<1x4xi1>, vector<1x4xf32>
    %c0_194 = arith.constant 0 : index
    %c0_195 = arith.constant 0 : index
    %c0_196 = arith.constant 0 : index
    %236 = vector.load %arg16[%c0_194, %c0_195, %c0_196] : memref<1x1x4xf32, #tpu.memory_space<vmem>>, vector<1x1x4xf32>
    %237 = vector.shape_cast %236 : vector<1x1x4xf32> to vector<1x4xf32>
    %238 = vector.shape_cast %235 : vector<1x4xf32> to vector<1x1x4xf32>
    tpu.vector_store %arg16[%c0_194, %c0_195, %c0_196], %238 {strides = array<i32>} : memref<1x1x4xf32, #tpu.memory_space<vmem>>, vector<1x1x4xf32>,
    return
  }
  func.func @transform_0(%arg0: i32) -> (i32, i32, i32) {
    %c0_i32 = arith.constant 0 : i32
    %c0_i32_0 = arith.constant 0 : i32
    %c0_i32_1 = arith.constant 0 : i32
    return %arg0, %c0_i32, %c0_i32_0 : i32, i32, i32
  }
  func.func @transform_1(%arg0: i32) -> (i32, i32, i32) {
    %c0_i32 = arith.constant 0 : i32
    %c0_i32_0 = arith.constant 0 : i32
    %c0_i32_1 = arith.constant 0 : i32
    %c0_i32_2 = arith.constant 0 : i32
    return %c0_i32, %c0_i32_0, %c0_i32_1 : i32, i32, i32
  }
  func.func @transform_2(%arg0: i32) -> (i32, i32) {
    %c0_i32 = arith.constant 0 : i32
    %c0_i32_0 = arith.constant 0 : i32
    %c0_i32_1 = arith.constant 0 : i32
    return %c0_i32, %c0_i32_0 : i32, i32
  }
  func.func @transform_3(%arg0: i32) -> (i32, i32) {
    %c0_i32 = arith.constant 0 : i32
    %c0_i32_0 = arith.constant 0 : i32
    %c0_i32_1 = arith.constant 0 : i32
    return %c0_i32, %c0_i32_0 : i32, i32
  }
  func.func @transform_4(%arg0: i32) -> (i32, i32) {
    %c0_i32 = arith.constant 0 : i32
    %c0_i32_0 = arith.constant 0 : i32
    %c0_i32_1 = arith.constant 0 : i32
    return %c0_i32, %c0_i32_0 : i32, i32
  }
  func.func @transform_5(%arg0: i32) -> (i32, i32) {
    %c0_i32 = arith.constant 0 : i32
    %c0_i32_0 = arith.constant 0 : i32
    %c0_i32_1 = arith.constant 0 : i32
    return %c0_i32, %c0_i32_0 : i32, i32
  }
  func.func @transform_6(%arg0: i32) -> (i32, i32) {
    %c0_i32 = arith.constant 0 : i32
    %c0_i32_0 = arith.constant 0 : i32
    %c0_i32_1 = arith.constant 0 : i32
    return %c0_i32, %c0_i32_0 : i32, i32
  }
  func.func @transform_7(%arg0: i32) -> (i32, i32, i32) {
    %c0_i32 = arith.constant 0 : i32
    %c0_i32_0 = arith.constant 0 : i32
    %c0_i32_1 = arith.constant 0 : i32
    %c0_i32_2 = arith.constant 0 : i32
    return %c0_i32, %c0_i32_0, %c0_i32_1 : i32, i32, i32
  }
  func.func @transform_8(%arg0: i32) -> (i32, i32) {
    %c0_i32 = arith.constant 0 : i32
    %c0_i32_0 = arith.constant 0 : i32
    %c0_i32_1 = arith.constant 0 : i32
    return %c0_i32, %c0_i32_0 : i32, i32
  }
  func.func @transform_9(%arg0: i32) -> (i32, i32) {
    %c0_i32 = arith.constant 0 : i32
    %c0_i32_0 = arith.constant 0 : i32
    %c0_i32_1 = arith.constant 0 : i32
    return %c0_i32, %c0_i32_0 : i32, i32
  }
  func.func @transform_10(%arg0: i32) -> (i32, i32) {
    %c0_i32 = arith.constant 0 : i32
    %c0_i32_0 = arith.constant 0 : i32
    %c0_i32_1 = arith.constant 0 : i32
    return %c0_i32, %c0_i32_0 : i32, i32
  }
  func.func @transform_11(%arg0: i32) -> (i32, i32) {
    %c0_i32 = arith.constant 0 : i32
    %c0_i32_0 = arith.constant 0 : i32
    %c0_i32_1 = arith.constant 0 : i32
    return %c0_i32, %c0_i32_0 : i32, i32
  }
  func.func @transform_12(%arg0: i32) -> (i32, i32) {
    %c0_i32 = arith.constant 0 : i32
    %c0_i32_0 = arith.constant 0 : i32
    %c0_i32_1 = arith.constant 0 : i32
    return %c0_i32, %c0_i32_0 : i32, i32
  }
  func.func @transform_13(%arg0: i32) -> (i32, i32) {
    %c0_i32 = arith.constant 0 : i32
    %c0_i32_0 = arith.constant 0 : i32
    %c0_i32_1 = arith.constant 0 : i32
    return %c0_i32, %c0_i32_0 : i32, i32
  }
  func.func @transform_14(%arg0: i32) -> (i32, i32) {
    %c0_i32 = arith.constant 0 : i32
    %c0_i32_0 = arith.constant 0 : i32
    %c0_i32_1 = arith.constant 0 : i32
    return %c0_i32, %c0_i32_0 : i32, i32
  }
  func.func @transform_15(%arg0: i32) -> (i32, i32, i32) {
    %c0_i32 = arith.constant 0 : i32
    %c0_i32_0 = arith.constant 0 : i32
    %c0_i32_1 = arith.constant 0 : i32
    return %arg0, %c0_i32, %c0_i32_0 : i32, i32, i32
  }
}

</mosaic_0001>

<llo_original>
// kernel: _forward_core.1
$region0: #{_forward_core.1}
  #allocation0 [shape = 'u32[]', space=smem, size = 0x4, offset = 0x4, fixed_abs, tag = 'smem constant byte address 0x4 - core index']
  #allocation1 [shape = 'u32[72,128]{1,0:T(1,128)}', space=vmem, size = 0x9000, scoped, tag = 'internal scratch']
  #allocation2 [shape = 'bf16[288,256]{1,0:T(8,128)(2,1)}', space=vmem, size = 0x24000, scoped, tag = 'scratch operand']
  #allocation3 [shape = 'f32[64,64]{1,0:T(8,128)}', space=vmem, size = 0x8000, scoped, tag = 'scratch operand']
  #allocation4 [shape = 'bf16[8,512]{1,0:T(8,128)(2,1)}', space=vmem, size = 0x2000, scoped, tag = 'scratch operand']
  %s0 = inlined_call_operand.vmem [shape: f32[1,3,256], index: 0, kind: input, shape index: {}]
  %s1 = inlined_call_operand.vmem [shape: f32[9,1,256], index: 1, kind: input, shape index: {}]
  %s2 = inlined_call_operand.vmem [shape: bf16[32,72], index: 2, kind: input, shape index: {}]
  %s3 = inlined_call_operand.vmem [shape: f32[32,1], index: 3, kind: input, shape index: {}]
  %s4 = inlined_call_operand.vmem [shape: bf16[64,288], index: 4, kind: input, shape index: {}]
  %s5 = inlined_call_operand.vmem [shape: f32[64,1], index: 5, kind: input, shape index: {}]
  %s6 = inlined_call_operand.vmem [shape: bf16[256,64], index: 6, kind: input, shape index: {}]
  %s7 = inlined_call_operand.vmem [shape: bf16[8,512,64], index: 7, kind: input, shape index: {}]
  %s8 = inlined_call_operand.vmem [shape: f32[1,64], index: 8, kind: input, shape index: {}]
  %s9 = inlined_call_operand.vmem [shape: bf16[64,64], index: 9, kind: input, shape index: {}]
  %s10 = inlined_call_operand.vmem [shape: f32[1,64], index: 10, kind: input, shape index: {}]
  %s11 = inlined_call_operand.vmem [shape: bf16[64,32], index: 11, kind: input, shape index: {}]
  %s12 = inlined_call_operand.vmem [shape: f32[1,32], index: 12, kind: input, shape index: {}]
  %s13 = inlined_call_operand.vmem [shape: bf16[32,4], index: 13, kind: input, shape index: {}]
  %s14 = inlined_call_operand.vmem [shape: f32[1,4], index: 14, kind: input, shape index: {}]
  %s15 = inlined_call_operand.hbm [shape: f32[1,1,4], index: 15, kind: output, shape index: {}]
  %s16 = sld [smem:[#allocation0]]
  $region70: #{_forward_core.1} parent=0
    _
  %s18 = ssub.s32 1, %s16
  %s19 = scalar_select 0, %s18, %s16
  $region1: #{_forward_core.1} parent=0
    #allocation5 [shape = 'u8[512]{0}', space=vmem, size = 0x400, scoped, tag = 'output window, operand 0, single buffered']
    #allocation6 [shape = 's32[1]{0}', space=sflag, size = 0x4, scoped, tag = 'scoped memory for _forward_core.1']
    %20 = vsyncpa [#allocation6], 0
    // Predicated region
    $region2: #{_forward_core.1} parent=1 // pred_check
      _
    $region3: #{_forward_core.1} parent=1 // pred_check_branch
      %22 = sbr.rel (0) target = $region5
    $region4: #{_forward_core.1} parent=1 // pred_region
      _
    $region5: #{_forward_core.1} parent=1 // pred_fallthru
      _
    // Predicated region
    $region6: #{_forward_core.1} parent=1 // pred_check
      _
    $region7: #{_forward_core.1} parent=1 // pred_check_branch
      %24 = sbr.rel (0) target = $region9
    $region8: #{_forward_core.1} parent=1 // pred_region
      _
    $region9: #{_forward_core.1} parent=1 // pred_fallthru
      _
    // Predicated region
    $region10: #{_forward_core.1} parent=1 // pred_check
      _
    $region11: #{_forward_core.1} parent=1 // pred_check_branch
      %26 = sbr.rel (0) target = $region13
    $region12: #{_forward_core.1} parent=1 // pred_region
      _
    $region13: #{_forward_core.1} parent=1 // pred_fallthru
      _
    // Predicated region
    $region14: #{_forward_core.1} parent=1 // pred_check
      _
    $region15: #{_forward_core.1} parent=1 // pred_check_branch
      %28 = sbr.rel (0) target = $region17
    $region16: #{_forward_core.1} parent=1 // pred_region
      _
    $region17: #{_forward_core.1} parent=1 // pred_fallthru
      _
    // Predicated region
    $region18: #{_forward_core.1} parent=1 // pred_check
      _
    $region19: #{_forward_core.1} parent=1 // pred_check_branch
      %30 = sbr.rel (0) target = $region21
    $region20: #{_forward_core.1} parent=1 // pred_region
      _
    $region21: #{_forward_core.1} parent=1 // pred_fallthru
      _
    // Predicated region
    $region22: #{_forward_core.1} parent=1 // pred_check
      _
    $region23: #{_forward_core.1} parent=1 // pred_check_branch
      %32 = sbr.rel (0) target = $region25
    $region24: #{_forward_core.1} parent=1 // pred_region
      _
    $region25: #{_forward_core.1} parent=1 // pred_fallthru
      _
    // Predicated region
    $region26: #{_forward_core.1} parent=1 // pred_check
      _
    $region27: #{_forward_core.1} parent=1 // pred_check_branch
      %34 = sbr.rel (0) target = $region29
    $region28: #{_forward_core.1} parent=1 // pred_region
      _
    $region29: #{_forward_core.1} parent=1 // pred_fallthru
      _
    // Predicated region
    $region30: #{_forward_core.1} parent=1 // pred_check
      _
    $region31: #{_forward_core.1} parent=1 // pred_check_branch
      %36 = sbr.rel (0) target = $region33
    $region32: #{_forward_core.1} parent=1 // pred_region
      _
    $region33: #{_forward_core.1} parent=1 // pred_fallthru
      _
    // Predicated region
    $region34: #{_forward_core.1} parent=1 // pred_check
      _
    $region35: #{_forward_core.1} parent=1 // pred_check_branch
      %38 = sbr.rel (0) target = $region37
    $region36: #{_forward_core.1} parent=1 // pred_region
      _
    $region37: #{_forward_core.1} parent=1 // pred_fallthru
      _
    // Predicated region
    $region38: #{_forward_core.1} parent=1 // pred_check
      _
    $region39: #{_forward_core.1} parent=1 // pred_check_branch
      %40 = sbr.rel (0) target = $region41
    $region40: #{_forward_core.1} parent=1 // pred_region
      _
    $region41: #{_forward_core.1} parent=1 // pred_fallthru
      _
    // Predicated region
    $region42: #{_forward_core.1} parent=1 // pred_check
      _
    $region43: #{_forward_core.1} parent=1 // pred_check_branch
      %42 = sbr.rel (0) target = $region45
    $region44: #{_forward_core.1} parent=1 // pred_region
      _
    $region45: #{_forward_core.1} parent=1 // pred_fallthru
      _
    // Predicated region
    $region46: #{_forward_core.1} parent=1 // pred_check
      _
    $region47: #{_forward_core.1} parent=1 // pred_check_branch
      %44 = sbr.rel (0) target = $region49
    $region48: #{_forward_core.1} parent=1 // pred_region
      _
    $region49: #{_forward_core.1} parent=1 // pred_fallthru
      _
    // Predicated region
    $region50: #{_forward_core.1} parent=1 // pred_check
      _
    $region51: #{_forward_core.1} parent=1 // pred_check_branch
      %46 = sbr.rel (0) target = $region53
    $region52: #{_forward_core.1} parent=1 // pred_region
      _
    $region53: #{_forward_core.1} parent=1 // pred_fallthru
      _
    // Predicated region
    $region54: #{_forward_core.1} parent=1 // pred_check
      _
    $region55: #{_forward_core.1} parent=1 // pred_check_branch
      %48 = sbr.rel (0) target = $region57
    $region56: #{_forward_core.1} parent=1 // pred_region
      _
    $region57: #{_forward_core.1} parent=1 // pred_fallthru
      _
    // Predicated region
    $region58: #{_forward_core.1} parent=1 // pred_check
      _
    $region59: #{_forward_core.1} parent=1 // pred_check_branch
      %50 = sbr.rel (0) target = $region61
    $region60: #{_forward_core.1} parent=1 // pred_region
      _
    $region61: #{_forward_core.1} parent=1 // pred_fallthru
      _
    %v52 = vld [vmem:[%s0] sm:$0x77]
    %53 = vst [vmem:[#allocation2] sm:$0xff] 0
    %54 = vst [vmem:[#allocation2 + $0x8] sm:$0xff] 0
    %55 = vst [vmem:[#allocation2 + $0x10] sm:$0xff] 0
    %56 = vst [vmem:[#allocation2 + $0x18] sm:$0xff] 0
    %57 = vst [vmem:[#allocation2 + $0x20] sm:$0xff] 0
    %58 = vst [vmem:[#allocation2 + $0x28] sm:$0xff] 0
    %59 = vst [vmem:[#allocation2 + $0x30] sm:$0xff] 0
    %60 = vst [vmem:[#allocation2 + $0x38] sm:$0xff] 0
    %61 = vst [vmem:[#allocation2 + $0x40] sm:$0xff] 0
    %63 = vst [vmem:[#allocation1] ss:$2 sm:$0xff] %v52
    %v64 = vld.sshfl [vmem:[#allocation1] sm:$0xff pattern:$0x75316420]
    %v65 = vld.sshfl [vmem:[#allocation1 + $0x8] sm:$0xff pattern:$0x75316420]
    %68 = vrot.lane.b32.xlu0 %v64, 17
    %v69 = vpop.permute.xlu0 %68
    %70 = vrot.lane.b32.xlu0 %v65, 17
    %v71 = vpop.permute.xlu0 %70
    %v72 = vlaneseq
    %v73 = vand.u32 %v72, 127
    %vm74 = vcmp.lt.s32.totalorder %v73, 17
    %v75 = vsel %vm74, %v69, %v71
    %v76 = vsel %vm74, %v71, %v69
    %v77 = vld [vmem:[%s1] sm:$0x3]
    %v79 = vperm.slane %v77, 0
    %v80 = vperm.slane %v77, 1
    %v83 = vmul.f32 %v76, %v79
    %v84 = vmul.f32 %v75, %v80
    %v85 = vpack.c.bf16 %v84, %v83
    %vm86 = vcmask 1041408
    %vm87 = vsmask.f32 1280
    %vm88 = vmand %vm86, %vm87
    %vm89 = vcmask 1045508
    %vm90 = vsmask.f32 5376
    %vm91 = vmand %vm89, %vm90
    %vm92 = vmor %vm91, %vm88
    %v93 = vld [vmem:[#allocation2] sm:$0x33]
    %v94 = vsel %vm92, %v85, %v93
    %95 = vst [vmem:[#allocation2] sm:$0x33] %v94
    %96 = vst [vmem:[#allocation1] ss:$2 sm:$0xff] %v52
    %v97 = vld.sshfl [vmem:[#allocation1] sm:$0xff pattern:$0x75316420]
    %v98 = vld.sshfl [vmem:[#allocation1 + $0x8] sm:$0xff pattern:$0x75316420]
    %101 = vrot.lane.b32.xlu0 %v97, 16
    %v102 = vpop.permute.xlu0 %101
    %103 = vrot.lane.b32.xlu0 %v98, 16
    %v104 = vpop.permute.xlu0 %103
    %vm105 = vcmp.lt.s32.totalorder %v73, 16
    %v106 = vsel %vm105, %v102, %v104
    %v107 = vsel %vm105, %v104, %v102
    %s108 = scalar_lea.vmem %s1, 2
    %v109 = vld [vmem:[%s108] sm:$0x3]
    %v111 = vperm.slane %v109, 0
    %v112 = vperm.slane %v109, 1
    %v115 = vmul.f32 %v107, %v111
    %v116 = vmul.f32 %v106, %v112
    %v117 = vpack.c.bf16 %v116, %v115
    %v118 = vld [vmem:[#allocation2 + $0x8] sm:$0x33]
    %v119 = vsel %vm92, %v117, %v118
    %120 = vst [vmem:[#allocation2 + $0x8] sm:$0x33] %v119
    %121 = vst [vmem:[#allocation1] ss:$2 sm:$0xff] %v52
    %v122 = vld.sshfl [vmem:[#allocation1] sm:$0xff pattern:$0x75316420]
    %v123 = vld.sshfl [vmem:[#allocation1 + $0x8] sm:$0xff pattern:$0x75316420]
    %126 = vrot.lane.b32.xlu0 %v122, 15
    %v127 = vpop.permute.xlu0 %126
    %128 = vrot.lane.b32.xlu0 %v123, 15
    %v129 = vpop.permute.xlu0 %128
    %vm130 = vcmp.lt.s32.totalorder %v73, 15
    %v131 = vsel %vm130, %v127, %v129
    %v132 = vsel %vm130, %v129, %v127
    %s133 = scalar_lea.vmem %s1, 4
    %v134 = vld [vmem:[%s133] sm:$0x3]
    %v136 = vperm.slane %v134, 0
    %v137 = vperm.slane %v134, 1
    %v140 = vmul.f32 %v132, %v136
    %v141 = vmul.f32 %v131, %v137
    %v142 = vpack.c.bf16 %v141, %v140
    %v143 = vld [vmem:[#allocation2 + $0x10] sm:$0x33]
    %v144 = vsel %vm92, %v142, %v143
    %145 = vst [vmem:[#allocation2 + $0x10] sm:$0x33] %v144
    %146 = vst [vmem:[#allocation1] ss:$2 sm:$0xff] %v52
    %v147 = vld.sshfl [vmem:[#allocation1] sm:$0xff pattern:$0x75316420]
    %v148 = vld.sshfl [vmem:[#allocation1 + $0x8] sm:$0xff pattern:$0x75316420]
    %151 = vrot.lane.b32.xlu0 %v147, 1
    %v152 = vpop.permute.xlu0 %151
    %153 = vrot.lane.b32.xlu0 %v148, 1
    %v154 = vpop.permute.xlu0 %153
    %vm155 = vcmp.lt.s32.totalorder %v73, 1
    %v156 = vsel %vm155, %v152, %v154
    %v157 = vsel %vm155, %v154, %v152
    %s158 = scalar_lea.vmem %s1, 6
    %v159 = vld [vmem:[%s158] sm:$0x3]
    %v161 = vperm.slane %v159, 0
    %v162 = vperm.slane %v159, 1
    %v165 = vmul.f32 %v157, %v161
    %v166 = vmul.f32 %v156, %v162
    %v167 = vpack.c.bf16 %v166, %v165
    %v168 = vld [vmem:[#allocation2 + $0x18] sm:$0x33]
    %v169 = vsel %vm92, %v167, %v168
    %170 = vst [vmem:[#allocation2 + $0x18] sm:$0x33] %v169
    %171 = vst [vmem:[#allocation1] ss:$2 sm:$0xff] %v52
    %v172 = vld.sshfl [vmem:[#allocation1] sm:$0xff pattern:$0x75316420]
    %v173 = vld.sshfl [vmem:[#allocation1 + $0x8] sm:$0xff pattern:$0x75316420]
    %v176 = vpack.c.bf16 %v173, %v172
    %v177 = vld [vmem:[#allocation2 + $0x20] sm:$0x33]
    %v178 = vsel %vm92, %v176, %v177
    %179 = vst [vmem:[#allocation2 + $0x20] sm:$0x33] %v178
    %180 = vst [vmem:[#allocation1] ss:$2 sm:$0xff] %v52
    %v181 = vld.sshfl [vmem:[#allocation1] sm:$0xff pattern:$0x75316420]
    %v182 = vld.sshfl [vmem:[#allocation1 + $0x8] sm:$0xff pattern:$0x75316420]
    %185 = vrot.lane.b32.xlu0 %v181, 127
    %v186 = vpop.permute.xlu0 %185
    %187 = vrot.lane.b32.xlu0 %v182, 127
    %v188 = vpop.permute.xlu0 %187
    %vm189 = vcmp.lt.s32.totalorder %v73, 127
    %v190 = vsel %vm189, %v186, %v188
    %v191 = vsel %vm189, %v188, %v186
    %s192 = scalar_lea.vmem %s1, 10
    %v193 = vld [vmem:[%s192] sm:$0x3]
    %v195 = vperm.slane %v193, 0
    %v196 = vperm.slane %v193, 1
    %v199 = vmul.f32 %v190, %v195
    %v200 = vmul.f32 %v191, %v196
    %v201 = vpack.c.bf16 %v200, %v199
    %v202 = vld [vmem:[#allocation2 + $0x28] sm:$0x33]
    %v203 = vsel %vm92, %v201, %v202
    %204 = vst [vmem:[#allocation2 + $0x28] sm:$0x33] %v203
    %205 = vst [vmem:[#allocation1] ss:$2 sm:$0xff] %v52
    %v206 = vld.sshfl [vmem:[#allocation1] sm:$0xff pattern:$0x75316420]
    %v207 = vld.sshfl [vmem:[#allocation1 + $0x8] sm:$0xff pattern:$0x75316420]
    %210 = vrot.lane.b32.xlu0 %v206, 113
    %v211 = vpop.permute.xlu0 %210
    %212 = vrot.lane.b32.xlu0 %v207, 113
    %v213 = vpop.permute.xlu0 %212
    %vm214 = vcmp.lt.s32.totalorder %v73, 113
    %v215 = vsel %vm214, %v211, %v213
    %v216 = vsel %vm214, %v213, %v211
    %s217 = scalar_lea.vmem %s1, 12
    %v218 = vld [vmem:[%s217] sm:$0x3]
    %v220 = vperm.slane %v218, 0
    %v221 = vperm.slane %v218, 1
    %v224 = vmul.f32 %v215, %v220
    %v225 = vmul.f32 %v216, %v221
    %v226 = vpack.c.bf16 %v225, %v224
    %v227 = vld [vmem:[#allocation2 + $0x30] sm:$0x33]
    %v228 = vsel %vm92, %v226, %v227
    %229 = vst [vmem:[#allocation2 + $0x30] sm:$0x33] %v228
    %230 = vst [vmem:[#allocation1] ss:$2 sm:$0xff] %v52
    %v231 = vld.sshfl [vmem:[#allocation1] sm:$0xff pattern:$0x75316420]
    %v232 = vld.sshfl [vmem:[#allocation1 + $0x8] sm:$0xff pattern:$0x75316420]
    %235 = vrot.lane.b32.xlu0 %v231, 112
    %v236 = vpop.permute.xlu0 %235
    %237 = vrot.lane.b32.xlu0 %v232, 112
    %v238 = vpop.permute.xlu0 %237
    %vm239 = vcmp.lt.s32.totalorder %v73, 112
    %v240 = vsel %vm239, %v236, %v238
    %v241 = vsel %vm239, %v238, %v236
    %s242 = scalar_lea.vmem %s1, 14
    %v243 = vld [vmem:[%s242] sm:$0x3]
    %v245 = vperm.slane %v243, 0
    %v246 = vperm.slane %v243, 1
    %v249 = vmul.f32 %v240, %v245
    %v250 = vmul.f32 %v241, %v246
    %v251 = vpack.c.bf16 %v250, %v249
    %v252 = vld [vmem:[#allocation2 + $0x38] sm:$0x33]
    %v253 = vsel %vm92, %v251, %v252
    %254 = vst [vmem:[#allocation2 + $0x38] sm:$0x33] %v253
    %255 = vst [vmem:[#allocation1] ss:$2 sm:$0xff] %v52
    %v256 = vld.sshfl [vmem:[#allocation1] sm:$0xff pattern:$0x75316420]
    %v257 = vld.sshfl [vmem:[#allocation1 + $0x8] sm:$0xff pattern:$0x75316420]
    %260 = vrot.lane.b32.xlu0 %v256, 111
    %v261 = vpop.permute.xlu0 %260
    %262 = vrot.lane.b32.xlu0 %v257, 111
    %v263 = vpop.permute.xlu0 %262
    %vm264 = vcmp.lt.s32.totalorder %v73, 111
    %v265 = vsel %vm264, %v261, %v263
    %v266 = vsel %vm264, %v263, %v261
    %s267 = scalar_lea.vmem %s1, 16
    %v268 = vld [vmem:[%s267] sm:$0x3]
    %v270 = vperm.slane %v268, 0
    %v271 = vperm.slane %v268, 1
    %v274 = vmul.f32 %v265, %v270
    %v275 = vmul.f32 %v266, %v271
    %v276 = vpack.c.bf16 %v275, %v274
    %v277 = vld [vmem:[#allocation2 + $0x40] sm:$0x33]
    %v278 = vsel %vm92, %v276, %v277
    %279 = vst [vmem:[#allocation2 + $0x40] sm:$0x33] %v278
    %v280 = vld [vmem:[%s2] sm:$0xf]
    %v281 = vld [vmem:[%s2 + $0x4] sm:$0xf]
    %v282 = vld [vmem:[%s2 + $0x8] sm:$0xf]
    %v283 = vld [vmem:[%s2 + $0xc] sm:$0xf]
    %v284 = vld [vmem:[#allocation2] sm:$0xff]
    %v285 = vld [vmem:[#allocation2 + $0x8] sm:$0xff]
    %v286 = vld [vmem:[#allocation2 + $0x10] sm:$0xff]
    %v287 = vld [vmem:[#allocation2 + $0x18] sm:$0xff]
    %v288 = vld [vmem:[#allocation2 + $0x20] sm:$0xff]
    %v289 = vld [vmem:[#allocation2 + $0x28] sm:$0xff]
    %v290 = vld [vmem:[#allocation2 + $0x30] sm:$0xff]
    %v291 = vld [vmem:[#allocation2 + $0x38] sm:$0xff]
    %v292 = vld [vmem:[#allocation2 + $0x40] sm:$0xff]
    %v293 = vld [vmem:[%s3] sm:$0xff]
    %v294 = vld [vmem:[%s3 + $0x8] sm:$0xff]
    %v295 = vld [vmem:[%s3 + $0x10] sm:$0xff]
    %v296 = vld [vmem:[%s3 + $0x18] sm:$0xff]
    %298 = vset.pattern.permute.xlu0 0
    %299 = vperm.xlu0 %298, %v293
    %v300 = vpop.permute.xlu0 %299
    %303 = vset.pattern.permute.xlu0 0
    %304 = vperm.xlu0 %303, %v294
    %v305 = vpop.permute.xlu0 %304
    %308 = vset.pattern.permute.xlu0 0
    %309 = vperm.xlu0 %308, %v295
    %v310 = vpop.permute.xlu0 %309
    %313 = vset.pattern.permute.xlu0 0
    %314 = vperm.xlu0 %313, %v296
    %v315 = vpop.permute.xlu0 %314
    %v321 = vunpack.c.l.b16 %v280
    %v322 = vunpack.c.l.b16 %v281
    %v323 = vunpack.c.l.b16 %v282
    %v324 = vunpack.c.l.b16 %v283
    %v325 = vpack.c.b16 %v322, %v321
    %v326 = vpack.c.b16 %v324, %v323
    %v336 = vunpack.c.l.b16 %v284
    %v337 = vunpack.c.h.b16 %v284
    %v338 = vunpack.c.l.b16 %v285
    %v339 = vunpack.c.h.b16 %v285
    %v340 = vunpack.c.l.b16 %v286
    %v341 = vunpack.c.h.b16 %v286
    %v342 = vunpack.c.l.b16 %v287
    %v343 = vunpack.c.h.b16 %v287
    %v344 = vunpack.c.l.b16 %v288
    %v345 = vunpack.c.h.b16 %v288
    %v346 = vunpack.c.l.b16 %v289
    %v347 = vunpack.c.h.b16 %v289
    %v348 = vunpack.c.l.b16 %v290
    %v349 = vunpack.c.h.b16 %v290
    %v350 = vunpack.c.l.b16 %v291
    %v351 = vunpack.c.h.b16 %v291
    %v352 = vunpack.c.l.b16 %v292
    %v353 = vunpack.c.h.b16 %v292
    %v354 = vpack.c.b16 %v338, %v336
    %v355 = vpack.c.b16 %v339, %v337
    %v356 = vpack.c.b16 %v342, %v340
    %v357 = vpack.c.b16 %v343, %v341
    %v358 = vpack.c.b16 %v346, %v344
    %v359 = vpack.c.b16 %v347, %v345
    %v360 = vpack.c.b16 %v350, %v348
    %v361 = vpack.c.b16 %v351, %v349
    %v362 = vpack.c.b16 %v352, %v352
    %v363 = vpack.c.b16 %v353, %v353
    %vm372 = vcmask 588800
    %v374 = vsel %vm372, %v325, 0
    %v377 = vsel %vm372, %v326, 0
    %vm379 = vcmask 1043456
    %v381 = vsel %vm379, %v362, 0
    %v384 = vsel %vm379, %v363, 0
    %386 = vmatpush.bf16.msra.mxu0 0
    %387 = vmatpush.bf16.msra.mxu0 0
    %388 = vmatpush.bf16.msra.mxu0 0
    %389 = vmatpush.bf16.msra.mxu0 %v381
    %390 = vmatpush.bf16.msra.mxu0 %v360
    %391 = vmatpush.bf16.msra.mxu0 %v358
    %392 = vmatpush.bf16.msra.mxu0 %v356
    %393 = vmatpush.bf16.msra.mxu0 %v354
    %394 = vmatmul.bf16.gmra.mxu0 %v374
    %v395 = vpop.f32.mrf.mxu0
    %v396 = vadd.f32 %v300, %v395
    %v397 = vpop.f32.mrf.mxu0
    %v398 = vadd.f32 %v305, %v397
    %399 = vmatmul.bf16.gmra.mxu0 %v377
    %v400 = vpop.f32.mrf.mxu0
    %v401 = vadd.f32 %v310, %v400
    %v402 = vpop.f32.mrf.mxu0
    %v403 = vadd.f32 %v315, %v402
    %404 = vdwg.mxu0
    %405 = vmatpush.bf16.msra.mxu0 0
    %406 = vmatpush.bf16.msra.mxu0 0
    %407 = vmatpush.bf16.msra.mxu0 0
    %408 = vmatpush.bf16.msra.mxu0 %v384
    %409 = vmatpush.bf16.msra.mxu0 %v361
    %410 = vmatpush.bf16.msra.mxu0 %v359
    %411 = vmatpush.bf16.msra.mxu0 %v357
    %412 = vmatpush.bf16.msra.mxu0 %v355
    %413 = vmatmul.bf16.gmra.mxu0 %v374
    %v414 = vpop.f32.mrf.mxu0
    %v415 = vadd.f32 %v300, %v414
    %v416 = vpop.f32.mrf.mxu0
    %v417 = vadd.f32 %v305, %v416
    %418 = vmatmul.bf16.gmra.mxu0 %v377
    %v419 = vpop.f32.mrf.mxu0
    %v420 = vadd.f32 %v310, %v419
    %v421 = vpop.f32.mrf.mxu0
    %v422 = vadd.f32 %v315, %v421
    %423 = vdwg.mxu0
    %v424 = vmax.f32 %v396, 0.0
    %v425 = vmax.f32 %v415, 0.0
    %v426 = vmax.f32 %v398, 0.0
    %v427 = vmax.f32 %v417, 0.0
    %v428 = vmax.f32 %v401, 0.0
    %v429 = vmax.f32 %v420, 0.0
    %v430 = vmax.f32 %v403, 0.0
    %v431 = vmax.f32 %v422, 0.0
    %432 = vrot.lane.b32.xlu0 %v424, 17
    %v433 = vpop.permute.xlu0 %432
    %434 = vrot.lane.b32.xlu0 %v426, 17
    %v435 = vpop.permute.xlu0 %434
    %436 = vrot.lane.b32.xlu0 %v428, 17
    %v437 = vpop.permute.xlu0 %436
    %438 = vrot.lane.b32.xlu0 %v430, 17
    %v439 = vpop.permute.xlu0 %438
    %440 = vrot.lane.b32.xlu0 %v425, 17
    %v441 = vpop.permute.xlu0 %440
    %442 = vrot.lane.b32.xlu0 %v427, 17
    %v443 = vpop.permute.xlu0 %442
    %444 = vrot.lane.b32.xlu0 %v429, 17
    %v445 = vpop.permute.xlu0 %444
    %446 = vrot.lane.b32.xlu0 %v431, 17
    %v447 = vpop.permute.xlu0 %446
    %v448 = vsel %vm74, %v433, %v441
    %v449 = vsel %vm74, %v435, %v443
    %v450 = vsel %vm74, %v437, %v445
    %v451 = vsel %vm74, %v439, %v447
    %v452 = vsel %vm74, %v441, %v433
    %v453 = vsel %vm74, %v443, %v435
    %v454 = vsel %vm74, %v445, %v437
    %v455 = vsel %vm74, %v447, %v439
    %v456 = vld [vmem:[%s1] sm:$0x3]
    %v458 = vperm.slane %v456, 0
    %v459 = vperm.slane %v456, 1
    %v462 = vmul.f32 %v452, %v458
    %v463 = vmul.f32 %v448, %v459
    %v464 = vmul.f32 %v453, %v458
    %v465 = vmul.f32 %v449, %v459
    %v466 = vmul.f32 %v454, %v458
    %v467 = vmul.f32 %v450, %v459
    %v468 = vmul.f32 %v455, %v458
    %v469 = vmul.f32 %v451, %v459
    %v470 = vpack.c.bf16 %v463, %v462
    %v471 = vpack.c.bf16 %v465, %v464
    %v472 = vpack.c.bf16 %v467, %v466
    %v473 = vpack.c.bf16 %v469, %v468
    %474 = vst [vmem:[#allocation2] sm:$0xff] %v470
    %475 = vst [vmem:[#allocation2 + $0x8] sm:$0xff] %v471
    %476 = vst [vmem:[#allocation2 + $0x10] sm:$0xff] %v472
    %477 = vst [vmem:[#allocation2 + $0x18] sm:$0xff] %v473
    %478 = vrot.lane.b32.xlu0 %v424, 16
    %v479 = vpop.permute.xlu0 %478
    %480 = vrot.lane.b32.xlu0 %v426, 16
    %v481 = vpop.permute.xlu0 %480
    %482 = vrot.lane.b32.xlu0 %v428, 16
    %v483 = vpop.permute.xlu0 %482
    %484 = vrot.lane.b32.xlu0 %v430, 16
    %v485 = vpop.permute.xlu0 %484
    %486 = vrot.lane.b32.xlu0 %v425, 16
    %v487 = vpop.permute.xlu0 %486
    %488 = vrot.lane.b32.xlu0 %v427, 16
    %v489 = vpop.permute.xlu0 %488
    %490 = vrot.lane.b32.xlu0 %v429, 16
    %v491 = vpop.permute.xlu0 %490
    %492 = vrot.lane.b32.xlu0 %v431, 16
    %v493 = vpop.permute.xlu0 %492
    %v494 = vsel %vm105, %v479, %v487
    %v495 = vsel %vm105, %v481, %v489
    %v496 = vsel %vm105, %v483, %v491
    %v497 = vsel %vm105, %v485, %v493
    %v498 = vsel %vm105, %v487, %v479
    %v499 = vsel %vm105, %v489, %v481
    %v500 = vsel %vm105, %v491, %v483
    %v501 = vsel %vm105, %v493, %v485
    %v502 = vld [vmem:[%s108] sm:$0x3]
    %v504 = vperm.slane %v502, 0
    %v505 = vperm.slane %v502, 1
    %v508 = vmul.f32 %v498, %v504
    %v509 = vmul.f32 %v494, %v505
    %v510 = vmul.f32 %v499, %v504
    %v511 = vmul.f32 %v495, %v505
    %v512 = vmul.f32 %v500, %v504
    %v513 = vmul.f32 %v496, %v505
    %v514 = vmul.f32 %v501, %v504
    %v515 = vmul.f32 %v497, %v505
    %v516 = vpack.c.bf16 %v509, %v508
    %v517 = vpack.c.bf16 %v511, %v510
    %v518 = vpack.c.bf16 %v513, %v512
    %v519 = vpack.c.bf16 %v515, %v514
    %520 = vst [vmem:[#allocation2 + $0x20] sm:$0xff] %v516
    %521 = vst [vmem:[#allocation2 + $0x28] sm:$0xff] %v517
    %522 = vst [vmem:[#allocation2 + $0x30] sm:$0xff] %v518
    %523 = vst [vmem:[#allocation2 + $0x38] sm:$0xff] %v519
    %524 = vrot.lane.b32.xlu0 %v424, 15
    %v525 = vpop.permute.xlu0 %524
    %526 = vrot.lane.b32.xlu0 %v426, 15
    %v527 = vpop.permute.xlu0 %526
    %528 = vrot.lane.b32.xlu0 %v428, 15
    %v529 = vpop.permute.xlu0 %528
    %530 = vrot.lane.b32.xlu0 %v430, 15
    %v531 = vpop.permute.xlu0 %530
    %532 = vrot.lane.b32.xlu0 %v425, 15
    %v533 = vpop.permute.xlu0 %532
    %534 = vrot.lane.b32.xlu0 %v427, 15
    %v535 = vpop.permute.xlu0 %534
    %536 = vrot.lane.b32.xlu0 %v429, 15
    %v537 = vpop.permute.xlu0 %536
    %538 = vrot.lane.b32.xlu0 %v431, 15
    %v539 = vpop.permute.xlu0 %538
    %v540 = vsel %vm130, %v525, %v533
    %v541 = vsel %vm130, %v527, %v535
    %v542 = vsel %vm130, %v529, %v537
    %v543 = vsel %vm130, %v531, %v539
    %v544 = vsel %vm130, %v533, %v525
    %v545 = vsel %vm130, %v535, %v527
    %v546 = vsel %vm130, %v537, %v529
    %v547 = vsel %vm130, %v539, %v531
    %v548 = vld [vmem:[%s133] sm:$0x3]
    %v550 = vperm.slane %v548, 0
    %v551 = vperm.slane %v548, 1
    %v554 = vmul.f32 %v544, %v550
    %v555 = vmul.f32 %v540, %v551
    %v556 = vmul.f32 %v545, %v550
    %v557 = vmul.f32 %v541, %v551
    %v558 = vmul.f32 %v546, %v550
    %v559 = vmul.f32 %v542, %v551
    %v560 = vmul.f32 %v547, %v550
    %v561 = vmul.f32 %v543, %v551
    %v562 = vpack.c.bf16 %v555, %v554
    %v563 = vpack.c.bf16 %v557, %v556
    %v564 = vpack.c.bf16 %v559, %v558
    %v565 = vpack.c.bf16 %v561, %v560
    %566 = vst [vmem:[#allocation2 + $0x40] sm:$0xff] %v562
    %567 = vst [vmem:[#allocation2 + $0x48] sm:$0xff] %v563
    %568 = vst [vmem:[#allocation2 + $0x50] sm:$0xff] %v564
    %569 = vst [vmem:[#allocation2 + $0x58] sm:$0xff] %v565
    %570 = vrot.lane.b32.xlu0 %v424, 1
    %v571 = vpop.permute.xlu0 %570
    %572 = vrot.lane.b32.xlu0 %v426, 1
    %v573 = vpop.permute.xlu0 %572
    %574 = vrot.lane.b32.xlu0 %v428, 1
    %v575 = vpop.permute.xlu0 %574
    %576 = vrot.lane.b32.xlu0 %v430, 1
    %v577 = vpop.permute.xlu0 %576
    %578 = vrot.lane.b32.xlu0 %v425, 1
    %v579 = vpop.permute.xlu0 %578
    %580 = vrot.lane.b32.xlu0 %v427, 1
    %v581 = vpop.permute.xlu0 %580
    %582 = vrot.lane.b32.xlu0 %v429, 1
    %v583 = vpop.permute.xlu0 %582
    %584 = vrot.lane.b32.xlu0 %v431, 1
    %v585 = vpop.permute.xlu0 %584
    %v586 = vsel %vm155, %v571, %v579
    %v587 = vsel %vm155, %v573, %v581
    %v588 = vsel %vm155, %v575, %v583
    %v589 = vsel %vm155, %v577, %v585
    %v590 = vsel %vm155, %v579, %v571
    %v591 = vsel %vm155, %v581, %v573
    %v592 = vsel %vm155, %v583, %v575
    %v593 = vsel %vm155, %v585, %v577
    %v594 = vld [vmem:[%s158] sm:$0x3]
    %v596 = vperm.slane %v594, 0
    %v597 = vperm.slane %v594, 1
    %v600 = vmul.f32 %v590, %v596
    %v601 = vmul.f32 %v586, %v597
    %v602 = vmul.f32 %v591, %v596
    %v603 = vmul.f32 %v587, %v597
    %v604 = vmul.f32 %v592, %v596
    %v605 = vmul.f32 %v588, %v597
    %v606 = vmul.f32 %v593, %v596
    %v607 = vmul.f32 %v589, %v597
    %v608 = vpack.c.bf16 %v601, %v600
    %v609 = vpack.c.bf16 %v603, %v602
    %v610 = vpack.c.bf16 %v605, %v604
    %v611 = vpack.c.bf16 %v607, %v606
    %612 = vst [vmem:[#allocation2 + $0x60] sm:$0xff] %v608
    %613 = vst [vmem:[#allocation2 + $0x68] sm:$0xff] %v609
    %614 = vst [vmem:[#allocation2 + $0x70] sm:$0xff] %v610
    %615 = vst [vmem:[#allocation2 + $0x78] sm:$0xff] %v611
    %v616 = vpack.c.bf16 %v425, %v424
    %v617 = vpack.c.bf16 %v427, %v426
    %v618 = vpack.c.bf16 %v429, %v428
    %v619 = vpack.c.bf16 %v431, %v430
    %620 = vst [vmem:[#allocation2 + $0x80] sm:$0xff] %v616
    %621 = vst [vmem:[#allocation2 + $0x88] sm:$0xff] %v617
    %622 = vst [vmem:[#allocation2 + $0x90] sm:$0xff] %v618
    %623 = vst [vmem:[#allocation2 + $0x98] sm:$0xff] %v619
    %624 = vrot.lane.b32.xlu0 %v424, 127
    %v625 = vpop.permute.xlu0 %624
    %626 = vrot.lane.b32.xlu0 %v426, 127
    %v627 = vpop.permute.xlu0 %626
    %628 = vrot.lane.b32.xlu0 %v428, 127
    %v629 = vpop.permute.xlu0 %628
    %630 = vrot.lane.b32.xlu0 %v430, 127
    %v631 = vpop.permute.xlu0 %630
    %632 = vrot.lane.b32.xlu0 %v425, 127
    %v633 = vpop.permute.xlu0 %632
    %634 = vrot.lane.b32.xlu0 %v427, 127
    %v635 = vpop.permute.xlu0 %634
    %636 = vrot.lane.b32.xlu0 %v429, 127
    %v637 = vpop.permute.xlu0 %636
    %638 = vrot.lane.b32.xlu0 %v431, 127
    %v639 = vpop.permute.xlu0 %638
    %v640 = vsel %vm189, %v625, %v633
    %v641 = vsel %vm189, %v627, %v635
    %v642 = vsel %vm189, %v629, %v637
    %v643 = vsel %vm189, %v631, %v639
    %v644 = vsel %vm189, %v633, %v625
    %v645 = vsel %vm189, %v635, %v627
    %v646 = vsel %vm189, %v637, %v629
    %v647 = vsel %vm189, %v639, %v631
    %v648 = vld [vmem:[%s192] sm:$0x3]
    %v650 = vperm.slane %v648, 0
    %v651 = vperm.slane %v648, 1
    %v654 = vmul.f32 %v640, %v650
    %v655 = vmul.f32 %v644, %v651
    %v656 = vmul.f32 %v641, %v650
    %v657 = vmul.f32 %v645, %v651
    %v658 = vmul.f32 %v642, %v650
    %v659 = vmul.f32 %v646, %v651
    %v660 = vmul.f32 %v643, %v650
    %v661 = vmul.f32 %v647, %v651
    %v662 = vpack.c.bf16 %v655, %v654
    %v663 = vpack.c.bf16 %v657, %v656
    %v664 = vpack.c.bf16 %v659, %v658
    %v665 = vpack.c.bf16 %v661, %v660
    %666 = vst [vmem:[#allocation2 + $0xa0] sm:$0xff] %v662
    %667 = vst [vmem:[#allocation2 + $0xa8] sm:$0xff] %v663
    %668 = vst [vmem:[#allocation2 + $0xb0] sm:$0xff] %v664
    %669 = vst [vmem:[#allocation2 + $0xb8] sm:$0xff] %v665
    %670 = vrot.lane.b32.xlu0 %v424, 113
    %v671 = vpop.permute.xlu0 %670
    %672 = vrot.lane.b32.xlu0 %v426, 113
    %v673 = vpop.permute.xlu0 %672
    %674 = vrot.lane.b32.xlu0 %v428, 113
    %v675 = vpop.permute.xlu0 %674
    %676 = vrot.lane.b32.xlu0 %v430, 113
    %v677 = vpop.permute.xlu0 %676
    %678 = vrot.lane.b32.xlu0 %v425, 113
    %v679 = vpop.permute.xlu0 %678
    %680 = vrot.lane.b32.xlu0 %v427, 113
    %v681 = vpop.permute.xlu0 %680
    %682 = vrot.lane.b32.xlu0 %v429, 113
    %v683 = vpop.permute.xlu0 %682
    %684 = vrot.lane.b32.xlu0 %v431, 113
    %v685 = vpop.permute.xlu0 %684
    %v686 = vsel %vm214, %v671, %v679
    %v687 = vsel %vm214, %v673, %v681
    %v688 = vsel %vm214, %v675, %v683
    %v689 = vsel %vm214, %v677, %v685
    %v690 = vsel %vm214, %v679, %v671
    %v691 = vsel %vm214, %v681, %v673
    %v692 = vsel %vm214, %v683, %v675
    %v693 = vsel %vm214, %v685, %v677
    %v694 = vld [vmem:[%s217] sm:$0x3]
    %v696 = vperm.slane %v694, 0
    %v697 = vperm.slane %v694, 1
    %v700 = vmul.f32 %v686, %v696
    %v701 = vmul.f32 %v690, %v697
    %v702 = vmul.f32 %v687, %v696
    %v703 = vmul.f32 %v691, %v697
    %v704 = vmul.f32 %v688, %v696
    %v705 = vmul.f32 %v692, %v697
    %v706 = vmul.f32 %v689, %v696
    %v707 = vmul.f32 %v693, %v697
    %v708 = vpack.c.bf16 %v701, %v700
    %v709 = vpack.c.bf16 %v703, %v702
    %v710 = vpack.c.bf16 %v705, %v704
    %v711 = vpack.c.bf16 %v707, %v706
    %712 = vst [vmem:[#allocation2 + $0xc0] sm:$0xff] %v708
    %713 = vst [vmem:[#allocation2 + $0xc8] sm:$0xff] %v709
    %714 = vst [vmem:[#allocation2 + $0xd0] sm:$0xff] %v710
    %715 = vst [vmem:[#allocation2 + $0xd8] sm:$0xff] %v711
    %716 = vrot.lane.b32.xlu0 %v424, 112
    %v717 = vpop.permute.xlu0 %716
    %718 = vrot.lane.b32.xlu0 %v426, 112
    %v719 = vpop.permute.xlu0 %718
    %720 = vrot.lane.b32.xlu0 %v428, 112
    %v721 = vpop.permute.xlu0 %720
    %722 = vrot.lane.b32.xlu0 %v430, 112
    %v723 = vpop.permute.xlu0 %722
    %724 = vrot.lane.b32.xlu0 %v425, 112
    %v725 = vpop.permute.xlu0 %724
    %726 = vrot.lane.b32.xlu0 %v427, 112
    %v727 = vpop.permute.xlu0 %726
    %728 = vrot.lane.b32.xlu0 %v429, 112
    %v729 = vpop.permute.xlu0 %728
    %730 = vrot.lane.b32.xlu0 %v431, 112
    %v731 = vpop.permute.xlu0 %730
    %v732 = vsel %vm239, %v717, %v725
    %v733 = vsel %vm239, %v719, %v727
    %v734 = vsel %vm239, %v721, %v729
    %v735 = vsel %vm239, %v723, %v731
    %v736 = vsel %vm239, %v725, %v717
    %v737 = vsel %vm239, %v727, %v719
    %v738 = vsel %vm239, %v729, %v721
    %v739 = vsel %vm239, %v731, %v723
    %v740 = vld [vmem:[%s242] sm:$0x3]
    %v742 = vperm.slane %v740, 0
    %v743 = vperm.slane %v740, 1
    %v746 = vmul.f32 %v732, %v742
    %v747 = vmul.f32 %v736, %v743
    %v748 = vmul.f32 %v733, %v742
    %v749 = vmul.f32 %v737, %v743
    %v750 = vmul.f32 %v734, %v742
    %v751 = vmul.f32 %v738, %v743
    %v752 = vmul.f32 %v735, %v742
    %v753 = vmul.f32 %v739, %v743
    %v754 = vpack.c.bf16 %v747, %v746
    %v755 = vpack.c.bf16 %v749, %v748
    %v756 = vpack.c.bf16 %v751, %v750
    %v757 = vpack.c.bf16 %v753, %v752
    %758 = vst [vmem:[#allocation2 + $0xe0] sm:$0xff] %v754
    %759 = vst [vmem:[#allocation2 + $0xe8] sm:$0xff] %v755
    %760 = vst [vmem:[#allocation2 + $0xf0] sm:$0xff] %v756
    %761 = vst [vmem:[#allocation2 + $0xf8] sm:$0xff] %v757
    %762 = vrot.lane.b32.xlu0 %v424, 111
    %v763 = vpop.permute.xlu0 %762
    %764 = vrot.lane.b32.xlu0 %v426, 111
    %v765 = vpop.permute.xlu0 %764
    %766 = vrot.lane.b32.xlu0 %v428, 111
    %v767 = vpop.permute.xlu0 %766
    %768 = vrot.lane.b32.xlu0 %v430, 111
    %v769 = vpop.permute.xlu0 %768
    %770 = vrot.lane.b32.xlu0 %v425, 111
    %v771 = vpop.permute.xlu0 %770
    %772 = vrot.lane.b32.xlu0 %v427, 111
    %v773 = vpop.permute.xlu0 %772
    %774 = vrot.lane.b32.xlu0 %v429, 111
    %v775 = vpop.permute.xlu0 %774
    %776 = vrot.lane.b32.xlu0 %v431, 111
    %v777 = vpop.permute.xlu0 %776
    %v778 = vsel %vm264, %v763, %v771
    %v779 = vsel %vm264, %v765, %v773
    %v780 = vsel %vm264, %v767, %v775
    %v781 = vsel %vm264, %v769, %v777
    %v782 = vsel %vm264, %v771, %v763
    %v783 = vsel %vm264, %v773, %v765
    %v784 = vsel %vm264, %v775, %v767
    %v785 = vsel %vm264, %v777, %v769
    %v786 = vld [vmem:[%s267] sm:$0x3]
    %v788 = vperm.slane %v786, 0
    %v789 = vperm.slane %v786, 1
    %v792 = vmul.f32 %v778, %v788
    %v793 = vmul.f32 %v782, %v789
    %v794 = vmul.f32 %v779, %v788
    %v795 = vmul.f32 %v783, %v789
    %v796 = vmul.f32 %v780, %v788
    %v797 = vmul.f32 %v784, %v789
    %v798 = vmul.f32 %v781, %v788
    %v799 = vmul.f32 %v785, %v789
    %v800 = vpack.c.bf16 %v793, %v792
    %v801 = vpack.c.bf16 %v795, %v794
    %v802 = vpack.c.bf16 %v797, %v796
    %v803 = vpack.c.bf16 %v799, %v798
    %804 = vst [vmem:[#allocation2 + $0x100] sm:$0xff] %v800
    %805 = vst [vmem:[#allocation2 + $0x108] sm:$0xff] %v801
    %806 = vst [vmem:[#allocation2 + $0x110] sm:$0xff] %v802
    %807 = vst [vmem:[#allocation2 + $0x118] sm:$0xff] %v803
    %v808 = vld [vmem:[%s4] sm:$0xff]
    %v809 = vld [vmem:[%s4 + $0x8] sm:$0xf]
    %v810 = vld [vmem:[%s4 + $0xc] sm:$0xff]
    %v811 = vld [vmem:[%s4 + $0x14] sm:$0xf]
    %v812 = vld [vmem:[%s4 + $0x18] sm:$0xff]
    %v813 = vld [vmem:[%s4 + $0x20] sm:$0xf]
    %v814 = vld [vmem:[%s4 + $0x24] sm:$0xff]
    %v815 = vld [vmem:[%s4 + $0x2c] sm:$0xf]
    %v816 = vld [vmem:[%s4 + $0x30] sm:$0xff]
    %v817 = vld [vmem:[%s4 + $0x38] sm:$0xf]
    %v818 = vld [vmem:[%s4 + $0x3c] sm:$0xff]
    %v819 = vld [vmem:[%s4 + $0x44] sm:$0xf]
    %v820 = vld [vmem:[%s4 + $0x48] sm:$0xff]
    %v821 = vld [vmem:[%s4 + $0x50] sm:$0xf]
    %v822 = vld [vmem:[%s4 + $0x54] sm:$0xff]
    %v823 = vld [vmem:[%s4 + $0x5c] sm:$0xf]
    %v824 = vld [vmem:[#allocation2] sm:$0xff]
    %v825 = vld [vmem:[#allocation2 + $0x8] sm:$0xff]
    %v826 = vld [vmem:[#allocation2 + $0x10] sm:$0xff]
    %v827 = vld [vmem:[#allocation2 + $0x18] sm:$0xff]
    %v828 = vld [vmem:[#allocation2 + $0x20] sm:$0xff]
    %v829 = vld [vmem:[#allocation2 + $0x28] sm:$0xff]
    %v830 = vld [vmem:[#allocation2 + $0x30] sm:$0xff]
    %v831 = vld [vmem:[#allocation2 + $0x38] sm:$0xff]
    %v832 = vld [vmem:[#allocation2 + $0x40] sm:$0xff]
    %v833 = vld [vmem:[#allocation2 + $0x48] sm:$0xff]
    %v834 = vld [vmem:[#allocation2 + $0x50] sm:$0xff]
    %v835 = vld [vmem:[#allocation2 + $0x58] sm:$0xff]
    %v836 = vld [vmem:[#allocation2 + $0x60] sm:$0xff]
    %v837 = vld [vmem:[#allocation2 + $0x68] sm:$0xff]
    %v838 = vld [vmem:[#allocation2 + $0x70] sm:$0xff]
    %v839 = vld [vmem:[#allocation2 + $0x78] sm:$0xff]
    %v840 = vld [vmem:[#allocation2 + $0x80] sm:$0xff]
    %v841 = vld [vmem:[#allocation2 + $0x88] sm:$0xff]
    %v842 = vld [vmem:[#allocation2 + $0x90] sm:$0xff]
    %v843 = vld [vmem:[#allocation2 + $0x98] sm:$0xff]
    %v844 = vld [vmem:[#allocation2 + $0xa0] sm:$0xff]
    %v845 = vld [vmem:[#allocation2 + $0xa8] sm:$0xff]
    %v846 = vld [vmem:[#allocation2 + $0xb0] sm:$0xff]
    %v847 = vld [vmem:[#allocation2 + $0xb8] sm:$0xff]
    %v848 = vld [vmem:[#allocation2 + $0xc0] sm:$0xff]
    %v849 = vld [vmem:[#allocation2 + $0xc8] sm:$0xff]
    %v850 = vld [vmem:[#allocation2 + $0xd0] sm:$0xff]
    %v851 = vld [vmem:[#allocation2 + $0xd8] sm:$0xff]
    %v852 = vld [vmem:[#allocation2 + $0xe0] sm:$0xff]
    %v853 = vld [vmem:[#allocation2 + $0xe8] sm:$0xff]
    %v854 = vld [vmem:[#allocation2 + $0xf0] sm:$0xff]
    %v855 = vld [vmem:[#allocation2 + $0xf8] sm:$0xff]
    %v856 = vld [vmem:[#allocation2 + $0x100] sm:$0xff]
    %v857 = vld [vmem:[#allocation2 + $0x108] sm:$0xff]
    %v858 = vld [vmem:[#allocation2 + $0x110] sm:$0xff]
    %v859 = vld [vmem:[#allocation2 + $0x118] sm:$0xff]
    %v860 = vld [vmem:[%s5] sm:$0xff]
    %v861 = vld [vmem:[%s5 + $0x8] sm:$0xff]
    %v862 = vld [vmem:[%s5 + $0x10] sm:$0xff]
    %v863 = vld [vmem:[%s5 + $0x18] sm:$0xff]
    %v864 = vld [vmem:[%s5 + $0x20] sm:$0xff]
    %v865 = vld [vmem:[%s5 + $0x28] sm:$0xff]
    %v866 = vld [vmem:[%s5 + $0x30] sm:$0xff]
    %v867 = vld [vmem:[%s5 + $0x38] sm:$0xff]
    %869 = vset.pattern.permute.xlu0 0
    %870 = vperm.xlu0 %869, %v860
    %v871 = vpop.permute.xlu0 %870
    %874 = vset.pattern.permute.xlu0 0
    %875 = vperm.xlu0 %874, %v861
    %v876 = vpop.permute.xlu0 %875
    %879 = vset.pattern.permute.xlu0 0
    %880 = vperm.xlu0 %879, %v862
    %v881 = vpop.permute.xlu0 %880
    %884 = vset.pattern.permute.xlu0 0
    %885 = vperm.xlu0 %884, %v863
    %v886 = vpop.permute.xlu0 %885
    %889 = vset.pattern.permute.xlu0 0
    %890 = vperm.xlu0 %889, %v864
    %v891 = vpop.permute.xlu0 %890
    %894 = vset.pattern.permute.xlu0 0
    %895 = vperm.xlu0 %894, %v865
    %v896 = vpop.permute.xlu0 %895
    %899 = vset.pattern.permute.xlu0 0
    %900 = vperm.xlu0 %899, %v866
    %v901 = vpop.permute.xlu0 %900
    %904 = vset.pattern.permute.xlu0 0
    %905 = vperm.xlu0 %904, %v867
    %v906 = vpop.permute.xlu0 %905
    %v924 = vunpack.c.l.b16 %v808
    %v925 = vunpack.c.h.b16 %v808
    %v926 = vunpack.c.l.b16 %v809
    %v927 = vunpack.c.l.b16 %v810
    %v928 = vunpack.c.h.b16 %v810
    %v929 = vunpack.c.l.b16 %v811
    %v930 = vunpack.c.l.b16 %v812
    %v931 = vunpack.c.h.b16 %v812
    %v932 = vunpack.c.l.b16 %v813
    %v933 = vunpack.c.l.b16 %v814
    %v934 = vunpack.c.h.b16 %v814
    %v935 = vunpack.c.l.b16 %v815
    %v936 = vunpack.c.l.b16 %v816
    %v937 = vunpack.c.h.b16 %v816
    %v938 = vunpack.c.l.b16 %v817
    %v939 = vunpack.c.l.b16 %v818
    %v940 = vunpack.c.h.b16 %v818
    %v941 = vunpack.c.l.b16 %v819
    %v942 = vunpack.c.l.b16 %v820
    %v943 = vunpack.c.h.b16 %v820
    %v944 = vunpack.c.l.b16 %v821
    %v945 = vunpack.c.l.b16 %v822
    %v946 = vunpack.c.h.b16 %v822
    %v947 = vunpack.c.l.b16 %v823
    %v948 = vpack.c.b16 %v927, %v924
    %v949 = vpack.c.b16 %v928, %v925
    %v950 = vpack.c.b16 %v929, %v926
    %v951 = vpack.c.b16 %v933, %v930
    %v952 = vpack.c.b16 %v934, %v931
    %v953 = vpack.c.b16 %v935, %v932
    %v954 = vpack.c.b16 %v939, %v936
    %v955 = vpack.c.b16 %v940, %v937
    %v956 = vpack.c.b16 %v941, %v938
    %v957 = vpack.c.b16 %v945, %v942
    %v958 = vpack.c.b16 %v946, %v943
    %v959 = vpack.c.b16 %v947, %v944
    %v1004 = vunpack.c.l.b16 %v824
    %v1005 = vunpack.c.h.b16 %v824
    %v1006 = vunpack.c.l.b16 %v825
    %v1007 = vunpack.c.h.b16 %v825
    %v1008 = vunpack.c.l.b16 %v826
    %v1009 = vunpack.c.h.b16 %v826
    %v1010 = vunpack.c.l.b16 %v827
    %v1011 = vunpack.c.h.b16 %v827
    %v1012 = vunpack.c.l.b16 %v828
    %v1013 = vunpack.c.h.b16 %v828
    %v1014 = vunpack.c.l.b16 %v829
    %v1015 = vunpack.c.h.b16 %v829
    %v1016 = vunpack.c.l.b16 %v830
    %v1017 = vunpack.c.h.b16 %v830
    %v1018 = vunpack.c.l.b16 %v831
    %v1019 = vunpack.c.h.b16 %v831
    %v1020 = vunpack.c.l.b16 %v832
    %v1021 = vunpack.c.h.b16 %v832
    %v1022 = vunpack.c.l.b16 %v833
    %v1023 = vunpack.c.h.b16 %v833
    %v1024 = vunpack.c.l.b16 %v834
    %v1025 = vunpack.c.h.b16 %v834
    %v1026 = vunpack.c.l.b16 %v835
    %v1027 = vunpack.c.h.b16 %v835
    %v1028 = vunpack.c.l.b16 %v836
    %v1029 = vunpack.c.h.b16 %v836
    %v1030 = vunpack.c.l.b16 %v837
    %v1031 = vunpack.c.h.b16 %v837
    %v1032 = vunpack.c.l.b16 %v838
    %v1033 = vunpack.c.h.b16 %v838
    %v1034 = vunpack.c.l.b16 %v839
    %v1035 = vunpack.c.h.b16 %v839
    %v1036 = vunpack.c.l.b16 %v840
    %v1037 = vunpack.c.h.b16 %v840
    %v1038 = vunpack.c.l.b16 %v841
    %v1039 = vunpack.c.h.b16 %v841
    %v1040 = vunpack.c.l.b16 %v842
    %v1041 = vunpack.c.h.b16 %v842
    %v1042 = vunpack.c.l.b16 %v843
    %v1043 = vunpack.c.h.b16 %v843
    %v1044 = vunpack.c.l.b16 %v844
    %v1045 = vunpack.c.h.b16 %v844
    %v1046 = vunpack.c.l.b16 %v845
    %v1047 = vunpack.c.h.b16 %v845
    %v1048 = vunpack.c.l.b16 %v846
    %v1049 = vunpack.c.h.b16 %v846
    %v1050 = vunpack.c.l.b16 %v847
    %v1051 = vunpack.c.h.b16 %v847
    %v1052 = vunpack.c.l.b16 %v848
    %v1053 = vunpack.c.h.b16 %v848
    %v1054 = vunpack.c.l.b16 %v849
    %v1055 = vunpack.c.h.b16 %v849
    %v1056 = vunpack.c.l.b16 %v850
    %v1057 = vunpack.c.h.b16 %v850
    %v1058 = vunpack.c.l.b16 %v851
    %v1059 = vunpack.c.h.b16 %v851
    %v1060 = vunpack.c.l.b16 %v852
    %v1061 = vunpack.c.h.b16 %v852
    %v1062 = vunpack.c.l.b16 %v853
    %v1063 = vunpack.c.h.b16 %v853
    %v1064 = vunpack.c.l.b16 %v854
    %v1065 = vunpack.c.h.b16 %v854
    %v1066 = vunpack.c.l.b16 %v855
    %v1067 = vunpack.c.h.b16 %v855
    %v1068 = vunpack.c.l.b16 %v856
    %v1069 = vunpack.c.h.b16 %v856
    %v1070 = vunpack.c.l.b16 %v857
    %v1071 = vunpack.c.h.b16 %v857
    %v1072 = vunpack.c.l.b16 %v858
    %v1073 = vunpack.c.h.b16 %v858
    %v1074 = vunpack.c.l.b16 %v859
    %v1075 = vunpack.c.h.b16 %v859
    %v1076 = vpack.c.b16 %v1006, %v1004
    %v1077 = vpack.c.b16 %v1007, %v1005
    %v1078 = vpack.c.b16 %v1010, %v1008
    %v1079 = vpack.c.b16 %v1011, %v1009
    %v1080 = vpack.c.b16 %v1014, %v1012
    %v1081 = vpack.c.b16 %v1015, %v1013
    %v1082 = vpack.c.b16 %v1018, %v1016
    %v1083 = vpack.c.b16 %v1019, %v1017
    %v1084 = vpack.c.b16 %v1022, %v1020
    %v1085 = vpack.c.b16 %v1023, %v1021
    %v1086 = vpack.c.b16 %v1026, %v1024
    %v1087 = vpack.c.b16 %v1027, %v1025
    %v1088 = vpack.c.b16 %v1030, %v1028
    %v1089 = vpack.c.b16 %v1031, %v1029
    %v1090 = vpack.c.b16 %v1034, %v1032
    %v1091 = vpack.c.b16 %v1035, %v1033
    %v1092 = vpack.c.b16 %v1038, %v1036
    %v1093 = vpack.c.b16 %v1039, %v1037
    %v1094 = vpack.c.b16 %v1042, %v1040
    %v1095 = vpack.c.b16 %v1043, %v1041
    %v1096 = vpack.c.b16 %v1046, %v1044
    %v1097 = vpack.c.b16 %v1047, %v1045
    %v1098 = vpack.c.b16 %v1050, %v1048
    %v1099 = vpack.c.b16 %v1051, %v1049
    %v1100 = vpack.c.b16 %v1054, %v1052
    %v1101 = vpack.c.b16 %v1055, %v1053
    %v1102 = vpack.c.b16 %v1058, %v1056
    %v1103 = vpack.c.b16 %v1059, %v1057
    %v1104 = vpack.c.b16 %v1062, %v1060
    %v1105 = vpack.c.b16 %v1063, %v1061
    %v1106 = vpack.c.b16 %v1066, %v1064
    %v1107 = vpack.c.b16 %v1067, %v1065
    %v1108 = vpack.c.b16 %v1070, %v1068
    %v1109 = vpack.c.b16 %v1071, %v1069
    %v1110 = vpack.c.b16 %v1074, %v1072
    %v1111 = vpack.c.b16 %v1075, %v1073
    %vm1148 = vcmask 261120
    %v1150 = vsel %vm1148, %v950, 0
    %v1153 = vsel %vm1148, %v953, 0
    %v1156 = vsel %vm1148, %v956, 0
    %v1159 = vsel %vm1148, %v959, 0
    %1161 = vmatpush.bf16.msra.mxu0 %v1090
    %1162 = vmatpush.bf16.msra.mxu0 %v1088
    %1163 = vmatpush.bf16.msra.mxu0 %v1086
    %1164 = vmatpush.bf16.msra.mxu0 %v1084
    %1165 = vmatpush.bf16.msra.mxu0 %v1082
    %1166 = vmatpush.bf16.msra.mxu0 %v1080
    %1167 = vmatpush.bf16.msra.mxu0 %v1078
    %1168 = vmatpush.bf16.msra.mxu0 %v1076
    %1169 = vmatmul.bf16.gmra.mxu0 %v948
    %v1170 = vpop.f32.mrf.mxu0
    %v1171 = vadd.f32 %v871, %v1170
    %v1172 = vpop.f32.mrf.mxu0
    %v1173 = vadd.f32 %v876, %v1172
    %1174 = vmatmul.bf16.gmra.mxu0 %v951
    %v1175 = vpop.f32.mrf.mxu0
    %v1176 = vadd.f32 %v881, %v1175
    %v1177 = vpop.f32.mrf.mxu0
    %v1178 = vadd.f32 %v886, %v1177
    %1179 = vmatmul.bf16.gmra.mxu0 %v954
    %v1180 = vpop.f32.mrf.mxu0
    %v1181 = vadd.f32 %v891, %v1180
    %v1182 = vpop.f32.mrf.mxu0
    %v1183 = vadd.f32 %v896, %v1182
    %1184 = vmatmul.bf16.gmra.mxu0 %v957
    %v1185 = vpop.f32.mrf.mxu0
    %v1186 = vadd.f32 %v901, %v1185
    %v1187 = vpop.f32.mrf.mxu0
    %v1188 = vadd.f32 %v906, %v1187
    %1189 = vdwg.mxu0
    %1190 = vmatpush.bf16.msra.mxu0 %v1106
    %1191 = vmatpush.bf16.msra.mxu0 %v1104
    %1192 = vmatpush.bf16.msra.mxu0 %v1102
    %1193 = vmatpush.bf16.msra.mxu0 %v1100
    %1194 = vmatpush.bf16.msra.mxu0 %v1098
    %1195 = vmatpush.bf16.msra.mxu0 %v1096
    %1196 = vmatpush.bf16.msra.mxu0 %v1094
    %1197 = vmatpush.bf16.msra.mxu0 %v1092
    %1198 = vmatmul.bf16.gmra.mxu0 %v949
    %v1199 = vpop.f32.mrf.mxu0
    %v1200 = vadd.f32 %v1171, %v1199
    %v1201 = vpop.f32.mrf.mxu0
    %v1202 = vadd.f32 %v1173, %v1201
    %1203 = vmatmul.bf16.gmra.mxu0 %v952
    %v1204 = vpop.f32.mrf.mxu0
    %v1205 = vadd.f32 %v1176, %v1204
    %v1206 = vpop.f32.mrf.mxu0
    %v1207 = vadd.f32 %v1178, %v1206
    %1208 = vmatmul.bf16.gmra.mxu0 %v955
    %v1209 = vpop.f32.mrf.mxu0
    %v1210 = vadd.f32 %v1181, %v1209
    %v1211 = vpop.f32.mrf.mxu0
    %v1212 = vadd.f32 %v1183, %v1211
    %1213 = vmatmul.bf16.gmra.mxu0 %v958
    %v1214 = vpop.f32.mrf.mxu0
    %v1215 = vadd.f32 %v1186, %v1214
    %v1216 = vpop.f32.mrf.mxu0
    %v1217 = vadd.f32 %v1188, %v1216
    %1218 = vdwg.mxu0
    %1219 = vmatpush.bf16.msra.mxu0 0
    %1220 = vmatpush.bf16.msra.mxu0 0
    %1221 = vmatpush.bf16.msra.mxu0 0
    %1222 = vmatpush.bf16.msra.mxu0 0
    %1223 = vmatpush.bf16.msra.mxu0 0
    %1224 = vmatpush.bf16.msra.mxu0 0
    %1225 = vmatpush.bf16.msra.mxu0 %v1110
    %1226 = vmatpush.bf16.msra.mxu0 %v1108
    %1227 = vmatmul.bf16.gmra.mxu0 %v1150
    %v1228 = vpop.f32.mrf.mxu0
    %v1229 = vadd.f32 %v1200, %v1228
    %v1230 = vpop.f32.mrf.mxu0
    %v1231 = vadd.f32 %v1202, %v1230
    %1232 = vmatmul.bf16.gmra.mxu0 %v1153
    %v1233 = vpop.f32.mrf.mxu0
    %v1234 = vadd.f32 %v1205, %v1233
    %v1235 = vpop.f32.mrf.mxu0
    %v1236 = vadd.f32 %v1207, %v1235
    %1237 = vmatmul.bf16.gmra.mxu0 %v1156
    %v1238 = vpop.f32.mrf.mxu0
    %v1239 = vadd.f32 %v1210, %v1238
    %v1240 = vpop.f32.mrf.mxu0
    %v1241 = vadd.f32 %v1212, %v1240
    %1242 = vmatmul.bf16.gmra.mxu0 %v1159
    %v1243 = vpop.f32.mrf.mxu0
    %v1244 = vadd.f32 %v1215, %v1243
    %v1245 = vpop.f32.mrf.mxu0
    %v1246 = vadd.f32 %v1217, %v1245
    %1247 = vdwg.mxu0
    %1248 = vmatpush.bf16.msra.mxu0 %v1091
    %1249 = vmatpush.bf16.msra.mxu0 %v1089
    %1250 = vmatpush.bf16.msra.mxu0 %v1087
    %1251 = vmatpush.bf16.msra.mxu0 %v1085
    %1252 = vmatpush.bf16.msra.mxu0 %v1083
    %1253 = vmatpush.bf16.msra.mxu0 %v1081
    %1254 = vmatpush.bf16.msra.mxu0 %v1079
    %1255 = vmatpush.bf16.msra.mxu0 %v1077
    %1256 = vmatmul.bf16.gmra.mxu0 %v948
    %v1257 = vpop.f32.mrf.mxu0
    %v1258 = vadd.f32 %v871, %v1257
    %v1259 = vpop.f32.mrf.mxu0
    %v1260 = vadd.f32 %v876, %v1259
    %1261 = vmatmul.bf16.gmra.mxu0 %v951
    %v1262 = vpop.f32.mrf.mxu0
    %v1263 = vadd.f32 %v881, %v1262
    %v1264 = vpop.f32.mrf.mxu0
    %v1265 = vadd.f32 %v886, %v1264
    %1266 = vmatmul.bf16.gmra.mxu0 %v954
    %v1267 = vpop.f32.mrf.mxu0
    %v1268 = vadd.f32 %v891, %v1267
    %v1269 = vpop.f32.mrf.mxu0
    %v1270 = vadd.f32 %v896, %v1269
    %1271 = vmatmul.bf16.gmra.mxu0 %v957
    %v1272 = vpop.f32.mrf.mxu0
    %v1273 = vadd.f32 %v901, %v1272
    %v1274 = vpop.f32.mrf.mxu0
    %v1275 = vadd.f32 %v906, %v1274
    %1276 = vdwg.mxu0
    %1277 = vmatpush.bf16.msra.mxu0 %v1107
    %1278 = vmatpush.bf16.msra.mxu0 %v1105
    %1279 = vmatpush.bf16.msra.mxu0 %v1103
    %1280 = vmatpush.bf16.msra.mxu0 %v1101
    %1281 = vmatpush.bf16.msra.mxu0 %v1099
    %1282 = vmatpush.bf16.msra.mxu0 %v1097
    %1283 = vmatpush.bf16.msra.mxu0 %v1095
    %1284 = vmatpush.bf16.msra.mxu0 %v1093
    %1285 = vmatmul.bf16.gmra.mxu0 %v949
    %v1286 = vpop.f32.mrf.mxu0
    %v1287 = vadd.f32 %v1258, %v1286
    %v1288 = vpop.f32.mrf.mxu0
    %v1289 = vadd.f32 %v1260, %v1288
    %1290 = vmatmul.bf16.gmra.mxu0 %v952
    %v1291 = vpop.f32.mrf.mxu0
    %v1292 = vadd.f32 %v1263, %v1291
    %v1293 = vpop.f32.mrf.mxu0
    %v1294 = vadd.f32 %v1265, %v1293
    %1295 = vmatmul.bf16.gmra.mxu0 %v955
    %v1296 = vpop.f32.mrf.mxu0
    %v1297 = vadd.f32 %v1268, %v1296
    %v1298 = vpop.f32.mrf.mxu0
    %v1299 = vadd.f32 %v1270, %v1298
    %1300 = vmatmul.bf16.gmra.mxu0 %v958
    %v1301 = vpop.f32.mrf.mxu0
    %v1302 = vadd.f32 %v1273, %v1301
    %v1303 = vpop.f32.mrf.mxu0
    %v1304 = vadd.f32 %v1275, %v1303
    %1305 = vdwg.mxu0
    %1306 = vmatpush.bf16.msra.mxu0 0
    %1307 = vmatpush.bf16.msra.mxu0 0
    %1308 = vmatpush.bf16.msra.mxu0 0
    %1309 = vmatpush.bf16.msra.mxu0 0
    %1310 = vmatpush.bf16.msra.mxu0 0
    %1311 = vmatpush.bf16.msra.mxu0 0
    %1312 = vmatpush.bf16.msra.mxu0 %v1111
    %1313 = vmatpush.bf16.msra.mxu0 %v1109
    %1314 = vmatmul.bf16.gmra.mxu0 %v1150
    %v1315 = vpop.f32.mrf.mxu0
    %v1316 = vadd.f32 %v1287, %v1315
    %v1317 = vpop.f32.mrf.mxu0
    %v1318 = vadd.f32 %v1289, %v1317
    %1319 = vmatmul.bf16.gmra.mxu0 %v1153
    %v1320 = vpop.f32.mrf.mxu0
    %v1321 = vadd.f32 %v1292, %v1320
    %v1322 = vpop.f32.mrf.mxu0
    %v1323 = vadd.f32 %v1294, %v1322
    %1324 = vmatmul.bf16.gmra.mxu0 %v1156
    %v1325 = vpop.f32.mrf.mxu0
    %v1326 = vadd.f32 %v1297, %v1325
    %v1327 = vpop.f32.mrf.mxu0
    %v1328 = vadd.f32 %v1299, %v1327
    %1329 = vmatmul.bf16.gmra.mxu0 %v1159
    %v1330 = vpop.f32.mrf.mxu0
    %v1331 = vadd.f32 %v1302, %v1330
    %v1332 = vpop.f32.mrf.mxu0
    %v1333 = vadd.f32 %v1304, %v1332
    %1334 = vdwg.mxu0
    %v1335 = vmax.f32 %v1229, 0.0
    %v1336 = vmax.f32 %v1316, 0.0
    %v1337 = vmax.f32 %v1231, 0.0
    %v1338 = vmax.f32 %v1318, 0.0
    %v1339 = vmax.f32 %v1234, 0.0
    %v1340 = vmax.f32 %v1321, 0.0
    %v1341 = vmax.f32 %v1236, 0.0
    %v1342 = vmax.f32 %v1323, 0.0
    %v1343 = vmax.f32 %v1239, 0.0
    %v1344 = vmax.f32 %v1326, 0.0
    %v1345 = vmax.f32 %v1241, 0.0
    %v1346 = vmax.f32 %v1328, 0.0
    %v1347 = vmax.f32 %v1244, 0.0
    %v1348 = vmax.f32 %v1331, 0.0
    %v1349 = vmax.f32 %v1246, 0.0
    %v1350 = vmax.f32 %v1333, 0.0
    %v1351 = vpack.c.bf16 %v1337, %v1335
    %v1352 = vpack.c.bf16 %v1338, %v1336
    %v1353 = vpack.c.bf16 %v1341, %v1339
    %v1354 = vpack.c.bf16 %v1342, %v1340
    %v1355 = vpack.c.bf16 %v1345, %v1343
    %v1356 = vpack.c.bf16 %v1346, %v1344
    %v1357 = vpack.c.bf16 %v1349, %v1347
    %v1358 = vpack.c.bf16 %v1350, %v1348
    %v1359 = vld [vmem:[%s6] sm:$0xf]
    %v1360 = vld [vmem:[%s6 + $0x4] sm:$0xf]
    %v1361 = vld [vmem:[%s6 + $0x8] sm:$0xf]
    %v1362 = vld [vmem:[%s6 + $0xc] sm:$0xf]
    %v1363 = vld [vmem:[%s6 + $0x10] sm:$0xf]
    %v1364 = vld [vmem:[%s6 + $0x14] sm:$0xf]
    %v1365 = vld [vmem:[%s6 + $0x18] sm:$0xf]
    %v1366 = vld [vmem:[%s6 + $0x1c] sm:$0xf]
    %v1367 = vld [vmem:[%s6 + $0x20] sm:$0xf]
    %v1368 = vld [vmem:[%s6 + $0x24] sm:$0xf]
    %v1369 = vld [vmem:[%s6 + $0x28] sm:$0xf]
    %v1370 = vld [vmem:[%s6 + $0x2c] sm:$0xf]
    %v1371 = vld [vmem:[%s6 + $0x30] sm:$0xf]
    %v1372 = vld [vmem:[%s6 + $0x34] sm:$0xf]
    %v1373 = vld [vmem:[%s6 + $0x38] sm:$0xf]
    %v1374 = vld [vmem:[%s6 + $0x3c] sm:$0xf]
    %v1375 = vld [vmem:[%s6 + $0x40] sm:$0xf]
    %v1376 = vld [vmem:[%s6 + $0x44] sm:$0xf]
    %v1377 = vld [vmem:[%s6 + $0x48] sm:$0xf]
    %v1378 = vld [vmem:[%s6 + $0x4c] sm:$0xf]
    %v1379 = vld [vmem:[%s6 + $0x50] sm:$0xf]
    %v1380 = vld [vmem:[%s6 + $0x54] sm:$0xf]
    %v1381 = vld [vmem:[%s6 + $0x58] sm:$0xf]
    %v1382 = vld [vmem:[%s6 + $0x5c] sm:$0xf]
    %v1383 = vld [vmem:[%s6 + $0x60] sm:$0xf]
    %v1384 = vld [vmem:[%s6 + $0x64] sm:$0xf]
    %v1385 = vld [vmem:[%s6 + $0x68] sm:$0xf]
    %v1386 = vld [vmem:[%s6 + $0x6c] sm:$0xf]
    %v1387 = vld [vmem:[%s6 + $0x70] sm:$0xf]
    %v1388 = vld [vmem:[%s6 + $0x74] sm:$0xf]
    %v1389 = vld [vmem:[%s6 + $0x78] sm:$0xf]
    %v1390 = vld [vmem:[%s6 + $0x7c] sm:$0xf]
    %v1423 = vunpack.c.l.b16 %v1359
    %v1424 = vunpack.c.l.b16 %v1360
    %v1425 = vunpack.c.l.b16 %v1361
    %v1426 = vunpack.c.l.b16 %v1362
    %v1427 = vunpack.c.l.b16 %v1363
    %v1428 = vunpack.c.l.b16 %v1364
    %v1429 = vunpack.c.l.b16 %v1365
    %v1430 = vunpack.c.l.b16 %v1366
    %v1431 = vunpack.c.l.b16 %v1367
    %v1432 = vunpack.c.l.b16 %v1368
    %v1433 = vunpack.c.l.b16 %v1369
    %v1434 = vunpack.c.l.b16 %v1370
    %v1435 = vunpack.c.l.b16 %v1371
    %v1436 = vunpack.c.l.b16 %v1372
    %v1437 = vunpack.c.l.b16 %v1373
    %v1438 = vunpack.c.l.b16 %v1374
    %v1439 = vunpack.c.l.b16 %v1375
    %v1440 = vunpack.c.l.b16 %v1376
    %v1441 = vunpack.c.l.b16 %v1377
    %v1442 = vunpack.c.l.b16 %v1378
    %v1443 = vunpack.c.l.b16 %v1379
    %v1444 = vunpack.c.l.b16 %v1380
    %v1445 = vunpack.c.l.b16 %v1381
    %v1446 = vunpack.c.l.b16 %v1382
    %v1447 = vunpack.c.l.b16 %v1383
    %v1448 = vunpack.c.l.b16 %v1384
    %v1449 = vunpack.c.l.b16 %v1385
    %v1450 = vunpack.c.l.b16 %v1386
    %v1451 = vunpack.c.l.b16 %v1387
    %v1452 = vunpack.c.l.b16 %v1388
    %v1453 = vunpack.c.l.b16 %v1389
    %v1454 = vunpack.c.l.b16 %v1390
    %v1455 = vpack.c.b16 %v1424, %v1423
    %v1456 = vpack.c.b16 %v1426, %v1425
    %v1457 = vpack.c.b16 %v1428, %v1427
    %v1458 = vpack.c.b16 %v1430, %v1429
    %v1459 = vpack.c.b16 %v1432, %v1431
    %v1460 = vpack.c.b16 %v1434, %v1433
    %v1461 = vpack.c.b16 %v1436, %v1435
    %v1462 = vpack.c.b16 %v1438, %v1437
    %v1463 = vpack.c.b16 %v1440, %v1439
    %v1464 = vpack.c.b16 %v1442, %v1441
    %v1465 = vpack.c.b16 %v1444, %v1443
    %v1466 = vpack.c.b16 %v1446, %v1445
    %v1467 = vpack.c.b16 %v1448, %v1447
    %v1468 = vpack.c.b16 %v1450, %v1449
    %v1469 = vpack.c.b16 %v1452, %v1451
    %v1470 = vpack.c.b16 %v1454, %v1453
    %1487 = vmatpush.bf16.msra.mxu0 %v1462
    %1488 = vmatpush.bf16.msra.mxu0 %v1461
    %1489 = vmatpush.bf16.msra.mxu0 %v1460
    %1490 = vmatpush.bf16.msra.mxu0 %v1459
    %1491 = vmatpush.bf16.msra.mxu0 %v1458
    %1492 = vmatpush.bf16.msra.mxu0 %v1457
    %1493 = vmatpush.bf16.msra.mxu0 %v1456
    %1494 = vmatpush.bf16.msra.mxu0 %v1455
    %1495 = vmatmul.bf16.gmra.mxu0 %v1351
    %v1496 = vpop.f32.mrf.mxu0
    %v1497 = vadd.f32 0.0, %v1496
    %v1498 = vpop.f32.mrf.mxu0
    %v1499 = vadd.f32 0.0, %v1498
    %1500 = vmatmul.bf16.gmra.mxu0 %v1353
    %v1501 = vpop.f32.mrf.mxu0
    %v1502 = vadd.f32 0.0, %v1501
    %v1503 = vpop.f32.mrf.mxu0
    %v1504 = vadd.f32 0.0, %v1503
    %1505 = vmatmul.bf16.gmra.mxu0 %v1355
    %v1506 = vpop.f32.mrf.mxu0
    %v1507 = vadd.f32 0.0, %v1506
    %v1508 = vpop.f32.mrf.mxu0
    %v1509 = vadd.f32 0.0, %v1508
    %1510 = vmatmul.bf16.gmra.mxu0 %v1357
    %v1511 = vpop.f32.mrf.mxu0
    %v1512 = vadd.f32 0.0, %v1511
    %v1513 = vpop.f32.mrf.mxu0
    %v1514 = vadd.f32 0.0, %v1513
    %1515 = vdwg.mxu0
    %1516 = vmatpush.bf16.msra.mxu0 %v1470
    %1517 = vmatpush.bf16.msra.mxu0 %v1469
    %1518 = vmatpush.bf16.msra.mxu0 %v1468
    %1519 = vmatpush.bf16.msra.mxu0 %v1467
    %1520 = vmatpush.bf16.msra.mxu0 %v1466
    %1521 = vmatpush.bf16.msra.mxu0 %v1465
    %1522 = vmatpush.bf16.msra.mxu0 %v1464
    %1523 = vmatpush.bf16.msra.mxu0 %v1463
    %1524 = vmatmul.bf16.gmra.mxu0 %v1352
    %v1525 = vpop.f32.mrf.mxu0
    %v1526 = vadd.f32 %v1497, %v1525
    %v1527 = vpop.f32.mrf.mxu0
    %v1528 = vadd.f32 %v1499, %v1527
    %1529 = vmatmul.bf16.gmra.mxu0 %v1354
    %v1530 = vpop.f32.mrf.mxu0
    %v1531 = vadd.f32 %v1502, %v1530
    %v1532 = vpop.f32.mrf.mxu0
    %v1533 = vadd.f32 %v1504, %v1532
    %1534 = vmatmul.bf16.gmra.mxu0 %v1356
    %v1535 = vpop.f32.mrf.mxu0
    %v1536 = vadd.f32 %v1507, %v1535
    %v1537 = vpop.f32.mrf.mxu0
    %v1538 = vadd.f32 %v1509, %v1537
    %1539 = vmatmul.bf16.gmra.mxu0 %v1358
    %v1540 = vpop.f32.mrf.mxu0
    %v1541 = vadd.f32 %v1512, %v1540
    %v1542 = vpop.f32.mrf.mxu0
    %v1543 = vadd.f32 %v1514, %v1542
    %1544 = vdwg.mxu0
    %vm1545 = vcmask 523264
    %1546 = vst.msk [vmem:[#allocation3] sm:$0xff] %vm1545, %v1526
    %1547 = vst.msk [vmem:[#allocation3 + $0x8] sm:$0xff] %vm1545, %v1528
    %1548 = vst.msk [vmem:[#allocation3 + $0x10] sm:$0xff] %vm1545, %v1531
    %1549 = vst.msk [vmem:[#allocation3 + $0x18] sm:$0xff] %vm1545, %v1533
    %1550 = vst.msk [vmem:[#allocation3 + $0x20] sm:$0xff] %vm1545, %v1536
    %1551 = vst.msk [vmem:[#allocation3 + $0x28] sm:$0xff] %vm1545, %v1538
    %1552 = vst.msk [vmem:[#allocation3 + $0x30] sm:$0xff] %vm1545, %v1541
    %1553 = vst.msk [vmem:[#allocation3 + $0x38] sm:$0xff] %vm1545, %v1543
    %v1554 = vld [vmem:[#allocation3] sm:$0xff]
    %v1555 = vpack.c.bf16 %v1554, %v1554
    %vm1556 = vcmask 519168
    %1557 = vst.msk [vmem:[#allocation4] sm:$0xf] %vm1556, %v1555
    %v1558 = vld [vmem:[#allocation3 + $0x8] sm:$0xff]
    %v1559 = vpack.c.bf16 %v1558, %v1558
    %1561 = vrot.lane.b32.xlu0 %v1559, 64
    %v1562 = vpop.permute.xlu0 %1561
    %vm1564 = vcmask 1043968
    %1565 = vst.msk [vmem:[#allocation4] sm:$0xf] %vm1564, %v1562
    %v1566 = vld [vmem:[#allocation3 + $0x10] sm:$0xff]
    %v1567 = vpack.c.bf16 %v1566, %v1566
    %1568 = vst.msk [vmem:[#allocation4 + $0x4] sm:$0xf] %vm1556, %v1567
    %v1569 = vld [vmem:[#allocation3 + $0x18] sm:$0xff]
    %v1570 = vpack.c.bf16 %v1569, %v1569
    %1572 = vrot.lane.b32.xlu0 %v1570, 64
    %v1573 = vpop.permute.xlu0 %1572
    %1575 = vst.msk [vmem:[#allocation4 + $0x4] sm:$0xf] %vm1564, %v1573
    %v1576 = vld [vmem:[#allocation3 + $0x20] sm:$0xff]
    %v1577 = vpack.c.bf16 %v1576, %v1576
    %1578 = vst.msk [vmem:[#allocation4 + $0x8] sm:$0xf] %vm1556, %v1577
    %v1579 = vld [vmem:[#allocation3 + $0x28] sm:$0xff]
    %v1580 = vpack.c.bf16 %v1579, %v1579
    %1582 = vrot.lane.b32.xlu0 %v1580, 64
    %v1583 = vpop.permute.xlu0 %1582
    %1585 = vst.msk [vmem:[#allocation4 + $0x8] sm:$0xf] %vm1564, %v1583
    %v1586 = vld [vmem:[#allocation3 + $0x30] sm:$0xff]
    %v1587 = vpack.c.bf16 %v1586, %v1586
    %1588 = vst.msk [vmem:[#allocation4 + $0xc] sm:$0xf] %vm1556, %v1587
    %v1589 = vld [vmem:[#allocation3 + $0x38] sm:$0xff]
    %v1590 = vpack.c.bf16 %v1589, %v1589
    %1592 = vrot.lane.b32.xlu0 %v1590, 64
    %v1593 = vpop.permute.xlu0 %1592
    %1595 = vst.msk [vmem:[#allocation4 + $0xc] sm:$0xf] %vm1564, %v1593
    %v1596 = vld [vmem:[%s8] sm:$0x1]
    %v1597 = vld [vmem:[#allocation4] sm:$0x11]
    %v1598 = vld [vmem:[#allocation4 + $0x8] sm:$0x11]
    %v1599 = vld [vmem:[%s7] sm:$0xf]
    %v1600 = vld [vmem:[%s7 + $0x4] sm:$0xf]
    %v1601 = vld [vmem:[%s7 + $0x8] sm:$0xf]
    %v1602 = vld [vmem:[%s7 + $0xc] sm:$0xf]
    %v1603 = vld [vmem:[%s7 + $0x10] sm:$0xf]
    %v1604 = vld [vmem:[%s7 + $0x14] sm:$0xf]
    %v1605 = vld [vmem:[%s7 + $0x18] sm:$0xf]
    %v1606 = vld [vmem:[%s7 + $0x1c] sm:$0xf]
    %v1607 = vld [vmem:[%s7 + $0x20] sm:$0xf]
    %v1608 = vld [vmem:[%s7 + $0x24] sm:$0xf]
    %v1609 = vld [vmem:[%s7 + $0x28] sm:$0xf]
    %v1610 = vld [vmem:[%s7 + $0x2c] sm:$0xf]
    %v1611 = vld [vmem:[%s7 + $0x30] sm:$0xf]
    %v1612 = vld [vmem:[%s7 + $0x34] sm:$0xf]
    %v1613 = vld [vmem:[%s7 + $0x38] sm:$0xf]
    %v1614 = vld [vmem:[%s7 + $0x3c] sm:$0xf]
    %v1615 = vld [vmem:[%s7 + $0x40] sm:$0xf]
    %v1616 = vld [vmem:[%s7 + $0x44] sm:$0xf]
    %v1617 = vld [vmem:[%s7 + $0x48] sm:$0xf]
    %v1618 = vld [vmem:[%s7 + $0x4c] sm:$0xf]
    %v1619 = vld [vmem:[%s7 + $0x50] sm:$0xf]
    %v1620 = vld [vmem:[%s7 + $0x54] sm:$0xf]
    %v1621 = vld [vmem:[%s7 + $0x58] sm:$0xf]
    %v1622 = vld [vmem:[%s7 + $0x5c] sm:$0xf]
    %v1623 = vld [vmem:[%s7 + $0x60] sm:$0xf]
    %v1624 = vld [vmem:[%s7 + $0x64] sm:$0xf]
    %v1625 = vld [vmem:[%s7 + $0x68] sm:$0xf]
    %v1626 = vld [vmem:[%s7 + $0x6c] sm:$0xf]
    %v1627 = vld [vmem:[%s7 + $0x70] sm:$0xf]
    %v1628 = vld [vmem:[%s7 + $0x74] sm:$0xf]
    %v1629 = vld [vmem:[%s7 + $0x78] sm:$0xf]
    %v1630 = vld [vmem:[%s7 + $0x7c] sm:$0xf]
    %v1631 = vld [vmem:[%s7 + $0x80] sm:$0xf]
    %v1632 = vld [vmem:[%s7 + $0x84] sm:$0xf]
    %v1633 = vld [vmem:[%s7 + $0x88] sm:$0xf]
    %v1634 = vld [vmem:[%s7 + $0x8c] sm:$0xf]
    %v1635 = vld [vmem:[%s7 + $0x90] sm:$0xf]
    %v1636 = vld [vmem:[%s7 + $0x94] sm:$0xf]
    %v1637 = vld [vmem:[%s7 + $0x98] sm:$0xf]
    %v1638 = vld [vmem:[%s7 + $0x9c] sm:$0xf]
    %v1639 = vld [vmem:[%s7 + $0xa0] sm:$0xf]
    %v1640 = vld [vmem:[%s7 + $0xa4] sm:$0xf]
    %v1641 = vld [vmem:[%s7 + $0xa8] sm:$0xf]
    %v1642 = vld [vmem:[%s7 + $0xac] sm:$0xf]
    %v1643 = vld [vmem:[%s7 + $0xb0] sm:$0xf]
    %v1644 = vld [vmem:[%s7 + $0xb4] sm:$0xf]
    %v1645 = vld [vmem:[%s7 + $0xb8] sm:$0xf]
    %v1646 = vld [vmem:[%s7 + $0xbc] sm:$0xf]
    %v1647 = vld [vmem:[%s7 + $0xc0] sm:$0xf]
    %v1648 = vld [vmem:[%s7 + $0xc4] sm:$0xf]
    %v1649 = vld [vmem:[%s7 + $0xc8] sm:$0xf]
    %v1650 = vld [vmem:[%s7 + $0xcc] sm:$0xf]
    %v1651 = vld [vmem:[%s7 + $0xd0] sm:$0xf]
    %v1652 = vld [vmem:[%s7 + $0xd4] sm:$0xf]
    %v1653 = vld [vmem:[%s7 + $0xd8] sm:$0xf]
    %v1654 = vld [vmem:[%s7 + $0xdc] sm:$0xf]
    %v1655 = vld [vmem:[%s7 + $0xe0] sm:$0xf]
    %v1656 = vld [vmem:[%s7 + $0xe4] sm:$0xf]
    %v1657 = vld [vmem:[%s7 + $0xe8] sm:$0xf]
    %v1658 = vld [vmem:[%s7 + $0xec] sm:$0xf]
    %v1659 = vld [vmem:[%s7 + $0xf0] sm:$0xf]
    %v1660 = vld [vmem:[%s7 + $0xf4] sm:$0xf]
    %v1661 = vld [vmem:[%s7 + $0xf8] sm:$0xf]
    %v1662 = vld [vmem:[%s7 + $0xfc] sm:$0xf]
    %v1665 = vunpack.c.l.b16 %v1597
    %v1666 = vunpack.c.h.b16 %v1597
    %v1667 = vunpack.c.l.b16 %v1598
    %v1668 = vunpack.c.h.b16 %v1598
    %v1669 = vpack.c.b16 %v1665, %v1665
    %v1670 = vpack.c.b16 %v1666, %v1666
    %v1671 = vpack.c.b16 %v1667, %v1667
    %v1672 = vpack.c.b16 %v1668, %v1668
    %v1741 = vunpack.c.l.b16 %v1599
    %v1742 = vunpack.c.l.b16 %v1600
    %v1743 = vunpack.c.l.b16 %v1601
    %v1744 = vunpack.c.l.b16 %v1602
    %v1745 = vunpack.c.l.b16 %v1603
    %v1746 = vunpack.c.l.b16 %v1604
    %v1747 = vunpack.c.l.b16 %v1605
    %v1748 = vunpack.c.l.b16 %v1606
    %v1749 = vunpack.c.l.b16 %v1607
    %v1750 = vunpack.c.l.b16 %v1608
    %v1751 = vunpack.c.l.b16 %v1609
    %v1752 = vunpack.c.l.b16 %v1610
    %v1753 = vunpack.c.l.b16 %v1611
    %v1754 = vunpack.c.l.b16 %v1612
    %v1755 = vunpack.c.l.b16 %v1613
    %v1756 = vunpack.c.l.b16 %v1614
    %v1757 = vunpack.c.l.b16 %v1615
    %v1758 = vunpack.c.l.b16 %v1616
    %v1759 = vunpack.c.l.b16 %v1617
    %v1760 = vunpack.c.l.b16 %v1618
    %v1761 = vunpack.c.l.b16 %v1619
    %v1762 = vunpack.c.l.b16 %v1620
    %v1763 = vunpack.c.l.b16 %v1621
    %v1764 = vunpack.c.l.b16 %v1622
    %v1765 = vunpack.c.l.b16 %v1623
    %v1766 = vunpack.c.l.b16 %v1624
    %v1767 = vunpack.c.l.b16 %v1625
    %v1768 = vunpack.c.l.b16 %v1626
    %v1769 = vunpack.c.l.b16 %v1627
    %v1770 = vunpack.c.l.b16 %v1628
    %v1771 = vunpack.c.l.b16 %v1629
    %v1772 = vunpack.c.l.b16 %v1630
    %v1773 = vunpack.c.l.b16 %v1631
    %v1774 = vunpack.c.l.b16 %v1632
    %v1775 = vunpack.c.l.b16 %v1633
    %v1776 = vunpack.c.l.b16 %v1634
    %v1777 = vunpack.c.l.b16 %v1635
    %v1778 = vunpack.c.l.b16 %v1636
    %v1779 = vunpack.c.l.b16 %v1637
    %v1780 = vunpack.c.l.b16 %v1638
    %v1781 = vunpack.c.l.b16 %v1639
    %v1782 = vunpack.c.l.b16 %v1640
    %v1783 = vunpack.c.l.b16 %v1641
    %v1784 = vunpack.c.l.b16 %v1642
    %v1785 = vunpack.c.l.b16 %v1643
    %v1786 = vunpack.c.l.b16 %v1644
    %v1787 = vunpack.c.l.b16 %v1645
    %v1788 = vunpack.c.l.b16 %v1646
    %v1789 = vunpack.c.l.b16 %v1647
    %v1790 = vunpack.c.l.b16 %v1648
    %v1791 = vunpack.c.l.b16 %v1649
    %v1792 = vunpack.c.l.b16 %v1650
    %v1793 = vunpack.c.l.b16 %v1651
    %v1794 = vunpack.c.l.b16 %v1652
    %v1795 = vunpack.c.l.b16 %v1653
    %v1796 = vunpack.c.l.b16 %v1654
    %v1797 = vunpack.c.l.b16 %v1655
    %v1798 = vunpack.c.l.b16 %v1656
    %v1799 = vunpack.c.l.b16 %v1657
    %v1800 = vunpack.c.l.b16 %v1658
    %v1801 = vunpack.c.l.b16 %v1659
    %v1802 = vunpack.c.l.b16 %v1660
    %v1803 = vunpack.c.l.b16 %v1661
    %v1804 = vunpack.c.l.b16 %v1662
    %v1805 = vpack.c.b16 %v1742, %v1741
    %v1806 = vpack.c.b16 %v1744, %v1743
    %v1807 = vpack.c.b16 %v1746, %v1745
    %v1808 = vpack.c.b16 %v1748, %v1747
    %v1809 = vpack.c.b16 %v1750, %v1749
    %v1810 = vpack.c.b16 %v1752, %v1751
    %v1811 = vpack.c.b16 %v1754, %v1753
    %v1812 = vpack.c.b16 %v1756, %v1755
    %v1813 = vpack.c.b16 %v1758, %v1757
    %v1814 = vpack.c.b16 %v1760, %v1759
    %v1815 = vpack.c.b16 %v1762, %v1761
    %v1816 = vpack.c.b16 %v1764, %v1763
    %v1817 = vpack.c.b16 %v1766, %v1765
    %v1818 = vpack.c.b16 %v1768, %v1767
    %v1819 = vpack.c.b16 %v1770, %v1769
    %v1820 = vpack.c.b16 %v1772, %v1771
    %v1821 = vpack.c.b16 %v1774, %v1773
    %v1822 = vpack.c.b16 %v1776, %v1775
    %v1823 = vpack.c.b16 %v1778, %v1777
    %v1824 = vpack.c.b16 %v1780, %v1779
    %v1825 = vpack.c.b16 %v1782, %v1781
    %v1826 = vpack.c.b16 %v1784, %v1783
    %v1827 = vpack.c.b16 %v1786, %v1785
    %v1828 = vpack.c.b16 %v1788, %v1787
    %v1829 = vpack.c.b16 %v1790, %v1789
    %v1830 = vpack.c.b16 %v1792, %v1791
    %v1831 = vpack.c.b16 %v1794, %v1793
    %v1832 = vpack.c.b16 %v1796, %v1795
    %v1833 = vpack.c.b16 %v1798, %v1797
    %v1834 = vpack.c.b16 %v1800, %v1799
    %v1835 = vpack.c.b16 %v1802, %v1801
    %v1836 = vpack.c.b16 %v1804, %v1803
    %1869 = vmatpush.bf16.msra.mxu0 %v1812
    %1870 = vmatpush.bf16.msra.mxu0 %v1811
    %1871 = vmatpush.bf16.msra.mxu0 %v1810
    %1872 = vmatpush.bf16.msra.mxu0 %v1809
    %1873 = vmatpush.bf16.msra.mxu0 %v1808
    %1874 = vmatpush.bf16.msra.mxu0 %v1807
    %1875 = vmatpush.bf16.msra.mxu0 %v1806
    %1876 = vmatpush.bf16.msra.mxu0 %v1805
    %1877 = vmatmul.bf16.gmra.mxu0 %v1669
    %v1878 = vpop.f32.mrf.mxu0
    %v1879 = vadd.f32 0.0, %v1878
    %v1880 = vpop.f32.mrf.mxu0
    %1881 = vdwg.mxu0
    %1882 = vmatpush.bf16.msra.mxu0 %v1820
    %1883 = vmatpush.bf16.msra.mxu0 %v1819
    %1884 = vmatpush.bf16.msra.mxu0 %v1818
    %1885 = vmatpush.bf16.msra.mxu0 %v1817
    %1886 = vmatpush.bf16.msra.mxu0 %v1816
    %1887 = vmatpush.bf16.msra.mxu0 %v1815
    %1888 = vmatpush.bf16.msra.mxu0 %v1814
    %1889 = vmatpush.bf16.msra.mxu0 %v1813
    %1890 = vmatmul.bf16.gmra.mxu0 %v1670
    %v1891 = vpop.f32.mrf.mxu0
    %v1892 = vadd.f32 %v1879, %v1891
    %v1893 = vpop.f32.mrf.mxu0
    %1894 = vdwg.mxu0
    %1895 = vmatpush.bf16.msra.mxu0 %v1828
    %1896 = vmatpush.bf16.msra.mxu0 %v1827
    %1897 = vmatpush.bf16.msra.mxu0 %v1826
    %1898 = vmatpush.bf16.msra.mxu0 %v1825
    %1899 = vmatpush.bf16.msra.mxu0 %v1824
    %1900 = vmatpush.bf16.msra.mxu0 %v1823
    %1901 = vmatpush.bf16.msra.mxu0 %v1822
    %1902 = vmatpush.bf16.msra.mxu0 %v1821
    %1903 = vmatmul.bf16.gmra.mxu0 %v1671
    %v1904 = vpop.f32.mrf.mxu0
    %v1905 = vadd.f32 %v1892, %v1904
    %v1906 = vpop.f32.mrf.mxu0
    %1907 = vdwg.mxu0
    %1908 = vmatpush.bf16.msra.mxu0 %v1836
    %1909 = vmatpush.bf16.msra.mxu0 %v1835
    %1910 = vmatpush.bf16.msra.mxu0 %v1834
    %1911 = vmatpush.bf16.msra.mxu0 %v1833
    %1912 = vmatpush.bf16.msra.mxu0 %v1832
    %1913 = vmatpush.bf16.msra.mxu0 %v1831
    %1914 = vmatpush.bf16.msra.mxu0 %v1830
    %1915 = vmatpush.bf16.msra.mxu0 %v1829
    %1916 = vmatmul.bf16.gmra.mxu0 %v1672
    %v1917 = vpop.f32.mrf.mxu0
    %v1918 = vadd.f32 %v1905, %v1917
    %v1919 = vpop.f32.mrf.mxu0
    %1920 = vdwg.mxu0
    %v1921 = vadd.f32 %v1596, %v1918
    %s1922 = scalar_lea.vmem %s7, 256
    %v1923 = vld [vmem:[%s1922] sm:$0xf]
    %v1924 = vld [vmem:[%s1922 + $0x4] sm:$0xf]
    %v1925 = vld [vmem:[%s1922 + $0x8] sm:$0xf]
    %v1926 = vld [vmem:[%s1922 + $0xc] sm:$0xf]
    %v1927 = vld [vmem:[%s1922 + $0x10] sm:$0xf]
    %v1928 = vld [vmem:[%s1922 + $0x14] sm:$0xf]
    %v1929 = vld [vmem:[%s1922 + $0x18] sm:$0xf]
    %v1930 = vld [vmem:[%s1922 + $0x1c] sm:$0xf]
    %v1931 = vld [vmem:[%s1922 + $0x20] sm:$0xf]
    %v1932 = vld [vmem:[%s1922 + $0x24] sm:$0xf]
    %v1933 = vld [vmem:[%s1922 + $0x28] sm:$0xf]
    %v1934 = vld [vmem:[%s1922 + $0x2c] sm:$0xf]
    %v1935 = vld [vmem:[%s1922 + $0x30] sm:$0xf]
    %v1936 = vld [vmem:[%s1922 + $0x34] sm:$0xf]
    %v1937 = vld [vmem:[%s1922 + $0x38] sm:$0xf]
    %v1938 = vld [vmem:[%s1922 + $0x3c] sm:$0xf]
    %v1939 = vld [vmem:[%s1922 + $0x40] sm:$0xf]
    %v1940 = vld [vmem:[%s1922 + $0x44] sm:$0xf]
    %v1941 = vld [vmem:[%s1922 + $0x48] sm:$0xf]
    %v1942 = vld [vmem:[%s1922 + $0x4c] sm:$0xf]
    %v1943 = vld [vmem:[%s1922 + $0x50] sm:$0xf]
    %v1944 = vld [vmem:[%s1922 + $0x54] sm:$0xf]
    %v1945 = vld [vmem:[%s1922 + $0x58] sm:$0xf]
    %v1946 = vld [vmem:[%s1922 + $0x5c] sm:$0xf]
    %v1947 = vld [vmem:[%s1922 + $0x60] sm:$0xf]
    %v1948 = vld [vmem:[%s1922 + $0x64] sm:$0xf]
    %v1949 = vld [vmem:[%s1922 + $0x68] sm:$0xf]
    %v1950 = vld [vmem:[%s1922 + $0x6c] sm:$0xf]
    %v1951 = vld [vmem:[%s1922 + $0x70] sm:$0xf]
    %v1952 = vld [vmem:[%s1922 + $0x74] sm:$0xf]
    %v1953 = vld [vmem:[%s1922 + $0x78] sm:$0xf]
    %v1954 = vld [vmem:[%s1922 + $0x7c] sm:$0xf]
    %v1955 = vld [vmem:[%s1922 + $0x80] sm:$0xf]
    %v1956 = vld [vmem:[%s1922 + $0x84] sm:$0xf]
    %v1957 = vld [vmem:[%s1922 + $0x88] sm:$0xf]
    %v1958 = vld [vmem:[%s1922 + $0x8c] sm:$0xf]
    %v1959 = vld [vmem:[%s1922 + $0x90] sm:$0xf]
    %v1960 = vld [vmem:[%s1922 + $0x94] sm:$0xf]
    %v1961 = vld [vmem:[%s1922 + $0x98] sm:$0xf]
    %v1962 = vld [vmem:[%s1922 + $0x9c] sm:$0xf]
    %v1963 = vld [vmem:[%s1922 + $0xa0] sm:$0xf]
    %v1964 = vld [vmem:[%s1922 + $0xa4] sm:$0xf]
    %v1965 = vld [vmem:[%s1922 + $0xa8] sm:$0xf]
    %v1966 = vld [vmem:[%s1922 + $0xac] sm:$0xf]
    %v1967 = vld [vmem:[%s1922 + $0xb0] sm:$0xf]
    %v1968 = vld [vmem:[%s1922 + $0xb4] sm:$0xf]
    %v1969 = vld [vmem:[%s1922 + $0xb8] sm:$0xf]
    %v1970 = vld [vmem:[%s1922 + $0xbc] sm:$0xf]
    %v1971 = vld [vmem:[%s1922 + $0xc0] sm:$0xf]
    %v1972 = vld [vmem:[%s1922 + $0xc4] sm:$0xf]
    %v1973 = vld [vmem:[%s1922 + $0xc8] sm:$0xf]
    %v1974 = vld [vmem:[%s1922 + $0xcc] sm:$0xf]
    %v1975 = vld [vmem:[%s1922 + $0xd0] sm:$0xf]
    %v1976 = vld [vmem:[%s1922 + $0xd4] sm:$0xf]
    %v1977 = vld [vmem:[%s1922 + $0xd8] sm:$0xf]
    %v1978 = vld [vmem:[%s1922 + $0xdc] sm:$0xf]
    %v1979 = vld [vmem:[%s1922 + $0xe0] sm:$0xf]
    %v1980 = vld [vmem:[%s1922 + $0xe4] sm:$0xf]
    %v1981 = vld [vmem:[%s1922 + $0xe8] sm:$0xf]
    %v1982 = vld [vmem:[%s1922 + $0xec] sm:$0xf]
    %v1983 = vld [vmem:[%s1922 + $0xf0] sm:$0xf]
    %v1984 = vld [vmem:[%s1922 + $0xf4] sm:$0xf]
    %v1985 = vld [vmem:[%s1922 + $0xf8] sm:$0xf]
    %v1986 = vld [vmem:[%s1922 + $0xfc] sm:$0xf]
    %v1988 = vshrl.u32 %v1669, 16
    %v1991 = vshrl.u32 %v1670, 16
    %v1994 = vshrl.u32 %v1671, 16
    %v1997 = vshrl.u32 %v1672, 16
    %v2067 = vunpack.c.l.b16 %v1923
    %v2068 = vunpack.c.l.b16 %v1924
    %v2069 = vunpack.c.l.b16 %v1925
    %v2070 = vunpack.c.l.b16 %v1926
    %v2071 = vunpack.c.l.b16 %v1927
    %v2072 = vunpack.c.l.b16 %v1928
    %v2073 = vunpack.c.l.b16 %v1929
    %v2074 = vunpack.c.l.b16 %v1930
    %v2075 = vunpack.c.l.b16 %v1931
    %v2076 = vunpack.c.l.b16 %v1932
    %v2077 = vunpack.c.l.b16 %v1933
    %v2078 = vunpack.c.l.b16 %v1934
    %v2079 = vunpack.c.l.b16 %v1935
    %v2080 = vunpack.c.l.b16 %v1936
    %v2081 = vunpack.c.l.b16 %v1937
    %v2082 = vunpack.c.l.b16 %v1938
    %v2083 = vunpack.c.l.b16 %v1939
    %v2084 = vunpack.c.l.b16 %v1940
    %v2085 = vunpack.c.l.b16 %v1941
    %v2086 = vunpack.c.l.b16 %v1942
    %v2087 = vunpack.c.l.b16 %v1943
    %v2088 = vunpack.c.l.b16 %v1944
    %v2089 = vunpack.c.l.b16 %v1945
    %v2090 = vunpack.c.l.b16 %v1946
    %v2091 = vunpack.c.l.b16 %v1947
    %v2092 = vunpack.c.l.b16 %v1948
    %v2093 = vunpack.c.l.b16 %v1949
    %v2094 = vunpack.c.l.b16 %v1950
    %v2095 = vunpack.c.l.b16 %v1951
    %v2096 = vunpack.c.l.b16 %v1952
    %v2097 = vunpack.c.l.b16 %v1953
    %v2098 = vunpack.c.l.b16 %v1954
    %v2099 = vunpack.c.l.b16 %v1955
    %v2100 = vunpack.c.l.b16 %v1956
    %v2101 = vunpack.c.l.b16 %v1957
    %v2102 = vunpack.c.l.b16 %v1958
    %v2103 = vunpack.c.l.b16 %v1959
    %v2104 = vunpack.c.l.b16 %v1960
    %v2105 = vunpack.c.l.b16 %v1961
    %v2106 = vunpack.c.l.b16 %v1962
    %v2107 = vunpack.c.l.b16 %v1963
    %v2108 = vunpack.c.l.b16 %v1964
    %v2109 = vunpack.c.l.b16 %v1965
    %v2110 = vunpack.c.l.b16 %v1966
    %v2111 = vunpack.c.l.b16 %v1967
    %v2112 = vunpack.c.l.b16 %v1968
    %v2113 = vunpack.c.l.b16 %v1969
    %v2114 = vunpack.c.l.b16 %v1970
    %v2115 = vunpack.c.l.b16 %v1971
    %v2116 = vunpack.c.l.b16 %v1972
    %v2117 = vunpack.c.l.b16 %v1973
    %v2118 = vunpack.c.l.b16 %v1974
    %v2119 = vunpack.c.l.b16 %v1975
    %v2120 = vunpack.c.l.b16 %v1976
    %v2121 = vunpack.c.l.b16 %v1977
    %v2122 = vunpack.c.l.b16 %v1978
    %v2123 = vunpack.c.l.b16 %v1979
    %v2124 = vunpack.c.l.b16 %v1980
    %v2125 = vunpack.c.l.b16 %v1981
    %v2126 = vunpack.c.l.b16 %v1982
    %v2127 = vunpack.c.l.b16 %v1983
    %v2128 = vunpack.c.l.b16 %v1984
    %v2129 = vunpack.c.l.b16 %v1985
    %v2130 = vunpack.c.l.b16 %v1986
    %v2131 = vpack.c.b16 %v2068, %v2067
    %v2132 = vpack.c.b16 %v2070, %v2069
    %v2133 = vpack.c.b16 %v2072, %v2071
    %v2134 = vpack.c.b16 %v2074, %v2073
    %v2135 = vpack.c.b16 %v2076, %v2075
    %v2136 = vpack.c.b16 %v2078, %v2077
    %v2137 = vpack.c.b16 %v2080, %v2079
    %v2138 = vpack.c.b16 %v2082, %v2081
    %v2139 = vpack.c.b16 %v2084, %v2083
    %v2140 = vpack.c.b16 %v2086, %v2085
    %v2141 = vpack.c.b16 %v2088, %v2087
    %v2142 = vpack.c.b16 %v2090, %v2089
    %v2143 = vpack.c.b16 %v2092, %v2091
    %v2144 = vpack.c.b16 %v2094, %v2093
    %v2145 = vpack.c.b16 %v2096, %v2095
    %v2146 = vpack.c.b16 %v2098, %v2097
    %v2147 = vpack.c.b16 %v2100, %v2099
    %v2148 = vpack.c.b16 %v2102, %v2101
    %v2149 = vpack.c.b16 %v2104, %v2103
    %v2150 = vpack.c.b16 %v2106, %v2105
    %v2151 = vpack.c.b16 %v2108, %v2107
    %v2152 = vpack.c.b16 %v2110, %v2109
    %v2153 = vpack.c.b16 %v2112, %v2111
    %v2154 = vpack.c.b16 %v2114, %v2113
    %v2155 = vpack.c.b16 %v2116, %v2115
    %v2156 = vpack.c.b16 %v2118, %v2117
    %v2157 = vpack.c.b16 %v2120, %v2119
    %v2158 = vpack.c.b16 %v2122, %v2121
    %v2159 = vpack.c.b16 %v2124, %v2123
    %v2160 = vpack.c.b16 %v2126, %v2125
    %v2161 = vpack.c.b16 %v2128, %v2127
    %v2162 = vpack.c.b16 %v2130, %v2129
    %2195 = vmatpush.bf16.msra.mxu0 %v2138
    %2196 = vmatpush.bf16.msra.mxu0 %v2137
    %2197 = vmatpush.bf16.msra.mxu0 %v2136
    %2198 = vmatpush.bf16.msra.mxu0 %v2135
    %2199 = vmatpush.bf16.msra.mxu0 %v2134
    %2200 = vmatpush.bf16.msra.mxu0 %v2133
    %2201 = vmatpush.bf16.msra.mxu0 %v2132
    %2202 = vmatpush.bf16.msra.mxu0 %v2131
    %2203 = vmatmul.bf16.gmra.mxu0 %v1988
    %v2204 = vpop.f32.mrf.mxu0
    %v2205 = vadd.f32 0.0, %v2204
    %v2206 = vpop.f32.mrf.mxu0
    %2207 = vdwg.mxu0
    %2208 = vmatpush.bf16.msra.mxu0 %v2146
    %2209 = vmatpush.bf16.msra.mxu0 %v2145
    %2210 = vmatpush.bf16.msra.mxu0 %v2144
    %2211 = vmatpush.bf16.msra.mxu0 %v2143
    %2212 = vmatpush.bf16.msra.mxu0 %v2142
    %2213 = vmatpush.bf16.msra.mxu0 %v2141
    %2214 = vmatpush.bf16.msra.mxu0 %v2140
    %2215 = vmatpush.bf16.msra.mxu0 %v2139
    %2216 = vmatmul.bf16.gmra.mxu0 %v1991
    %v2217 = vpop.f32.mrf.mxu0
    %v2218 = vadd.f32 %v2205, %v2217
    %v2219 = vpop.f32.mrf.mxu0
    %2220 = vdwg.mxu0
    %2221 = vmatpush.bf16.msra.mxu0 %v2154
    %2222 = vmatpush.bf16.msra.mxu0 %v2153
    %2223 = vmatpush.bf16.msra.mxu0 %v2152
    %2224 = vmatpush.bf16.msra.mxu0 %v2151
    %2225 = vmatpush.bf16.msra.mxu0 %v2150
    %2226 = vmatpush.bf16.msra.mxu0 %v2149
    %2227 = vmatpush.bf16.msra.mxu0 %v2148
    %2228 = vmatpush.bf16.msra.mxu0 %v2147
    %2229 = vmatmul.bf16.gmra.mxu0 %v1994
    %v2230 = vpop.f32.mrf.mxu0
    %v2231 = vadd.f32 %v2218, %v2230
    %v2232 = vpop.f32.mrf.mxu0
    %2233 = vdwg.mxu0
    %2234 = vmatpush.bf16.msra.mxu0 %v2162
    %2235 = vmatpush.bf16.msra.mxu0 %v2161
    %2236 = vmatpush.bf16.msra.mxu0 %v2160
    %2237 = vmatpush.bf16.msra.mxu0 %v2159
    %2238 = vmatpush.bf16.msra.mxu0 %v2158
    %2239 = vmatpush.bf16.msra.mxu0 %v2157
    %2240 = vmatpush.bf16.msra.mxu0 %v2156
    %2241 = vmatpush.bf16.msra.mxu0 %v2155
    %2242 = vmatmul.bf16.gmra.mxu0 %v1997
    %v2243 = vpop.f32.mrf.mxu0
    %v2244 = vadd.f32 %v2231, %v2243
    %v2245 = vpop.f32.mrf.mxu0
    %2246 = vdwg.mxu0
    %v2247 = vadd.f32 %v1921, %v2244
    %v2248 = vld [vmem:[#allocation4] sm:$0x22]
    %v2249 = vld [vmem:[#allocation4 + $0x8] sm:$0x22]
    %s2250 = scalar_lea.vmem %s7, 512
    %v2251 = vld [vmem:[%s2250] sm:$0xf]
    %v2252 = vld [vmem:[%s2250 + $0x4] sm:$0xf]
    %v2253 = vld [vmem:[%s2250 + $0x8] sm:$0xf]
    %v2254 = vld [vmem:[%s2250 + $0xc] sm:$0xf]
    %v2255 = vld [vmem:[%s2250 + $0x10] sm:$0xf]
    %v2256 = vld [vmem:[%s2250 + $0x14] sm:$0xf]
    %v2257 = vld [vmem:[%s2250 + $0x18] sm:$0xf]
    %v2258 = vld [vmem:[%s2250 + $0x1c] sm:$0xf]
    %v2259 = vld [vmem:[%s2250 + $0x20] sm:$0xf]
    %v2260 = vld [vmem:[%s2250 + $0x24] sm:$0xf]
    %v2261 = vld [vmem:[%s2250 + $0x28] sm:$0xf]
    %v2262 = vld [vmem:[%s2250 + $0x2c] sm:$0xf]
    %v2263 = vld [vmem:[%s2250 + $0x30] sm:$0xf]
    %v2264 = vld [vmem:[%s2250 + $0x34] sm:$0xf]
    %v2265 = vld [vmem:[%s2250 + $0x38] sm:$0xf]
    %v2266 = vld [vmem:[%s2250 + $0x3c] sm:$0xf]
    %v2267 = vld [vmem:[%s2250 + $0x40] sm:$0xf]
    %v2268 = vld [vmem:[%s2250 + $0x44] sm:$0xf]
    %v2269 = vld [vmem:[%s2250 + $0x48] sm:$0xf]
    %v2270 = vld [vmem:[%s2250 + $0x4c] sm:$0xf]
    %v2271 = vld [vmem:[%s2250 + $0x50] sm:$0xf]
    %v2272 = vld [vmem:[%s2250 + $0x54] sm:$0xf]
    %v2273 = vld [vmem:[%s2250 + $0x58] sm:$0xf]
    %v2274 = vld [vmem:[%s2250 + $0x5c] sm:$0xf]
    %v2275 = vld [vmem:[%s2250 + $0x60] sm:$0xf]
    %v2276 = vld [vmem:[%s2250 + $0x64] sm:$0xf]
    %v2277 = vld [vmem:[%s2250 + $0x68] sm:$0xf]
    %v2278 = vld [vmem:[%s2250 + $0x6c] sm:$0xf]
    %v2279 = vld [vmem:[%s2250 + $0x70] sm:$0xf]
    %v2280 = vld [vmem:[%s2250 + $0x74] sm:$0xf]
    %v2281 = vld [vmem:[%s2250 + $0x78] sm:$0xf]
    %v2282 = vld [vmem:[%s2250 + $0x7c] sm:$0xf]
    %v2283 = vld [vmem:[%s2250 + $0x80] sm:$0xf]
    %v2284 = vld [vmem:[%s2250 + $0x84] sm:$0xf]
    %v2285 = vld [vmem:[%s2250 + $0x88] sm:$0xf]
    %v2286 = vld [vmem:[%s2250 + $0x8c] sm:$0xf]
    %v2287 = vld [vmem:[%s2250 + $0x90] sm:$0xf]
    %v2288 = vld [vmem:[%s2250 + $0x94] sm:$0xf]
    %v2289 = vld [vmem:[%s2250 + $0x98] sm:$0xf]
    %v2290 = vld [vmem:[%s2250 + $0x9c] sm:$0xf]
    %v2291 = vld [vmem:[%s2250 + $0xa0] sm:$0xf]
    %v2292 = vld [vmem:[%s2250 + $0xa4] sm:$0xf]
    %v2293 = vld [vmem:[%s2250 + $0xa8] sm:$0xf]
    %v2294 = vld [vmem:[%s2250 + $0xac] sm:$0xf]
    %v2295 = vld [vmem:[%s2250 + $0xb0] sm:$0xf]
    %v2296 = vld [vmem:[%s2250 + $0xb4] sm:$0xf]
    %v2297 = vld [vmem:[%s2250 + $0xb8] sm:$0xf]
    %v2298 = vld [vmem:[%s2250 + $0xbc] sm:$0xf]
    %v2299 = vld [vmem:[%s2250 + $0xc0] sm:$0xf]
    %v2300 = vld [vmem:[%s2250 + $0xc4] sm:$0xf]
    %v2301 = vld [vmem:[%s2250 + $0xc8] sm:$0xf]
    %v2302 = vld [vmem:[%s2250 + $0xcc] sm:$0xf]
    %v2303 = vld [vmem:[%s2250 + $0xd0] sm:$0xf]
    %v2304 = vld [vmem:[%s2250 + $0xd4] sm:$0xf]
    %v2305 = vld [vmem:[%s2250 + $0xd8] sm:$0xf]
    %v2306 = vld [vmem:[%s2250 + $0xdc] sm:$0xf]
    %v2307 = vld [vmem:[%s2250 + $0xe0] sm:$0xf]
    %v2308 = vld [vmem:[%s2250 + $0xe4] sm:$0xf]
    %v2309 = vld [vmem:[%s2250 + $0xe8] sm:$0xf]
    %v2310 = vld [vmem:[%s2250 + $0xec] sm:$0xf]
    %v2311 = vld [vmem:[%s2250 + $0xf0] sm:$0xf]
    %v2312 = vld [vmem:[%s2250 + $0xf4] sm:$0xf]
    %v2313 = vld [vmem:[%s2250 + $0xf8] sm:$0xf]
    %v2314 = vld [vmem:[%s2250 + $0xfc] sm:$0xf]
    %v2317 = vunpack.c.l.b16 %v2248
    %v2318 = vunpack.c.h.b16 %v2248
    %v2319 = vunpack.c.l.b16 %v2249
    %v2320 = vunpack.c.h.b16 %v2249
    %v2321 = vpack.c.b16 %v2317, %v2317
    %v2322 = vpack.c.b16 %v2318, %v2318
    %v2323 = vpack.c.b16 %v2319, %v2319
    %v2324 = vpack.c.b16 %v2320, %v2320
    %v2325 = vrot.slane %v2321, 1
    %v2326 = vrot.slane %v2322, 1
    %v2327 = vrot.slane %v2323, 1
    %v2328 = vrot.slane %v2324, 1
    %v2397 = vunpack.c.l.b16 %v2251
    %v2398 = vunpack.c.l.b16 %v2252
    %v2399 = vunpack.c.l.b16 %v2253
    %v2400 = vunpack.c.l.b16 %v2254
    %v2401 = vunpack.c.l.b16 %v2255
    %v2402 = vunpack.c.l.b16 %v2256
    %v2403 = vunpack.c.l.b16 %v2257
    %v2404 = vunpack.c.l.b16 %v2258
    %v2405 = vunpack.c.l.b16 %v2259
    %v2406 = vunpack.c.l.b16 %v2260
    %v2407 = vunpack.c.l.b16 %v2261
    %v2408 = vunpack.c.l.b16 %v2262
    %v2409 = vunpack.c.l.b16 %v2263
    %v2410 = vunpack.c.l.b16 %v2264
    %v2411 = vunpack.c.l.b16 %v2265
    %v2412 = vunpack.c.l.b16 %v2266
    %v2413 = vunpack.c.l.b16 %v2267
    %v2414 = vunpack.c.l.b16 %v2268
    %v2415 = vunpack.c.l.b16 %v2269
    %v2416 = vunpack.c.l.b16 %v2270
    %v2417 = vunpack.c.l.b16 %v2271
    %v2418 = vunpack.c.l.b16 %v2272
    %v2419 = vunpack.c.l.b16 %v2273
    %v2420 = vunpack.c.l.b16 %v2274
    %v2421 = vunpack.c.l.b16 %v2275
    %v2422 = vunpack.c.l.b16 %v2276
    %v2423 = vunpack.c.l.b16 %v2277
    %v2424 = vunpack.c.l.b16 %v2278
    %v2425 = vunpack.c.l.b16 %v2279
    %v2426 = vunpack.c.l.b16 %v2280
    %v2427 = vunpack.c.l.b16 %v2281
    %v2428 = vunpack.c.l.b16 %v2282
    %v2429 = vunpack.c.l.b16 %v2283
    %v2430 = vunpack.c.l.b16 %v2284
    %v2431 = vunpack.c.l.b16 %v2285
    %v2432 = vunpack.c.l.b16 %v2286
    %v2433 = vunpack.c.l.b16 %v2287
    %v2434 = vunpack.c.l.b16 %v2288
    %v2435 = vunpack.c.l.b16 %v2289
    %v2436 = vunpack.c.l.b16 %v2290
    %v2437 = vunpack.c.l.b16 %v2291
    %v2438 = vunpack.c.l.b16 %v2292
    %v2439 = vunpack.c.l.b16 %v2293
    %v2440 = vunpack.c.l.b16 %v2294
    %v2441 = vunpack.c.l.b16 %v2295
    %v2442 = vunpack.c.l.b16 %v2296
    %v2443 = vunpack.c.l.b16 %v2297
    %v2444 = vunpack.c.l.b16 %v2298
    %v2445 = vunpack.c.l.b16 %v2299
    %v2446 = vunpack.c.l.b16 %v2300
    %v2447 = vunpack.c.l.b16 %v2301
    %v2448 = vunpack.c.l.b16 %v2302
    %v2449 = vunpack.c.l.b16 %v2303
    %v2450 = vunpack.c.l.b16 %v2304
    %v2451 = vunpack.c.l.b16 %v2305
    %v2452 = vunpack.c.l.b16 %v2306
    %v2453 = vunpack.c.l.b16 %v2307
    %v2454 = vunpack.c.l.b16 %v2308
    %v2455 = vunpack.c.l.b16 %v2309
    %v2456 = vunpack.c.l.b16 %v2310
    %v2457 = vunpack.c.l.b16 %v2311
    %v2458 = vunpack.c.l.b16 %v2312
    %v2459 = vunpack.c.l.b16 %v2313
    %v2460 = vunpack.c.l.b16 %v2314
    %v2461 = vpack.c.b16 %v2398, %v2397
    %v2462 = vpack.c.b16 %v2400, %v2399
    %v2463 = vpack.c.b16 %v2402, %v2401
    %v2464 = vpack.c.b16 %v2404, %v2403
    %v2465 = vpack.c.b16 %v2406, %v2405
    %v2466 = vpack.c.b16 %v2408, %v2407
    %v2467 = vpack.c.b16 %v2410, %v2409
    %v2468 = vpack.c.b16 %v2412, %v2411
    %v2469 = vpack.c.b16 %v2414, %v2413
    %v2470 = vpack.c.b16 %v2416, %v2415
    %v2471 = vpack.c.b16 %v2418, %v2417
    %v2472 = vpack.c.b16 %v2420, %v2419
    %v2473 = vpack.c.b16 %v2422, %v2421
    %v2474 = vpack.c.b16 %v2424, %v2423
    %v2475 = vpack.c.b16 %v2426, %v2425
    %v2476 = vpack.c.b16 %v2428, %v2427
    %v2477 = vpack.c.b16 %v2430, %v2429
    %v2478 = vpack.c.b16 %v2432, %v2431
    %v2479 = vpack.c.b16 %v2434, %v2433
    %v2480 = vpack.c.b16 %v2436, %v2435
    %v2481 = vpack.c.b16 %v2438, %v2437
    %v2482 = vpack.c.b16 %v2440, %v2439
    %v2483 = vpack.c.b16 %v2442, %v2441
    %v2484 = vpack.c.b16 %v2444, %v2443
    %v2485 = vpack.c.b16 %v2446, %v2445
    %v2486 = vpack.c.b16 %v2448, %v2447
    %v2487 = vpack.c.b16 %v2450, %v2449
    %v2488 = vpack.c.b16 %v2452, %v2451
    %v2489 = vpack.c.b16 %v2454, %v2453
    %v2490 = vpack.c.b16 %v2456, %v2455
    %v2491 = vpack.c.b16 %v2458, %v2457
    %v2492 = vpack.c.b16 %v2460, %v2459
    %2525 = vmatpush.bf16.msra.mxu0 %v2468
    %2526 = vmatpush.bf16.msra.mxu0 %v2467
    %2527 = vmatpush.bf16.msra.mxu0 %v2466
    %2528 = vmatpush.bf16.msra.mxu0 %v2465
    %2529 = vmatpush.bf16.msra.mxu0 %v2464
    %2530 = vmatpush.bf16.msra.mxu0 %v2463
    %2531 = vmatpush.bf16.msra.mxu0 %v2462
    %2532 = vmatpush.bf16.msra.mxu0 %v2461
    %2533 = vmatmul.bf16.gmra.mxu0 %v2325
    %v2534 = vpop.f32.mrf.mxu0
    %v2535 = vadd.f32 0.0, %v2534
    %v2536 = vpop.f32.mrf.mxu0
    %2537 = vdwg.mxu0
    %2538 = vmatpush.bf16.msra.mxu0 %v2476
    %2539 = vmatpush.bf16.msra.mxu0 %v2475
    %2540 = vmatpush.bf16.msra.mxu0 %v2474
    %2541 = vmatpush.bf16.msra.mxu0 %v2473
    %2542 = vmatpush.bf16.msra.mxu0 %v2472
    %2543 = vmatpush.bf16.msra.mxu0 %v2471
    %2544 = vmatpush.bf16.msra.mxu0 %v2470
    %2545 = vmatpush.bf16.msra.mxu0 %v2469
    %2546 = vmatmul.bf16.gmra.mxu0 %v2326
    %v2547 = vpop.f32.mrf.mxu0
    %v2548 = vadd.f32 %v2535, %v2547
    %v2549 = vpop.f32.mrf.mxu0
    %2550 = vdwg.mxu0
    %2551 = vmatpush.bf16.msra.mxu0 %v2484
    %2552 = vmatpush.bf16.msra.mxu0 %v2483
    %2553 = vmatpush.bf16.msra.mxu0 %v2482
    %2554 = vmatpush.bf16.msra.mxu0 %v2481
    %2555 = vmatpush.bf16.msra.mxu0 %v2480
    %2556 = vmatpush.bf16.msra.mxu0 %v2479
    %2557 = vmatpush.bf16.msra.mxu0 %v2478
    %2558 = vmatpush.bf16.msra.mxu0 %v2477
    %2559 = vmatmul.bf16.gmra.mxu0 %v2327
    %v2560 = vpop.f32.mrf.mxu0
    %v2561 = vadd.f32 %v2548, %v2560
    %v2562 = vpop.f32.mrf.mxu0
    %2563 = vdwg.mxu0
    %2564 = vmatpush.bf16.msra.mxu0 %v2492
    %2565 = vmatpush.bf16.msra.mxu0 %v2491
    %2566 = vmatpush.bf16.msra.mxu0 %v2490
    %2567 = vmatpush.bf16.msra.mxu0 %v2489
    %2568 = vmatpush.bf16.msra.mxu0 %v2488
    %2569 = vmatpush.bf16.msra.mxu0 %v2487
    %2570 = vmatpush.bf16.msra.mxu0 %v2486
    %2571 = vmatpush.bf16.msra.mxu0 %v2485
    %2572 = vmatmul.bf16.gmra.mxu0 %v2328
    %v2573 = vpop.f32.mrf.mxu0
    %v2574 = vadd.f32 %v2561, %v2573
    %v2575 = vpop.f32.mrf.mxu0
    %2576 = vdwg.mxu0
    %v2577 = vadd.f32 %v2247, %v2574
    %s2578 = scalar_lea.vmem %s7, 768
    %v2579 = vld [vmem:[%s2578] sm:$0xf]
    %v2580 = vld [vmem:[%s2578 + $0x4] sm:$0xf]
    %v2581 = vld [vmem:[%s2578 + $0x8] sm:$0xf]
    %v2582 = vld [vmem:[%s2578 + $0xc] sm:$0xf]
    %v2583 = vld [vmem:[%s2578 + $0x10] sm:$0xf]
    %v2584 = vld [vmem:[%s2578 + $0x14] sm:$0xf]
    %v2585 = vld [vmem:[%s2578 + $0x18] sm:$0xf]
    %v2586 = vld [vmem:[%s2578 + $0x1c] sm:$0xf]
    %v2587 = vld [vmem:[%s2578 + $0x20] sm:$0xf]
    %v2588 = vld [vmem:[%s2578 + $0x24] sm:$0xf]
    %v2589 = vld [vmem:[%s2578 + $0x28] sm:$0xf]
    %v2590 = vld [vmem:[%s2578 + $0x2c] sm:$0xf]
    %v2591 = vld [vmem:[%s2578 + $0x30] sm:$0xf]
    %v2592 = vld [vmem:[%s2578 + $0x34] sm:$0xf]
    %v2593 = vld [vmem:[%s2578 + $0x38] sm:$0xf]
    %v2594 = vld [vmem:[%s2578 + $0x3c] sm:$0xf]
    %v2595 = vld [vmem:[%s2578 + $0x40] sm:$0xf]
    %v2596 = vld [vmem:[%s2578 + $0x44] sm:$0xf]
    %v2597 = vld [vmem:[%s2578 + $0x48] sm:$0xf]
    %v2598 = vld [vmem:[%s2578 + $0x4c] sm:$0xf]
    %v2599 = vld [vmem:[%s2578 + $0x50] sm:$0xf]
    %v2600 = vld [vmem:[%s2578 + $0x54] sm:$0xf]
    %v2601 = vld [vmem:[%s2578 + $0x58] sm:$0xf]
    %v2602 = vld [vmem:[%s2578 + $0x5c] sm:$0xf]
    %v2603 = vld [vmem:[%s2578 + $0x60] sm:$0xf]
    %v2604 = vld [vmem:[%s2578 + $0x64] sm:$0xf]
    %v2605 = vld [vmem:[%s2578 + $0x68] sm:$0xf]
    %v2606 = vld [vmem:[%s2578 + $0x6c] sm:$0xf]
    %v2607 = vld [vmem:[%s2578 + $0x70] sm:$0xf]
    %v2608 = vld [vmem:[%s2578 + $0x74] sm:$0xf]
    %v2609 = vld [vmem:[%s2578 + $0x78] sm:$0xf]
    %v2610 = vld [vmem:[%s2578 + $0x7c] sm:$0xf]
    %v2611 = vld [vmem:[%s2578 + $0x80] sm:$0xf]
    %v2612 = vld [vmem:[%s2578 + $0x84] sm:$0xf]
    %v2613 = vld [vmem:[%s2578 + $0x88] sm:$0xf]
    %v2614 = vld [vmem:[%s2578 + $0x8c] sm:$0xf]
    %v2615 = vld [vmem:[%s2578 + $0x90] sm:$0xf]
    %v2616 = vld [vmem:[%s2578 + $0x94] sm:$0xf]
    %v2617 = vld [vmem:[%s2578 + $0x98] sm:$0xf]
    %v2618 = vld [vmem:[%s2578 + $0x9c] sm:$0xf]
    %v2619 = vld [vmem:[%s2578 + $0xa0] sm:$0xf]
    %v2620 = vld [vmem:[%s2578 + $0xa4] sm:$0xf]
    %v2621 = vld [vmem:[%s2578 + $0xa8] sm:$0xf]
    %v2622 = vld [vmem:[%s2578 + $0xac] sm:$0xf]
    %v2623 = vld [vmem:[%s2578 + $0xb0] sm:$0xf]
    %v2624 = vld [vmem:[%s2578 + $0xb4] sm:$0xf]
    %v2625 = vld [vmem:[%s2578 + $0xb8] sm:$0xf]
    %v2626 = vld [vmem:[%s2578 + $0xbc] sm:$0xf]
    %v2627 = vld [vmem:[%s2578 + $0xc0] sm:$0xf]
    %v2628 = vld [vmem:[%s2578 + $0xc4] sm:$0xf]
    %v2629 = vld [vmem:[%s2578 + $0xc8] sm:$0xf]
    %v2630 = vld [vmem:[%s2578 + $0xcc] sm:$0xf]
    %v2631 = vld [vmem:[%s2578 + $0xd0] sm:$0xf]
    %v2632 = vld [vmem:[%s2578 + $0xd4] sm:$0xf]
    %v2633 = vld [vmem:[%s2578 + $0xd8] sm:$0xf]
    %v2634 = vld [vmem:[%s2578 + $0xdc] sm:$0xf]
    %v2635 = vld [vmem:[%s2578 + $0xe0] sm:$0xf]
    %v2636 = vld [vmem:[%s2578 + $0xe4] sm:$0xf]
    %v2637 = vld [vmem:[%s2578 + $0xe8] sm:$0xf]
    %v2638 = vld [vmem:[%s2578 + $0xec] sm:$0xf]
    %v2639 = vld [vmem:[%s2578 + $0xf0] sm:$0xf]
    %v2640 = vld [vmem:[%s2578 + $0xf4] sm:$0xf]
    %v2641 = vld [vmem:[%s2578 + $0xf8] sm:$0xf]
    %v2642 = vld [vmem:[%s2578 + $0xfc] sm:$0xf]
    %v2644 = vshrl.u32 %v2321, 16
    %v2646 = vrot.slane %v2644, 1
    %v2648 = vshrl.u32 %v2322, 16
    %v2650 = vrot.slane %v2648, 1
    %v2652 = vshrl.u32 %v2323, 16
    %v2654 = vrot.slane %v2652, 1
    %v2656 = vshrl.u32 %v2324, 16
    %v2658 = vrot.slane %v2656, 1
    %v2727 = vunpack.c.l.b16 %v2579
    %v2728 = vunpack.c.l.b16 %v2580
    %v2729 = vunpack.c.l.b16 %v2581
    %v2730 = vunpack.c.l.b16 %v2582
    %v2731 = vunpack.c.l.b16 %v2583
    %v2732 = vunpack.c.l.b16 %v2584
    %v2733 = vunpack.c.l.b16 %v2585
    %v2734 = vunpack.c.l.b16 %v2586
    %v2735 = vunpack.c.l.b16 %v2587
    %v2736 = vunpack.c.l.b16 %v2588
    %v2737 = vunpack.c.l.b16 %v2589
    %v2738 = vunpack.c.l.b16 %v2590
    %v2739 = vunpack.c.l.b16 %v2591
    %v2740 = vunpack.c.l.b16 %v2592
    %v2741 = vunpack.c.l.b16 %v2593
    %v2742 = vunpack.c.l.b16 %v2594
    %v2743 = vunpack.c.l.b16 %v2595
    %v2744 = vunpack.c.l.b16 %v2596
    %v2745 = vunpack.c.l.b16 %v2597
    %v2746 = vunpack.c.l.b16 %v2598
    %v2747 = vunpack.c.l.b16 %v2599
    %v2748 = vunpack.c.l.b16 %v2600
    %v2749 = vunpack.c.l.b16 %v2601
    %v2750 = vunpack.c.l.b16 %v2602
    %v2751 = vunpack.c.l.b16 %v2603
    %v2752 = vunpack.c.l.b16 %v2604
    %v2753 = vunpack.c.l.b16 %v2605
    %v2754 = vunpack.c.l.b16 %v2606
    %v2755 = vunpack.c.l.b16 %v2607
    %v2756 = vunpack.c.l.b16 %v2608
    %v2757 = vunpack.c.l.b16 %v2609
    %v2758 = vunpack.c.l.b16 %v2610
    %v2759 = vunpack.c.l.b16 %v2611
    %v2760 = vunpack.c.l.b16 %v2612
    %v2761 = vunpack.c.l.b16 %v2613
    %v2762 = vunpack.c.l.b16 %v2614
    %v2763 = vunpack.c.l.b16 %v2615
    %v2764 = vunpack.c.l.b16 %v2616
    %v2765 = vunpack.c.l.b16 %v2617
    %v2766 = vunpack.c.l.b16 %v2618
    %v2767 = vunpack.c.l.b16 %v2619
    %v2768 = vunpack.c.l.b16 %v2620
    %v2769 = vunpack.c.l.b16 %v2621
    %v2770 = vunpack.c.l.b16 %v2622
    %v2771 = vunpack.c.l.b16 %v2623
    %v2772 = vunpack.c.l.b16 %v2624
    %v2773 = vunpack.c.l.b16 %v2625
    %v2774 = vunpack.c.l.b16 %v2626
    %v2775 = vunpack.c.l.b16 %v2627
    %v2776 = vunpack.c.l.b16 %v2628
    %v2777 = vunpack.c.l.b16 %v2629
    %v2778 = vunpack.c.l.b16 %v2630
    %v2779 = vunpack.c.l.b16 %v2631
    %v2780 = vunpack.c.l.b16 %v2632
    %v2781 = vunpack.c.l.b16 %v2633
    %v2782 = vunpack.c.l.b16 %v2634
    %v2783 = vunpack.c.l.b16 %v2635
    %v2784 = vunpack.c.l.b16 %v2636
    %v2785 = vunpack.c.l.b16 %v2637
    %v2786 = vunpack.c.l.b16 %v2638
    %v2787 = vunpack.c.l.b16 %v2639
    %v2788 = vunpack.c.l.b16 %v2640
    %v2789 = vunpack.c.l.b16 %v2641
    %v2790 = vunpack.c.l.b16 %v2642
    %v2791 = vpack.c.b16 %v2728, %v2727
    %v2792 = vpack.c.b16 %v2730, %v2729
    %v2793 = vpack.c.b16 %v2732, %v2731
    %v2794 = vpack.c.b16 %v2734, %v2733
    %v2795 = vpack.c.b16 %v2736, %v2735
    %v2796 = vpack.c.b16 %v2738, %v2737
    %v2797 = vpack.c.b16 %v2740, %v2739
    %v2798 = vpack.c.b16 %v2742, %v2741
    %v2799 = vpack.c.b16 %v2744, %v2743
    %v2800 = vpack.c.b16 %v2746, %v2745
    %v2801 = vpack.c.b16 %v2748, %v2747
    %v2802 = vpack.c.b16 %v2750, %v2749
    %v2803 = vpack.c.b16 %v2752, %v2751
    %v2804 = vpack.c.b16 %v2754, %v2753
    %v2805 = vpack.c.b16 %v2756, %v2755
    %v2806 = vpack.c.b16 %v2758, %v2757
    %v2807 = vpack.c.b16 %v2760, %v2759
    %v2808 = vpack.c.b16 %v2762, %v2761
    %v2809 = vpack.c.b16 %v2764, %v2763
    %v2810 = vpack.c.b16 %v2766, %v2765
    %v2811 = vpack.c.b16 %v2768, %v2767
    %v2812 = vpack.c.b16 %v2770, %v2769
    %v2813 = vpack.c.b16 %v2772, %v2771
    %v2814 = vpack.c.b16 %v2774, %v2773
    %v2815 = vpack.c.b16 %v2776, %v2775
    %v2816 = vpack.c.b16 %v2778, %v2777
    %v2817 = vpack.c.b16 %v2780, %v2779
    %v2818 = vpack.c.b16 %v2782, %v2781
    %v2819 = vpack.c.b16 %v2784, %v2783
    %v2820 = vpack.c.b16 %v2786, %v2785
    %v2821 = vpack.c.b16 %v2788, %v2787
    %v2822 = vpack.c.b16 %v2790, %v2789
    %2855 = vmatpush.bf16.msra.mxu0 %v2798
    %2856 = vmatpush.bf16.msra.mxu0 %v2797
    %2857 = vmatpush.bf16.msra.mxu0 %v2796
    %2858 = vmatpush.bf16.msra.mxu0 %v2795
    %2859 = vmatpush.bf16.msra.mxu0 %v2794
    %2860 = vmatpush.bf16.msra.mxu0 %v2793
    %2861 = vmatpush.bf16.msra.mxu0 %v2792
    %2862 = vmatpush.bf16.msra.mxu0 %v2791
    %2863 = vmatmul.bf16.gmra.mxu0 %v2646
    %v2864 = vpop.f32.mrf.mxu0
    %v2865 = vadd.f32 0.0, %v2864
    %v2866 = vpop.f32.mrf.mxu0
    %2867 = vdwg.mxu0
    %2868 = vmatpush.bf16.msra.mxu0 %v2806
    %2869 = vmatpush.bf16.msra.mxu0 %v2805
    %2870 = vmatpush.bf16.msra.mxu0 %v2804
    %2871 = vmatpush.bf16.msra.mxu0 %v2803
    %2872 = vmatpush.bf16.msra.mxu0 %v2802
    %2873 = vmatpush.bf16.msra.mxu0 %v2801
    %2874 = vmatpush.bf16.msra.mxu0 %v2800
    %2875 = vmatpush.bf16.msra.mxu0 %v2799
    %2876 = vmatmul.bf16.gmra.mxu0 %v2650
    %v2877 = vpop.f32.mrf.mxu0
    %v2878 = vadd.f32 %v2865, %v2877
    %v2879 = vpop.f32.mrf.mxu0
    %2880 = vdwg.mxu0
    %2881 = vmatpush.bf16.msra.mxu0 %v2814
    %2882 = vmatpush.bf16.msra.mxu0 %v2813
    %2883 = vmatpush.bf16.msra.mxu0 %v2812
    %2884 = vmatpush.bf16.msra.mxu0 %v2811
    %2885 = vmatpush.bf16.msra.mxu0 %v2810
    %2886 = vmatpush.bf16.msra.mxu0 %v2809
    %2887 = vmatpush.bf16.msra.mxu0 %v2808
    %2888 = vmatpush.bf16.msra.mxu0 %v2807
    %2889 = vmatmul.bf16.gmra.mxu0 %v2654
    %v2890 = vpop.f32.mrf.mxu0
    %v2891 = vadd.f32 %v2878, %v2890
    %v2892 = vpop.f32.mrf.mxu0
    %2893 = vdwg.mxu0
    %2894 = vmatpush.bf16.msra.mxu0 %v2822
    %2895 = vmatpush.bf16.msra.mxu0 %v2821
    %2896 = vmatpush.bf16.msra.mxu0 %v2820
    %2897 = vmatpush.bf16.msra.mxu0 %v2819
    %2898 = vmatpush.bf16.msra.mxu0 %v2818
    %2899 = vmatpush.bf16.msra.mxu0 %v2817
    %2900 = vmatpush.bf16.msra.mxu0 %v2816
    %2901 = vmatpush.bf16.msra.mxu0 %v2815
    %2902 = vmatmul.bf16.gmra.mxu0 %v2658
    %v2903 = vpop.f32.mrf.mxu0
    %v2904 = vadd.f32 %v2891, %v2903
    %v2905 = vpop.f32.mrf.mxu0
    %2906 = vdwg.mxu0
    %v2907 = vadd.f32 %v2577, %v2904
    %v2908 = vld [vmem:[#allocation4] sm:$0x44]
    %v2909 = vld [vmem:[#allocation4 + $0x8] sm:$0x44]
    %s2910 = scalar_lea.vmem %s7, 1024
    %v2911 = vld [vmem:[%s2910] sm:$0xf]
    %v2912 = vld [vmem:[%s2910 + $0x4] sm:$0xf]
    %v2913 = vld [vmem:[%s2910 + $0x8] sm:$0xf]
    %v2914 = vld [vmem:[%s2910 + $0xc] sm:$0xf]
    %v2915 = vld [vmem:[%s2910 + $0x10] sm:$0xf]
    %v2916 = vld [vmem:[%s2910 + $0x14] sm:$0xf]
    %v2917 = vld [vmem:[%s2910 + $0x18] sm:$0xf]
    %v2918 = vld [vmem:[%s2910 + $0x1c] sm:$0xf]
    %v2919 = vld [vmem:[%s2910 + $0x20] sm:$0xf]
    %v2920 = vld [vmem:[%s2910 + $0x24] sm:$0xf]
    %v2921 = vld [vmem:[%s2910 + $0x28] sm:$0xf]
    %v2922 = vld [vmem:[%s2910 + $0x2c] sm:$0xf]
    %v2923 = vld [vmem:[%s2910 + $0x30] sm:$0xf]
    %v2924 = vld [vmem:[%s2910 + $0x34] sm:$0xf]
    %v2925 = vld [vmem:[%s2910 + $0x38] sm:$0xf]
    %v2926 = vld [vmem:[%s2910 + $0x3c] sm:$0xf]
    %v2927 = vld [vmem:[%s2910 + $0x40] sm:$0xf]
    %v2928 = vld [vmem:[%s2910 + $0x44] sm:$0xf]
    %v2929 = vld [vmem:[%s2910 + $0x48] sm:$0xf]
    %v2930 = vld [vmem:[%s2910 + $0x4c] sm:$0xf]
    %v2931 = vld [vmem:[%s2910 + $0x50] sm:$0xf]
    %v2932 = vld [vmem:[%s2910 + $0x54] sm:$0xf]
    %v2933 = vld [vmem:[%s2910 + $0x58] sm:$0xf]
    %v2934 = vld [vmem:[%s2910 + $0x5c] sm:$0xf]
    %v2935 = vld [vmem:[%s2910 + $0x60] sm:$0xf]
    %v2936 = vld [vmem:[%s2910 + $0x64] sm:$0xf]
    %v2937 = vld [vmem:[%s2910 + $0x68] sm:$0xf]
    %v2938 = vld [vmem:[%s2910 + $0x6c] sm:$0xf]
    %v2939 = vld [vmem:[%s2910 + $0x70] sm:$0xf]
    %v2940 = vld [vmem:[%s2910 + $0x74] sm:$0xf]
    %v2941 = vld [vmem:[%s2910 + $0x78] sm:$0xf]
    %v2942 = vld [vmem:[%s2910 + $0x7c] sm:$0xf]
    %v2943 = vld [vmem:[%s2910 + $0x80] sm:$0xf]
    %v2944 = vld [vmem:[%s2910 + $0x84] sm:$0xf]
    %v2945 = vld [vmem:[%s2910 + $0x88] sm:$0xf]
    %v2946 = vld [vmem:[%s2910 + $0x8c] sm:$0xf]
    %v2947 = vld [vmem:[%s2910 + $0x90] sm:$0xf]
    %v2948 = vld [vmem:[%s2910 + $0x94] sm:$0xf]
    %v2949 = vld [vmem:[%s2910 + $0x98] sm:$0xf]
    %v2950 = vld [vmem:[%s2910 + $0x9c] sm:$0xf]
    %v2951 = vld [vmem:[%s2910 + $0xa0] sm:$0xf]
    %v2952 = vld [vmem:[%s2910 + $0xa4] sm:$0xf]
    %v2953 = vld [vmem:[%s2910 + $0xa8] sm:$0xf]
    %v2954 = vld [vmem:[%s2910 + $0xac] sm:$0xf]
    %v2955 = vld [vmem:[%s2910 + $0xb0] sm:$0xf]
    %v2956 = vld [vmem:[%s2910 + $0xb4] sm:$0xf]
    %v2957 = vld [vmem:[%s2910 + $0xb8] sm:$0xf]
    %v2958 = vld [vmem:[%s2910 + $0xbc] sm:$0xf]
    %v2959 = vld [vmem:[%s2910 + $0xc0] sm:$0xf]
    %v2960 = vld [vmem:[%s2910 + $0xc4] sm:$0xf]
    %v2961 = vld [vmem:[%s2910 + $0xc8] sm:$0xf]
    %v2962 = vld [vmem:[%s2910 + $0xcc] sm:$0xf]
    %v2963 = vld [vmem:[%s2910 + $0xd0] sm:$0xf]
    %v2964 = vld [vmem:[%s2910 + $0xd4] sm:$0xf]
    %v2965 = vld [vmem:[%s2910 + $0xd8] sm:$0xf]
    %v2966 = vld [vmem:[%s2910 + $0xdc] sm:$0xf]
    %v2967 = vld [vmem:[%s2910 + $0xe0] sm:$0xf]
    %v2968 = vld [vmem:[%s2910 + $0xe4] sm:$0xf]
    %v2969 = vld [vmem:[%s2910 + $0xe8] sm:$0xf]
    %v2970 = vld [vmem:[%s2910 + $0xec] sm:$0xf]
    %v2971 = vld [vmem:[%s2910 + $0xf0] sm:$0xf]
    %v2972 = vld [vmem:[%s2910 + $0xf4] sm:$0xf]
    %v2973 = vld [vmem:[%s2910 + $0xf8] sm:$0xf]
    %v2974 = vld [vmem:[%s2910 + $0xfc] sm:$0xf]
    %v2977 = vunpack.c.l.b16 %v2908
    %v2978 = vunpack.c.h.b16 %v2908
    %v2979 = vunpack.c.l.b16 %v2909
    %v2980 = vunpack.c.h.b16 %v2909
    %v2981 = vpack.c.b16 %v2977, %v2977
    %v2982 = vpack.c.b16 %v2978, %v2978
    %v2983 = vpack.c.b16 %v2979, %v2979
    %v2984 = vpack.c.b16 %v2980, %v2980
    %v2985 = vrot.slane %v2981, 2
    %v2986 = vrot.slane %v2982, 2
    %v2987 = vrot.slane %v2983, 2
    %v2988 = vrot.slane %v2984, 2
    %v3057 = vunpack.c.l.b16 %v2911
    %v3058 = vunpack.c.l.b16 %v2912
    %v3059 = vunpack.c.l.b16 %v2913
    %v3060 = vunpack.c.l.b16 %v2914
    %v3061 = vunpack.c.l.b16 %v2915
    %v3062 = vunpack.c.l.b16 %v2916
    %v3063 = vunpack.c.l.b16 %v2917
    %v3064 = vunpack.c.l.b16 %v2918
    %v3065 = vunpack.c.l.b16 %v2919
    %v3066 = vunpack.c.l.b16 %v2920
    %v3067 = vunpack.c.l.b16 %v2921
    %v3068 = vunpack.c.l.b16 %v2922
    %v3069 = vunpack.c.l.b16 %v2923
    %v3070 = vunpack.c.l.b16 %v2924
    %v3071 = vunpack.c.l.b16 %v2925
    %v3072 = vunpack.c.l.b16 %v2926
    %v3073 = vunpack.c.l.b16 %v2927
    %v3074 = vunpack.c.l.b16 %v2928
    %v3075 = vunpack.c.l.b16 %v2929
    %v3076 = vunpack.c.l.b16 %v2930
    %v3077 = vunpack.c.l.b16 %v2931
    %v3078 = vunpack.c.l.b16 %v2932
    %v3079 = vunpack.c.l.b16 %v2933
    %v3080 = vunpack.c.l.b16 %v2934
    %v3081 = vunpack.c.l.b16 %v2935
    %v3082 = vunpack.c.l.b16 %v2936
    %v3083 = vunpack.c.l.b16 %v2937
    %v3084 = vunpack.c.l.b16 %v2938
    %v3085 = vunpack.c.l.b16 %v2939
    %v3086 = vunpack.c.l.b16 %v2940
    %v3087 = vunpack.c.l.b16 %v2941
    %v3088 = vunpack.c.l.b16 %v2942
    %v3089 = vunpack.c.l.b16 %v2943
    %v3090 = vunpack.c.l.b16 %v2944
    %v3091 = vunpack.c.l.b16 %v2945
    %v3092 = vunpack.c.l.b16 %v2946
    %v3093 = vunpack.c.l.b16 %v2947
    %v3094 = vunpack.c.l.b16 %v2948
    %v3095 = vunpack.c.l.b16 %v2949
    %v3096 = vunpack.c.l.b16 %v2950
    %v3097 = vunpack.c.l.b16 %v2951
    %v3098 = vunpack.c.l.b16 %v2952
    %v3099 = vunpack.c.l.b16 %v2953
    %v3100 = vunpack.c.l.b16 %v2954
    %v3101 = vunpack.c.l.b16 %v2955
    %v3102 = vunpack.c.l.b16 %v2956
    %v3103 = vunpack.c.l.b16 %v2957
    %v3104 = vunpack.c.l.b16 %v2958
    %v3105 = vunpack.c.l.b16 %v2959
    %v3106 = vunpack.c.l.b16 %v2960
    %v3107 = vunpack.c.l.b16 %v2961
    %v3108 = vunpack.c.l.b16 %v2962
    %v3109 = vunpack.c.l.b16 %v2963
    %v3110 = vunpack.c.l.b16 %v2964
    %v3111 = vunpack.c.l.b16 %v2965
    %v3112 = vunpack.c.l.b16 %v2966
    %v3113 = vunpack.c.l.b16 %v2967
    %v3114 = vunpack.c.l.b16 %v2968
    %v3115 = vunpack.c.l.b16 %v2969
    %v3116 = vunpack.c.l.b16 %v2970
    %v3117 = vunpack.c.l.b16 %v2971
    %v3118 = vunpack.c.l.b16 %v2972
    %v3119 = vunpack.c.l.b16 %v2973
    %v3120 = vunpack.c.l.b16 %v2974
    %v3121 = vpack.c.b16 %v3058, %v3057
    %v3122 = vpack.c.b16 %v3060, %v3059
    %v3123 = vpack.c.b16 %v3062, %v3061
    %v3124 = vpack.c.b16 %v3064, %v3063
    %v3125 = vpack.c.b16 %v3066, %v3065
    %v3126 = vpack.c.b16 %v3068, %v3067
    %v3127 = vpack.c.b16 %v3070, %v3069
    %v3128 = vpack.c.b16 %v3072, %v3071
    %v3129 = vpack.c.b16 %v3074, %v3073
    %v3130 = vpack.c.b16 %v3076, %v3075
    %v3131 = vpack.c.b16 %v3078, %v3077
    %v3132 = vpack.c.b16 %v3080, %v3079
    %v3133 = vpack.c.b16 %v3082, %v3081
    %v3134 = vpack.c.b16 %v3084, %v3083
    %v3135 = vpack.c.b16 %v3086, %v3085
    %v3136 = vpack.c.b16 %v3088, %v3087
    %v3137 = vpack.c.b16 %v3090, %v3089
    %v3138 = vpack.c.b16 %v3092, %v3091
    %v3139 = vpack.c.b16 %v3094, %v3093
    %v3140 = vpack.c.b16 %v3096, %v3095
    %v3141 = vpack.c.b16 %v3098, %v3097
    %v3142 = vpack.c.b16 %v3100, %v3099
    %v3143 = vpack.c.b16 %v3102, %v3101
    %v3144 = vpack.c.b16 %v3104, %v3103
    %v3145 = vpack.c.b16 %v3106, %v3105
    %v3146 = vpack.c.b16 %v3108, %v3107
    %v3147 = vpack.c.b16 %v3110, %v3109
    %v3148 = vpack.c.b16 %v3112, %v3111
    %v3149 = vpack.c.b16 %v3114, %v3113
    %v3150 = vpack.c.b16 %v3116, %v3115
    %v3151 = vpack.c.b16 %v3118, %v3117
    %v3152 = vpack.c.b16 %v3120, %v3119
    %3185 = vmatpush.bf16.msra.mxu0 %v3128
    %3186 = vmatpush.bf16.msra.mxu0 %v3127
    %3187 = vmatpush.bf16.msra.mxu0 %v3126
    %3188 = vmatpush.bf16.msra.mxu0 %v3125
    %3189 = vmatpush.bf16.msra.mxu0 %v3124
    %3190 = vmatpush.bf16.msra.mxu0 %v3123
    %3191 = vmatpush.bf16.msra.mxu0 %v3122
    %3192 = vmatpush.bf16.msra.mxu0 %v3121
    %3193 = vmatmul.bf16.gmra.mxu0 %v2985
    %v3194 = vpop.f32.mrf.mxu0
    %v3195 = vadd.f32 0.0, %v3194
    %v3196 = vpop.f32.mrf.mxu0
    %3197 = vdwg.mxu0
    %3198 = vmatpush.bf16.msra.mxu0 %v3136
    %3199 = vmatpush.bf16.msra.mxu0 %v3135
    %3200 = vmatpush.bf16.msra.mxu0 %v3134
    %3201 = vmatpush.bf16.msra.mxu0 %v3133
    %3202 = vmatpush.bf16.msra.mxu0 %v3132
    %3203 = vmatpush.bf16.msra.mxu0 %v3131
    %3204 = vmatpush.bf16.msra.mxu0 %v3130
    %3205 = vmatpush.bf16.msra.mxu0 %v3129
    %3206 = vmatmul.bf16.gmra.mxu0 %v2986
    %v3207 = vpop.f32.mrf.mxu0
    %v3208 = vadd.f32 %v3195, %v3207
    %v3209 = vpop.f32.mrf.mxu0
    %3210 = vdwg.mxu0
    %3211 = vmatpush.bf16.msra.mxu0 %v3144
    %3212 = vmatpush.bf16.msra.mxu0 %v3143
    %3213 = vmatpush.bf16.msra.mxu0 %v3142
    %3214 = vmatpush.bf16.msra.mxu0 %v3141
    %3215 = vmatpush.bf16.msra.mxu0 %v3140
    %3216 = vmatpush.bf16.msra.mxu0 %v3139
    %3217 = vmatpush.bf16.msra.mxu0 %v3138
    %3218 = vmatpush.bf16.msra.mxu0 %v3137
    %3219 = vmatmul.bf16.gmra.mxu0 %v2987
    %v3220 = vpop.f32.mrf.mxu0
    %v3221 = vadd.f32 %v3208, %v3220
    %v3222 = vpop.f32.mrf.mxu0
    %3223 = vdwg.mxu0
    %3224 = vmatpush.bf16.msra.mxu0 %v3152
    %3225 = vmatpush.bf16.msra.mxu0 %v3151
    %3226 = vmatpush.bf16.msra.mxu0 %v3150
    %3227 = vmatpush.bf16.msra.mxu0 %v3149
    %3228 = vmatpush.bf16.msra.mxu0 %v3148
    %3229 = vmatpush.bf16.msra.mxu0 %v3147
    %3230 = vmatpush.bf16.msra.mxu0 %v3146
    %3231 = vmatpush.bf16.msra.mxu0 %v3145
    %3232 = vmatmul.bf16.gmra.mxu0 %v2988
    %v3233 = vpop.f32.mrf.mxu0
    %v3234 = vadd.f32 %v3221, %v3233
    %v3235 = vpop.f32.mrf.mxu0
    %3236 = vdwg.mxu0
    %v3237 = vadd.f32 %v2907, %v3234
    %s3238 = scalar_lea.vmem %s7, 1280
    %v3239 = vld [vmem:[%s3238] sm:$0xf]
    %v3240 = vld [vmem:[%s3238 + $0x4] sm:$0xf]
    %v3241 = vld [vmem:[%s3238 + $0x8] sm:$0xf]
    %v3242 = vld [vmem:[%s3238 + $0xc] sm:$0xf]
    %v3243 = vld [vmem:[%s3238 + $0x10] sm:$0xf]
    %v3244 = vld [vmem:[%s3238 + $0x14] sm:$0xf]
    %v3245 = vld [vmem:[%s3238 + $0x18] sm:$0xf]
    %v3246 = vld [vmem:[%s3238 + $0x1c] sm:$0xf]
    %v3247 = vld [vmem:[%s3238 + $0x20] sm:$0xf]
    %v3248 = vld [vmem:[%s3238 + $0x24] sm:$0xf]
    %v3249 = vld [vmem:[%s3238 + $0x28] sm:$0xf]
    %v3250 = vld [vmem:[%s3238 + $0x2c] sm:$0xf]
    %v3251 = vld [vmem:[%s3238 + $0x30] sm:$0xf]
    %v3252 = vld [vmem:[%s3238 + $0x34] sm:$0xf]
    %v3253 = vld [vmem:[%s3238 + $0x38] sm:$0xf]
    %v3254 = vld [vmem:[%s3238 + $0x3c] sm:$0xf]
    %v3255 = vld [vmem:[%s3238 + $0x40] sm:$0xf]
    %v3256 = vld [vmem:[%s3238 + $0x44] sm:$0xf]
    %v3257 = vld [vmem:[%s3238 + $0x48] sm:$0xf]
    %v3258 = vld [vmem:[%s3238 + $0x4c] sm:$0xf]
    %v3259 = vld [vmem:[%s3238 + $0x50] sm:$0xf]
    %v3260 = vld [vmem:[%s3238 + $0x54] sm:$0xf]
    %v3261 = vld [vmem:[%s3238 + $0x58] sm:$0xf]
    %v3262 = vld [vmem:[%s3238 + $0x5c] sm:$0xf]
    %v3263 = vld [vmem:[%s3238 + $0x60] sm:$0xf]
    %v3264 = vld [vmem:[%s3238 + $0x64] sm:$0xf]
    %v3265 = vld [vmem:[%s3238 + $0x68] sm:$0xf]
    %v3266 = vld [vmem:[%s3238 + $0x6c] sm:$0xf]
    %v3267 = vld [vmem:[%s3238 + $0x70] sm:$0xf]
    %v3268 = vld [vmem:[%s3238 + $0x74] sm:$0xf]
    %v3269 = vld [vmem:[%s3238 + $0x78] sm:$0xf]
    %v3270 = vld [vmem:[%s3238 + $0x7c] sm:$0xf]
    %v3271 = vld [vmem:[%s3238 + $0x80] sm:$0xf]
    %v3272 = vld [vmem:[%s3238 + $0x84] sm:$0xf]
    %v3273 = vld [vmem:[%s3238 + $0x88] sm:$0xf]
    %v3274 = vld [vmem:[%s3238 + $0x8c] sm:$0xf]
    %v3275 = vld [vmem:[%s3238 + $0x90] sm:$0xf]
    %v3276 = vld [vmem:[%s3238 + $0x94] sm:$0xf]
    %v3277 = vld [vmem:[%s3238 + $0x98] sm:$0xf]
    %v3278 = vld [vmem:[%s3238 + $0x9c] sm:$0xf]
    %v3279 = vld [vmem:[%s3238 + $0xa0] sm:$0xf]
    %v3280 = vld [vmem:[%s3238 + $0xa4] sm:$0xf]
    %v3281 = vld [vmem:[%s3238 + $0xa8] sm:$0xf]
    %v3282 = vld [vmem:[%s3238 + $0xac] sm:$0xf]
    %v3283 = vld [vmem:[%s3238 + $0xb0] sm:$0xf]
    %v3284 = vld [vmem:[%s3238 + $0xb4] sm:$0xf]
    %v3285 = vld [vmem:[%s3238 + $0xb8] sm:$0xf]
    %v3286 = vld [vmem:[%s3238 + $0xbc] sm:$0xf]
    %v3287 = vld [vmem:[%s3238 + $0xc0] sm:$0xf]
    %v3288 = vld [vmem:[%s3238 + $0xc4] sm:$0xf]
    %v3289 = vld [vmem:[%s3238 + $0xc8] sm:$0xf]
    %v3290 = vld [vmem:[%s3238 + $0xcc] sm:$0xf]
    %v3291 = vld [vmem:[%s3238 + $0xd0] sm:$0xf]
    %v3292 = vld [vmem:[%s3238 + $0xd4] sm:$0xf]
    %v3293 = vld [vmem:[%s3238 + $0xd8] sm:$0xf]
    %v3294 = vld [vmem:[%s3238 + $0xdc] sm:$0xf]
    %v3295 = vld [vmem:[%s3238 + $0xe0] sm:$0xf]
    %v3296 = vld [vmem:[%s3238 + $0xe4] sm:$0xf]
    %v3297 = vld [vmem:[%s3238 + $0xe8] sm:$0xf]
    %v3298 = vld [vmem:[%s3238 + $0xec] sm:$0xf]
    %v3299 = vld [vmem:[%s3238 + $0xf0] sm:$0xf]
    %v3300 = vld [vmem:[%s3238 + $0xf4] sm:$0xf]
    %v3301 = vld [vmem:[%s3238 + $0xf8] sm:$0xf]
    %v3302 = vld [vmem:[%s3238 + $0xfc] sm:$0xf]
    %v3304 = vshrl.u32 %v2981, 16
    %v3306 = vrot.slane %v3304, 2
    %v3308 = vshrl.u32 %v2982, 16
    %v3310 = vrot.slane %v3308, 2
    %v3312 = vshrl.u32 %v2983, 16
    %v3314 = vrot.slane %v3312, 2
    %v3316 = vshrl.u32 %v2984, 16
    %v3318 = vrot.slane %v3316, 2
    %v3387 = vunpack.c.l.b16 %v3239
    %v3388 = vunpack.c.l.b16 %v3240
    %v3389 = vunpack.c.l.b16 %v3241
    %v3390 = vunpack.c.l.b16 %v3242
    %v3391 = vunpack.c.l.b16 %v3243
    %v3392 = vunpack.c.l.b16 %v3244
    %v3393 = vunpack.c.l.b16 %v3245
    %v3394 = vunpack.c.l.b16 %v3246
    %v3395 = vunpack.c.l.b16 %v3247
    %v3396 = vunpack.c.l.b16 %v3248
    %v3397 = vunpack.c.l.b16 %v3249
    %v3398 = vunpack.c.l.b16 %v3250
    %v3399 = vunpack.c.l.b16 %v3251
    %v3400 = vunpack.c.l.b16 %v3252
    %v3401 = vunpack.c.l.b16 %v3253
    %v3402 = vunpack.c.l.b16 %v3254
    %v3403 = vunpack.c.l.b16 %v3255
    %v3404 = vunpack.c.l.b16 %v3256
    %v3405 = vunpack.c.l.b16 %v3257
    %v3406 = vunpack.c.l.b16 %v3258
    %v3407 = vunpack.c.l.b16 %v3259
    %v3408 = vunpack.c.l.b16 %v3260
    %v3409 = vunpack.c.l.b16 %v3261
    %v3410 = vunpack.c.l.b16 %v3262
    %v3411 = vunpack.c.l.b16 %v3263
    %v3412 = vunpack.c.l.b16 %v3264
    %v3413 = vunpack.c.l.b16 %v3265
    %v3414 = vunpack.c.l.b16 %v3266
    %v3415 = vunpack.c.l.b16 %v3267
    %v3416 = vunpack.c.l.b16 %v3268
    %v3417 = vunpack.c.l.b16 %v3269
    %v3418 = vunpack.c.l.b16 %v3270
    %v3419 = vunpack.c.l.b16 %v3271
    %v3420 = vunpack.c.l.b16 %v3272
    %v3421 = vunpack.c.l.b16 %v3273
    %v3422 = vunpack.c.l.b16 %v3274
    %v3423 = vunpack.c.l.b16 %v3275
    %v3424 = vunpack.c.l.b16 %v3276
    %v3425 = vunpack.c.l.b16 %v3277
    %v3426 = vunpack.c.l.b16 %v3278
    %v3427 = vunpack.c.l.b16 %v3279
    %v3428 = vunpack.c.l.b16 %v3280
    %v3429 = vunpack.c.l.b16 %v3281
    %v3430 = vunpack.c.l.b16 %v3282
    %v3431 = vunpack.c.l.b16 %v3283
    %v3432 = vunpack.c.l.b16 %v3284
    %v3433 = vunpack.c.l.b16 %v3285
    %v3434 = vunpack.c.l.b16 %v3286
    %v3435 = vunpack.c.l.b16 %v3287
    %v3436 = vunpack.c.l.b16 %v3288
    %v3437 = vunpack.c.l.b16 %v3289
    %v3438 = vunpack.c.l.b16 %v3290
    %v3439 = vunpack.c.l.b16 %v3291
    %v3440 = vunpack.c.l.b16 %v3292
    %v3441 = vunpack.c.l.b16 %v3293
    %v3442 = vunpack.c.l.b16 %v3294
    %v3443 = vunpack.c.l.b16 %v3295
    %v3444 = vunpack.c.l.b16 %v3296
    %v3445 = vunpack.c.l.b16 %v3297
    %v3446 = vunpack.c.l.b16 %v3298
    %v3447 = vunpack.c.l.b16 %v3299
    %v3448 = vunpack.c.l.b16 %v3300
    %v3449 = vunpack.c.l.b16 %v3301
    %v3450 = vunpack.c.l.b16 %v3302
    %v3451 = vpack.c.b16 %v3388, %v3387
    %v3452 = vpack.c.b16 %v3390, %v3389
    %v3453 = vpack.c.b16 %v3392, %v3391
    %v3454 = vpack.c.b16 %v3394, %v3393
    %v3455 = vpack.c.b16 %v3396, %v3395
    %v3456 = vpack.c.b16 %v3398, %v3397
    %v3457 = vpack.c.b16 %v3400, %v3399
    %v3458 = vpack.c.b16 %v3402, %v3401
    %v3459 = vpack.c.b16 %v3404, %v3403
    %v3460 = vpack.c.b16 %v3406, %v3405
    %v3461 = vpack.c.b16 %v3408, %v3407
    %v3462 = vpack.c.b16 %v3410, %v3409
    %v3463 = vpack.c.b16 %v3412, %v3411
    %v3464 = vpack.c.b16 %v3414, %v3413
    %v3465 = vpack.c.b16 %v3416, %v3415
    %v3466 = vpack.c.b16 %v3418, %v3417
    %v3467 = vpack.c.b16 %v3420, %v3419
    %v3468 = vpack.c.b16 %v3422, %v3421
    %v3469 = vpack.c.b16 %v3424, %v3423
    %v3470 = vpack.c.b16 %v3426, %v3425
    %v3471 = vpack.c.b16 %v3428, %v3427
    %v3472 = vpack.c.b16 %v3430, %v3429
    %v3473 = vpack.c.b16 %v3432, %v3431
    %v3474 = vpack.c.b16 %v3434, %v3433
    %v3475 = vpack.c.b16 %v3436, %v3435
    %v3476 = vpack.c.b16 %v3438, %v3437
    %v3477 = vpack.c.b16 %v3440, %v3439
    %v3478 = vpack.c.b16 %v3442, %v3441
    %v3479 = vpack.c.b16 %v3444, %v3443
    %v3480 = vpack.c.b16 %v3446, %v3445
    %v3481 = vpack.c.b16 %v3448, %v3447
    %v3482 = vpack.c.b16 %v3450, %v3449
    %3515 = vmatpush.bf16.msra.mxu0 %v3458
    %3516 = vmatpush.bf16.msra.mxu0 %v3457
    %3517 = vmatpush.bf16.msra.mxu0 %v3456
    %3518 = vmatpush.bf16.msra.mxu0 %v3455
    %3519 = vmatpush.bf16.msra.mxu0 %v3454
    %3520 = vmatpush.bf16.msra.mxu0 %v3453
    %3521 = vmatpush.bf16.msra.mxu0 %v3452
    %3522 = vmatpush.bf16.msra.mxu0 %v3451
    %3523 = vmatmul.bf16.gmra.mxu0 %v3306
    %v3524 = vpop.f32.mrf.mxu0
    %v3525 = vadd.f32 0.0, %v3524
    %v3526 = vpop.f32.mrf.mxu0
    %3527 = vdwg.mxu0
    %3528 = vmatpush.bf16.msra.mxu0 %v3466
    %3529 = vmatpush.bf16.msra.mxu0 %v3465
    %3530 = vmatpush.bf16.msra.mxu0 %v3464
    %3531 = vmatpush.bf16.msra.mxu0 %v3463
    %3532 = vmatpush.bf16.msra.mxu0 %v3462
    %3533 = vmatpush.bf16.msra.mxu0 %v3461
    %3534 = vmatpush.bf16.msra.mxu0 %v3460
    %3535 = vmatpush.bf16.msra.mxu0 %v3459
    %3536 = vmatmul.bf16.gmra.mxu0 %v3310
    %v3537 = vpop.f32.mrf.mxu0
    %v3538 = vadd.f32 %v3525, %v3537
    %v3539 = vpop.f32.mrf.mxu0
    %3540 = vdwg.mxu0
    %3541 = vmatpush.bf16.msra.mxu0 %v3474
    %3542 = vmatpush.bf16.msra.mxu0 %v3473
    %3543 = vmatpush.bf16.msra.mxu0 %v3472
    %3544 = vmatpush.bf16.msra.mxu0 %v3471
    %3545 = vmatpush.bf16.msra.mxu0 %v3470
    %3546 = vmatpush.bf16.msra.mxu0 %v3469
    %3547 = vmatpush.bf16.msra.mxu0 %v3468
    %3548 = vmatpush.bf16.msra.mxu0 %v3467
    %3549 = vmatmul.bf16.gmra.mxu0 %v3314
    %v3550 = vpop.f32.mrf.mxu0
    %v3551 = vadd.f32 %v3538, %v3550
    %v3552 = vpop.f32.mrf.mxu0
    %3553 = vdwg.mxu0
    %3554 = vmatpush.bf16.msra.mxu0 %v3482
    %3555 = vmatpush.bf16.msra.mxu0 %v3481
    %3556 = vmatpush.bf16.msra.mxu0 %v3480
    %3557 = vmatpush.bf16.msra.mxu0 %v3479
    %3558 = vmatpush.bf16.msra.mxu0 %v3478
    %3559 = vmatpush.bf16.msra.mxu0 %v3477
    %3560 = vmatpush.bf16.msra.mxu0 %v3476
    %3561 = vmatpush.bf16.msra.mxu0 %v3475
    %3562 = vmatmul.bf16.gmra.mxu0 %v3318
    %v3563 = vpop.f32.mrf.mxu0
    %v3564 = vadd.f32 %v3551, %v3563
    %v3565 = vpop.f32.mrf.mxu0
    %3566 = vdwg.mxu0
    %v3567 = vadd.f32 %v3237, %v3564
    %v3568 = vld [vmem:[#allocation4] sm:$0x88]
    %v3569 = vld [vmem:[#allocation4 + $0x8] sm:$0x88]
    %s3570 = scalar_lea.vmem %s7, 1536
    %v3571 = vld [vmem:[%s3570] sm:$0xf]
    %v3572 = vld [vmem:[%s3570 + $0x4] sm:$0xf]
    %v3573 = vld [vmem:[%s3570 + $0x8] sm:$0xf]
    %v3574 = vld [vmem:[%s3570 + $0xc] sm:$0xf]
    %v3575 = vld [vmem:[%s3570 + $0x10] sm:$0xf]
    %v3576 = vld [vmem:[%s3570 + $0x14] sm:$0xf]
    %v3577 = vld [vmem:[%s3570 + $0x18] sm:$0xf]
    %v3578 = vld [vmem:[%s3570 + $0x1c] sm:$0xf]
    %v3579 = vld [vmem:[%s3570 + $0x20] sm:$0xf]
    %v3580 = vld [vmem:[%s3570 + $0x24] sm:$0xf]
    %v3581 = vld [vmem:[%s3570 + $0x28] sm:$0xf]
    %v3582 = vld [vmem:[%s3570 + $0x2c] sm:$0xf]
    %v3583 = vld [vmem:[%s3570 + $0x30] sm:$0xf]
    %v3584 = vld [vmem:[%s3570 + $0x34] sm:$0xf]
    %v3585 = vld [vmem:[%s3570 + $0x38] sm:$0xf]
    %v3586 = vld [vmem:[%s3570 + $0x3c] sm:$0xf]
    %v3587 = vld [vmem:[%s3570 + $0x40] sm:$0xf]
    %v3588 = vld [vmem:[%s3570 + $0x44] sm:$0xf]
    %v3589 = vld [vmem:[%s3570 + $0x48] sm:$0xf]
    %v3590 = vld [vmem:[%s3570 + $0x4c] sm:$0xf]
    %v3591 = vld [vmem:[%s3570 + $0x50] sm:$0xf]
    %v3592 = vld [vmem:[%s3570 + $0x54] sm:$0xf]
    %v3593 = vld [vmem:[%s3570 + $0x58] sm:$0xf]
    %v3594 = vld [vmem:[%s3570 + $0x5c] sm:$0xf]
    %v3595 = vld [vmem:[%s3570 + $0x60] sm:$0xf]
    %v3596 = vld [vmem:[%s3570 + $0x64] sm:$0xf]
    %v3597 = vld [vmem:[%s3570 + $0x68] sm:$0xf]
    %v3598 = vld [vmem:[%s3570 + $0x6c] sm:$0xf]
    %v3599 = vld [vmem:[%s3570 + $0x70] sm:$0xf]
    %v3600 = vld [vmem:[%s3570 + $0x74] sm:$0xf]
    %v3601 = vld [vmem:[%s3570 + $0x78] sm:$0xf]
    %v3602 = vld [vmem:[%s3570 + $0x7c] sm:$0xf]
    %v3603 = vld [vmem:[%s3570 + $0x80] sm:$0xf]
    %v3604 = vld [vmem:[%s3570 + $0x84] sm:$0xf]
    %v3605 = vld [vmem:[%s3570 + $0x88] sm:$0xf]
    %v3606 = vld [vmem:[%s3570 + $0x8c] sm:$0xf]
    %v3607 = vld [vmem:[%s3570 + $0x90] sm:$0xf]
    %v3608 = vld [vmem:[%s3570 + $0x94] sm:$0xf]
    %v3609 = vld [vmem:[%s3570 + $0x98] sm:$0xf]
    %v3610 = vld [vmem:[%s3570 + $0x9c] sm:$0xf]
    %v3611 = vld [vmem:[%s3570 + $0xa0] sm:$0xf]
    %v3612 = vld [vmem:[%s3570 + $0xa4] sm:$0xf]
    %v3613 = vld [vmem:[%s3570 + $0xa8] sm:$0xf]
    %v3614 = vld [vmem:[%s3570 + $0xac] sm:$0xf]
    %v3615 = vld [vmem:[%s3570 + $0xb0] sm:$0xf]
    %v3616 = vld [vmem:[%s3570 + $0xb4] sm:$0xf]
    %v3617 = vld [vmem:[%s3570 + $0xb8] sm:$0xf]
    %v3618 = vld [vmem:[%s3570 + $0xbc] sm:$0xf]
    %v3619 = vld [vmem:[%s3570 + $0xc0] sm:$0xf]
    %v3620 = vld [vmem:[%s3570 + $0xc4] sm:$0xf]
    %v3621 = vld [vmem:[%s3570 + $0xc8] sm:$0xf]
    %v3622 = vld [vmem:[%s3570 + $0xcc] sm:$0xf]
    %v3623 = vld [vmem:[%s3570 + $0xd0] sm:$0xf]
    %v3624 = vld [vmem:[%s3570 + $0xd4] sm:$0xf]
    %v3625 = vld [vmem:[%s3570 + $0xd8] sm:$0xf]
    %v3626 = vld [vmem:[%s3570 + $0xdc] sm:$0xf]
    %v3627 = vld [vmem:[%s3570 + $0xe0] sm:$0xf]
    %v3628 = vld [vmem:[%s3570 + $0xe4] sm:$0xf]
    %v3629 = vld [vmem:[%s3570 + $0xe8] sm:$0xf]
    %v3630 = vld [vmem:[%s3570 + $0xec] sm:$0xf]
    %v3631 = vld [vmem:[%s3570 + $0xf0] sm:$0xf]
    %v3632 = vld [vmem:[%s3570 + $0xf4] sm:$0xf]
    %v3633 = vld [vmem:[%s3570 + $0xf8] sm:$0xf]
    %v3634 = vld [vmem:[%s3570 + $0xfc] sm:$0xf]
    %v3637 = vunpack.c.l.b16 %v3568
    %v3638 = vunpack.c.h.b16 %v3568
    %v3639 = vunpack.c.l.b16 %v3569
    %v3640 = vunpack.c.h.b16 %v3569
    %v3641 = vpack.c.b16 %v3637, %v3637
    %v3642 = vpack.c.b16 %v3638, %v3638
    %v3643 = vpack.c.b16 %v3639, %v3639
    %v3644 = vpack.c.b16 %v3640, %v3640
    %v3645 = vrot.slane %v3641, 3
    %v3646 = vrot.slane %v3642, 3
    %v3647 = vrot.slane %v3643, 3
    %v3648 = vrot.slane %v3644, 3
    %v3717 = vunpack.c.l.b16 %v3571
    %v3718 = vunpack.c.l.b16 %v3572
    %v3719 = vunpack.c.l.b16 %v3573
    %v3720 = vunpack.c.l.b16 %v3574
    %v3721 = vunpack.c.l.b16 %v3575
    %v3722 = vunpack.c.l.b16 %v3576
    %v3723 = vunpack.c.l.b16 %v3577
    %v3724 = vunpack.c.l.b16 %v3578
    %v3725 = vunpack.c.l.b16 %v3579
    %v3726 = vunpack.c.l.b16 %v3580
    %v3727 = vunpack.c.l.b16 %v3581
    %v3728 = vunpack.c.l.b16 %v3582
    %v3729 = vunpack.c.l.b16 %v3583
    %v3730 = vunpack.c.l.b16 %v3584
    %v3731 = vunpack.c.l.b16 %v3585
    %v3732 = vunpack.c.l.b16 %v3586
    %v3733 = vunpack.c.l.b16 %v3587
    %v3734 = vunpack.c.l.b16 %v3588
    %v3735 = vunpack.c.l.b16 %v3589
    %v3736 = vunpack.c.l.b16 %v3590
    %v3737 = vunpack.c.l.b16 %v3591
    %v3738 = vunpack.c.l.b16 %v3592
    %v3739 = vunpack.c.l.b16 %v3593
    %v3740 = vunpack.c.l.b16 %v3594
    %v3741 = vunpack.c.l.b16 %v3595
    %v3742 = vunpack.c.l.b16 %v3596
    %v3743 = vunpack.c.l.b16 %v3597
    %v3744 = vunpack.c.l.b16 %v3598
    %v3745 = vunpack.c.l.b16 %v3599
    %v3746 = vunpack.c.l.b16 %v3600
    %v3747 = vunpack.c.l.b16 %v3601
    %v3748 = vunpack.c.l.b16 %v3602
    %v3749 = vunpack.c.l.b16 %v3603
    %v3750 = vunpack.c.l.b16 %v3604
    %v3751 = vunpack.c.l.b16 %v3605
    %v3752 = vunpack.c.l.b16 %v3606
    %v3753 = vunpack.c.l.b16 %v3607
    %v3754 = vunpack.c.l.b16 %v3608
    %v3755 = vunpack.c.l.b16 %v3609
    %v3756 = vunpack.c.l.b16 %v3610
    %v3757 = vunpack.c.l.b16 %v3611
    %v3758 = vunpack.c.l.b16 %v3612
    %v3759 = vunpack.c.l.b16 %v3613
    %v3760 = vunpack.c.l.b16 %v3614
    %v3761 = vunpack.c.l.b16 %v3615
    %v3762 = vunpack.c.l.b16 %v3616
    %v3763 = vunpack.c.l.b16 %v3617
    %v3764 = vunpack.c.l.b16 %v3618
    %v3765 = vunpack.c.l.b16 %v3619
    %v3766 = vunpack.c.l.b16 %v3620
    %v3767 = vunpack.c.l.b16 %v3621
    %v3768 = vunpack.c.l.b16 %v3622
    %v3769 = vunpack.c.l.b16 %v3623
    %v3770 = vunpack.c.l.b16 %v3624
    %v3771 = vunpack.c.l.b16 %v3625
    %v3772 = vunpack.c.l.b16 %v3626
    %v3773 = vunpack.c.l.b16 %v3627
    %v3774 = vunpack.c.l.b16 %v3628
    %v3775 = vunpack.c.l.b16 %v3629
    %v3776 = vunpack.c.l.b16 %v3630
    %v3777 = vunpack.c.l.b16 %v3631
    %v3778 = vunpack.c.l.b16 %v3632
    %v3779 = vunpack.c.l.b16 %v3633
    %v3780 = vunpack.c.l.b16 %v3634
    %v3781 = vpack.c.b16 %v3718, %v3717
    %v3782 = vpack.c.b16 %v3720, %v3719
    %v3783 = vpack.c.b16 %v3722, %v3721
    %v3784 = vpack.c.b16 %v3724, %v3723
    %v3785 = vpack.c.b16 %v3726, %v3725
    %v3786 = vpack.c.b16 %v3728, %v3727
    %v3787 = vpack.c.b16 %v3730, %v3729
    %v3788 = vpack.c.b16 %v3732, %v3731
    %v3789 = vpack.c.b16 %v3734, %v3733
    %v3790 = vpack.c.b16 %v3736, %v3735
    %v3791 = vpack.c.b16 %v3738, %v3737
    %v3792 = vpack.c.b16 %v3740, %v3739
    %v3793 = vpack.c.b16 %v3742, %v3741
    %v3794 = vpack.c.b16 %v3744, %v3743
    %v3795 = vpack.c.b16 %v3746, %v3745
    %v3796 = vpack.c.b16 %v3748, %v3747
    %v3797 = vpack.c.b16 %v3750, %v3749
    %v3798 = vpack.c.b16 %v3752, %v3751
    %v3799 = vpack.c.b16 %v3754, %v3753
    %v3800 = vpack.c.b16 %v3756, %v3755
    %v3801 = vpack.c.b16 %v3758, %v3757
    %v3802 = vpack.c.b16 %v3760, %v3759
    %v3803 = vpack.c.b16 %v3762, %v3761
    %v3804 = vpack.c.b16 %v3764, %v3763
    %v3805 = vpack.c.b16 %v3766, %v3765
    %v3806 = vpack.c.b16 %v3768, %v3767
    %v3807 = vpack.c.b16 %v3770, %v3769
    %v3808 = vpack.c.b16 %v3772, %v3771
    %v3809 = vpack.c.b16 %v3774, %v3773
    %v3810 = vpack.c.b16 %v3776, %v3775
    %v3811 = vpack.c.b16 %v3778, %v3777
    %v3812 = vpack.c.b16 %v3780, %v3779
    %3845 = vmatpush.bf16.msra.mxu0 %v3788
    %3846 = vmatpush.bf16.msra.mxu0 %v3787
    %3847 = vmatpush.bf16.msra.mxu0 %v3786
    %3848 = vmatpush.bf16.msra.mxu0 %v3785
    %3849 = vmatpush.bf16.msra.mxu0 %v3784
    %3850 = vmatpush.bf16.msra.mxu0 %v3783
    %3851 = vmatpush.bf16.msra.mxu0 %v3782
    %3852 = vmatpush.bf16.msra.mxu0 %v3781
    %3853 = vmatmul.bf16.gmra.mxu0 %v3645
    %v3854 = vpop.f32.mrf.mxu0
    %v3855 = vadd.f32 0.0, %v3854
    %v3856 = vpop.f32.mrf.mxu0
    %3857 = vdwg.mxu0
    %3858 = vmatpush.bf16.msra.mxu0 %v3796
    %3859 = vmatpush.bf16.msra.mxu0 %v3795
    %3860 = vmatpush.bf16.msra.mxu0 %v3794
    %3861 = vmatpush.bf16.msra.mxu0 %v3793
    %3862 = vmatpush.bf16.msra.mxu0 %v3792
    %3863 = vmatpush.bf16.msra.mxu0 %v3791
    %3864 = vmatpush.bf16.msra.mxu0 %v3790
    %3865 = vmatpush.bf16.msra.mxu0 %v3789
    %3866 = vmatmul.bf16.gmra.mxu0 %v3646
    %v3867 = vpop.f32.mrf.mxu0
    %v3868 = vadd.f32 %v3855, %v3867
    %v3869 = vpop.f32.mrf.mxu0
    %3870 = vdwg.mxu0
    %3871 = vmatpush.bf16.msra.mxu0 %v3804
    %3872 = vmatpush.bf16.msra.mxu0 %v3803
    %3873 = vmatpush.bf16.msra.mxu0 %v3802
    %3874 = vmatpush.bf16.msra.mxu0 %v3801
    %3875 = vmatpush.bf16.msra.mxu0 %v3800
    %3876 = vmatpush.bf16.msra.mxu0 %v3799
    %3877 = vmatpush.bf16.msra.mxu0 %v3798
    %3878 = vmatpush.bf16.msra.mxu0 %v3797
    %3879 = vmatmul.bf16.gmra.mxu0 %v3647
    %v3880 = vpop.f32.mrf.mxu0
    %v3881 = vadd.f32 %v3868, %v3880
    %v3882 = vpop.f32.mrf.mxu0
    %3883 = vdwg.mxu0
    %3884 = vmatpush.bf16.msra.mxu0 %v3812
    %3885 = vmatpush.bf16.msra.mxu0 %v3811
    %3886 = vmatpush.bf16.msra.mxu0 %v3810
    %3887 = vmatpush.bf16.msra.mxu0 %v3809
    %3888 = vmatpush.bf16.msra.mxu0 %v3808
    %3889 = vmatpush.bf16.msra.mxu0 %v3807
    %3890 = vmatpush.bf16.msra.mxu0 %v3806
    %3891 = vmatpush.bf16.msra.mxu0 %v3805
    %3892 = vmatmul.bf16.gmra.mxu0 %v3648
    %v3893 = vpop.f32.mrf.mxu0
    %v3894 = vadd.f32 %v3881, %v3893
    %v3895 = vpop.f32.mrf.mxu0
    %3896 = vdwg.mxu0
    %v3897 = vadd.f32 %v3567, %v3894
    %s3898 = scalar_lea.vmem %s7, 1792
    %v3899 = vld [vmem:[%s3898] sm:$0xf]
    %v3900 = vld [vmem:[%s3898 + $0x4] sm:$0xf]
    %v3901 = vld [vmem:[%s3898 + $0x8] sm:$0xf]
    %v3902 = vld [vmem:[%s3898 + $0xc] sm:$0xf]
    %v3903 = vld [vmem:[%s3898 + $0x10] sm:$0xf]
    %v3904 = vld [vmem:[%s3898 + $0x14] sm:$0xf]
    %v3905 = vld [vmem:[%s3898 + $0x18] sm:$0xf]
    %v3906 = vld [vmem:[%s3898 + $0x1c] sm:$0xf]
    %v3907 = vld [vmem:[%s3898 + $0x20] sm:$0xf]
    %v3908 = vld [vmem:[%s3898 + $0x24] sm:$0xf]
    %v3909 = vld [vmem:[%s3898 + $0x28] sm:$0xf]
    %v3910 = vld [vmem:[%s3898 + $0x2c] sm:$0xf]
    %v3911 = vld [vmem:[%s3898 + $0x30] sm:$0xf]
    %v3912 = vld [vmem:[%s3898 + $0x34] sm:$0xf]
    %v3913 = vld [vmem:[%s3898 + $0x38] sm:$0xf]
    %v3914 = vld [vmem:[%s3898 + $0x3c] sm:$0xf]
    %v3915 = vld [vmem:[%s3898 + $0x40] sm:$0xf]
    %v3916 = vld [vmem:[%s3898 + $0x44] sm:$0xf]
    %v3917 = vld [vmem:[%s3898 + $0x48] sm:$0xf]
    %v3918 = vld [vmem:[%s3898 + $0x4c] sm:$0xf]
    %v3919 = vld [vmem:[%s3898 + $0x50] sm:$0xf]
    %v3920 = vld [vmem:[%s3898 + $0x54] sm:$0xf]
    %v3921 = vld [vmem:[%s3898 + $0x58] sm:$0xf]
    %v3922 = vld [vmem:[%s3898 + $0x5c] sm:$0xf]
    %v3923 = vld [vmem:[%s3898 + $0x60] sm:$0xf]
    %v3924 = vld [vmem:[%s3898 + $0x64] sm:$0xf]
    %v3925 = vld [vmem:[%s3898 + $0x68] sm:$0xf]
    %v3926 = vld [vmem:[%s3898 + $0x6c] sm:$0xf]
    %v3927 = vld [vmem:[%s3898 + $0x70] sm:$0xf]
    %v3928 = vld [vmem:[%s3898 + $0x74] sm:$0xf]
    %v3929 = vld [vmem:[%s3898 + $0x78] sm:$0xf]
    %v3930 = vld [vmem:[%s3898 + $0x7c] sm:$0xf]
    %v3931 = vld [vmem:[%s3898 + $0x80] sm:$0xf]
    %v3932 = vld [vmem:[%s3898 + $0x84] sm:$0xf]
    %v3933 = vld [vmem:[%s3898 + $0x88] sm:$0xf]
    %v3934 = vld [vmem:[%s3898 + $0x8c] sm:$0xf]
    %v3935 = vld [vmem:[%s3898 + $0x90] sm:$0xf]
    %v3936 = vld [vmem:[%s3898 + $0x94] sm:$0xf]
    %v3937 = vld [vmem:[%s3898 + $0x98] sm:$0xf]
    %v3938 = vld [vmem:[%s3898 + $0x9c] sm:$0xf]
    %v3939 = vld [vmem:[%s3898 + $0xa0] sm:$0xf]
    %v3940 = vld [vmem:[%s3898 + $0xa4] sm:$0xf]
    %v3941 = vld [vmem:[%s3898 + $0xa8] sm:$0xf]
    %v3942 = vld [vmem:[%s3898 + $0xac] sm:$0xf]
    %v3943 = vld [vmem:[%s3898 + $0xb0] sm:$0xf]
    %v3944 = vld [vmem:[%s3898 + $0xb4] sm:$0xf]
    %v3945 = vld [vmem:[%s3898 + $0xb8] sm:$0xf]
    %v3946 = vld [vmem:[%s3898 + $0xbc] sm:$0xf]
    %v3947 = vld [vmem:[%s3898 + $0xc0] sm:$0xf]
    %v3948 = vld [vmem:[%s3898 + $0xc4] sm:$0xf]
    %v3949 = vld [vmem:[%s3898 + $0xc8] sm:$0xf]
    %v3950 = vld [vmem:[%s3898 + $0xcc] sm:$0xf]
    %v3951 = vld [vmem:[%s3898 + $0xd0] sm:$0xf]
    %v3952 = vld [vmem:[%s3898 + $0xd4] sm:$0xf]
    %v3953 = vld [vmem:[%s3898 + $0xd8] sm:$0xf]
    %v3954 = vld [vmem:[%s3898 + $0xdc] sm:$0xf]
    %v3955 = vld [vmem:[%s3898 + $0xe0] sm:$0xf]
    %v3956 = vld [vmem:[%s3898 + $0xe4] sm:$0xf]
    %v3957 = vld [vmem:[%s3898 + $0xe8] sm:$0xf]
    %v3958 = vld [vmem:[%s3898 + $0xec] sm:$0xf]
    %v3959 = vld [vmem:[%s3898 + $0xf0] sm:$0xf]
    %v3960 = vld [vmem:[%s3898 + $0xf4] sm:$0xf]
    %v3961 = vld [vmem:[%s3898 + $0xf8] sm:$0xf]
    %v3962 = vld [vmem:[%s3898 + $0xfc] sm:$0xf]
    %v3964 = vshrl.u32 %v3641, 16
    %v3966 = vrot.slane %v3964, 3
    %v3968 = vshrl.u32 %v3642, 16
    %v3970 = vrot.slane %v3968, 3
    %v3972 = vshrl.u32 %v3643, 16
    %v3974 = vrot.slane %v3972, 3
    %v3976 = vshrl.u32 %v3644, 16
    %v3978 = vrot.slane %v3976, 3
    %v4047 = vunpack.c.l.b16 %v3899
    %v4048 = vunpack.c.l.b16 %v3900
    %v4049 = vunpack.c.l.b16 %v3901
    %v4050 = vunpack.c.l.b16 %v3902
    %v4051 = vunpack.c.l.b16 %v3903
    %v4052 = vunpack.c.l.b16 %v3904
    %v4053 = vunpack.c.l.b16 %v3905
    %v4054 = vunpack.c.l.b16 %v3906
    %v4055 = vunpack.c.l.b16 %v3907
    %v4056 = vunpack.c.l.b16 %v3908
    %v4057 = vunpack.c.l.b16 %v3909
    %v4058 = vunpack.c.l.b16 %v3910
    %v4059 = vunpack.c.l.b16 %v3911
    %v4060 = vunpack.c.l.b16 %v3912
    %v4061 = vunpack.c.l.b16 %v3913
    %v4062 = vunpack.c.l.b16 %v3914
    %v4063 = vunpack.c.l.b16 %v3915
    %v4064 = vunpack.c.l.b16 %v3916
    %v4065 = vunpack.c.l.b16 %v3917
    %v4066 = vunpack.c.l.b16 %v3918
    %v4067 = vunpack.c.l.b16 %v3919
    %v4068 = vunpack.c.l.b16 %v3920
    %v4069 = vunpack.c.l.b16 %v3921
    %v4070 = vunpack.c.l.b16 %v3922
    %v4071 = vunpack.c.l.b16 %v3923
    %v4072 = vunpack.c.l.b16 %v3924
    %v4073 = vunpack.c.l.b16 %v3925
    %v4074 = vunpack.c.l.b16 %v3926
    %v4075 = vunpack.c.l.b16 %v3927
    %v4076 = vunpack.c.l.b16 %v3928
    %v4077 = vunpack.c.l.b16 %v3929
    %v4078 = vunpack.c.l.b16 %v3930
    %v4079 = vunpack.c.l.b16 %v3931
    %v4080 = vunpack.c.l.b16 %v3932
    %v4081 = vunpack.c.l.b16 %v3933
    %v4082 = vunpack.c.l.b16 %v3934
    %v4083 = vunpack.c.l.b16 %v3935
    %v4084 = vunpack.c.l.b16 %v3936
    %v4085 = vunpack.c.l.b16 %v3937
    %v4086 = vunpack.c.l.b16 %v3938
    %v4087 = vunpack.c.l.b16 %v3939
    %v4088 = vunpack.c.l.b16 %v3940
    %v4089 = vunpack.c.l.b16 %v3941
    %v4090 = vunpack.c.l.b16 %v3942
    %v4091 = vunpack.c.l.b16 %v3943
    %v4092 = vunpack.c.l.b16 %v3944
    %v4093 = vunpack.c.l.b16 %v3945
    %v4094 = vunpack.c.l.b16 %v3946
    %v4095 = vunpack.c.l.b16 %v3947
    %v4096 = vunpack.c.l.b16 %v3948
    %v4097 = vunpack.c.l.b16 %v3949
    %v4098 = vunpack.c.l.b16 %v3950
    %v4099 = vunpack.c.l.b16 %v3951
    %v4100 = vunpack.c.l.b16 %v3952
    %v4101 = vunpack.c.l.b16 %v3953
    %v4102 = vunpack.c.l.b16 %v3954
    %v4103 = vunpack.c.l.b16 %v3955
    %v4104 = vunpack.c.l.b16 %v3956
    %v4105 = vunpack.c.l.b16 %v3957
    %v4106 = vunpack.c.l.b16 %v3958
    %v4107 = vunpack.c.l.b16 %v3959
    %v4108 = vunpack.c.l.b16 %v3960
    %v4109 = vunpack.c.l.b16 %v3961
    %v4110 = vunpack.c.l.b16 %v3962
    %v4111 = vpack.c.b16 %v4048, %v4047
    %v4112 = vpack.c.b16 %v4050, %v4049
    %v4113 = vpack.c.b16 %v4052, %v4051
    %v4114 = vpack.c.b16 %v4054, %v4053
    %v4115 = vpack.c.b16 %v4056, %v4055
    %v4116 = vpack.c.b16 %v4058, %v4057
    %v4117 = vpack.c.b16 %v4060, %v4059
    %v4118 = vpack.c.b16 %v4062, %v4061
    %v4119 = vpack.c.b16 %v4064, %v4063
    %v4120 = vpack.c.b16 %v4066, %v4065
    %v4121 = vpack.c.b16 %v4068, %v4067
    %v4122 = vpack.c.b16 %v4070, %v4069
    %v4123 = vpack.c.b16 %v4072, %v4071
    %v4124 = vpack.c.b16 %v4074, %v4073
    %v4125 = vpack.c.b16 %v4076, %v4075
    %v4126 = vpack.c.b16 %v4078, %v4077
    %v4127 = vpack.c.b16 %v4080, %v4079
    %v4128 = vpack.c.b16 %v4082, %v4081
    %v4129 = vpack.c.b16 %v4084, %v4083
    %v4130 = vpack.c.b16 %v4086, %v4085
    %v4131 = vpack.c.b16 %v4088, %v4087
    %v4132 = vpack.c.b16 %v4090, %v4089
    %v4133 = vpack.c.b16 %v4092, %v4091
    %v4134 = vpack.c.b16 %v4094, %v4093
    %v4135 = vpack.c.b16 %v4096, %v4095
    %v4136 = vpack.c.b16 %v4098, %v4097
    %v4137 = vpack.c.b16 %v4100, %v4099
    %v4138 = vpack.c.b16 %v4102, %v4101
    %v4139 = vpack.c.b16 %v4104, %v4103
    %v4140 = vpack.c.b16 %v4106, %v4105
    %v4141 = vpack.c.b16 %v4108, %v4107
    %v4142 = vpack.c.b16 %v4110, %v4109
    %4175 = vmatpush.bf16.msra.mxu0 %v4118
    %4176 = vmatpush.bf16.msra.mxu0 %v4117
    %4177 = vmatpush.bf16.msra.mxu0 %v4116
    %4178 = vmatpush.bf16.msra.mxu0 %v4115
    %4179 = vmatpush.bf16.msra.mxu0 %v4114
    %4180 = vmatpush.bf16.msra.mxu0 %v4113
    %4181 = vmatpush.bf16.msra.mxu0 %v4112
    %4182 = vmatpush.bf16.msra.mxu0 %v4111
    %4183 = vmatmul.bf16.gmra.mxu0 %v3966
    %v4184 = vpop.f32.mrf.mxu0
    %v4185 = vadd.f32 0.0, %v4184
    %v4186 = vpop.f32.mrf.mxu0
    %4187 = vdwg.mxu0
    %4188 = vmatpush.bf16.msra.mxu0 %v4126
    %4189 = vmatpush.bf16.msra.mxu0 %v4125
    %4190 = vmatpush.bf16.msra.mxu0 %v4124
    %4191 = vmatpush.bf16.msra.mxu0 %v4123
    %4192 = vmatpush.bf16.msra.mxu0 %v4122
    %4193 = vmatpush.bf16.msra.mxu0 %v4121
    %4194 = vmatpush.bf16.msra.mxu0 %v4120
    %4195 = vmatpush.bf16.msra.mxu0 %v4119
    %4196 = vmatmul.bf16.gmra.mxu0 %v3970
    %v4197 = vpop.f32.mrf.mxu0
    %v4198 = vadd.f32 %v4185, %v4197
    %v4199 = vpop.f32.mrf.mxu0
    %4200 = vdwg.mxu0
    %4201 = vmatpush.bf16.msra.mxu0 %v4134
    %4202 = vmatpush.bf16.msra.mxu0 %v4133
    %4203 = vmatpush.bf16.msra.mxu0 %v4132
    %4204 = vmatpush.bf16.msra.mxu0 %v4131
    %4205 = vmatpush.bf16.msra.mxu0 %v4130
    %4206 = vmatpush.bf16.msra.mxu0 %v4129
    %4207 = vmatpush.bf16.msra.mxu0 %v4128
    %4208 = vmatpush.bf16.msra.mxu0 %v4127
    %4209 = vmatmul.bf16.gmra.mxu0 %v3974
    %v4210 = vpop.f32.mrf.mxu0
    %v4211 = vadd.f32 %v4198, %v4210
    %v4212 = vpop.f32.mrf.mxu0
    %4213 = vdwg.mxu0
    %4214 = vmatpush.bf16.msra.mxu0 %v4142
    %4215 = vmatpush.bf16.msra.mxu0 %v4141
    %4216 = vmatpush.bf16.msra.mxu0 %v4140
    %4217 = vmatpush.bf16.msra.mxu0 %v4139
    %4218 = vmatpush.bf16.msra.mxu0 %v4138
    %4219 = vmatpush.bf16.msra.mxu0 %v4137
    %4220 = vmatpush.bf16.msra.mxu0 %v4136
    %4221 = vmatpush.bf16.msra.mxu0 %v4135
    %4222 = vmatmul.bf16.gmra.mxu0 %v3978
    %v4223 = vpop.f32.mrf.mxu0
    %v4224 = vadd.f32 %v4211, %v4223
    %v4225 = vpop.f32.mrf.mxu0
    %4226 = vdwg.mxu0
    %v4227 = vadd.f32 %v3897, %v4224
    %v4228 = vmax.f32 %v4227, 0.0
    %v4229 = vpack.c.bf16 %v4228, %v4228
    %v4230 = vld [vmem:[%s9] sm:$0xf]
    %v4231 = vld [vmem:[%s9 + $0x4] sm:$0xf]
    %v4232 = vld [vmem:[%s9 + $0x8] sm:$0xf]
    %v4233 = vld [vmem:[%s9 + $0xc] sm:$0xf]
    %v4234 = vld [vmem:[%s9 + $0x10] sm:$0xf]
    %v4235 = vld [vmem:[%s9 + $0x14] sm:$0xf]
    %v4236 = vld [vmem:[%s9 + $0x18] sm:$0xf]
    %v4237 = vld [vmem:[%s9 + $0x1c] sm:$0xf]
    %v4238 = vld [vmem:[%s10] sm:$0x1]
    %v4247 = vunpack.c.l.b16 %v4230
    %v4248 = vunpack.c.l.b16 %v4231
    %v4249 = vunpack.c.l.b16 %v4232
    %v4250 = vunpack.c.l.b16 %v4233
    %v4251 = vunpack.c.l.b16 %v4234
    %v4252 = vunpack.c.l.b16 %v4235
    %v4253 = vunpack.c.l.b16 %v4236
    %v4254 = vunpack.c.l.b16 %v4237
    %v4255 = vpack.c.b16 %v4248, %v4247
    %v4256 = vpack.c.b16 %v4250, %v4249
    %v4257 = vpack.c.b16 %v4252, %v4251
    %v4258 = vpack.c.b16 %v4254, %v4253
    %v4264 = vsel %vm1545, %v4229, 0
    %4266 = vmatpush.bf16.msra.mxu0 0
    %4267 = vmatpush.bf16.msra.mxu0 0
    %4268 = vmatpush.bf16.msra.mxu0 0
    %4269 = vmatpush.bf16.msra.mxu0 0
    %4270 = vmatpush.bf16.msra.mxu0 %v4258
    %4271 = vmatpush.bf16.msra.mxu0 %v4257
    %4272 = vmatpush.bf16.msra.mxu0 %v4256
    %4273 = vmatpush.bf16.msra.mxu0 %v4255
    %4274 = vmatmul.bf16.gmra.mxu0 %v4264
    %v4275 = vpop.f32.mrf.mxu0
    %v4276 = vadd.f32 %v4238, %v4275
    %v4277 = vpop.f32.mrf.mxu0
    %4278 = vdwg.mxu0
    %v4279 = vmax.f32 %v4276, 0.0
    %v4280 = vpack.c.bf16 %v4279, %v4279
    %v4281 = vld [vmem:[%s11] sm:$0xf]
    %v4282 = vld [vmem:[%s11 + $0x4] sm:$0xf]
    %v4283 = vld [vmem:[%s11 + $0x8] sm:$0xf]
    %v4284 = vld [vmem:[%s11 + $0xc] sm:$0xf]
    %v4285 = vld [vmem:[%s11 + $0x10] sm:$0xf]
    %v4286 = vld [vmem:[%s11 + $0x14] sm:$0xf]
    %v4287 = vld [vmem:[%s11 + $0x18] sm:$0xf]
    %v4288 = vld [vmem:[%s11 + $0x1c] sm:$0xf]
    %v4289 = vld [vmem:[%s12] sm:$0x1]
    %v4298 = vunpack.c.l.b16 %v4281
    %v4299 = vunpack.c.l.b16 %v4282
    %v4300 = vunpack.c.l.b16 %v4283
    %v4301 = vunpack.c.l.b16 %v4284
    %v4302 = vunpack.c.l.b16 %v4285
    %v4303 = vunpack.c.l.b16 %v4286
    %v4304 = vunpack.c.l.b16 %v4287
    %v4305 = vunpack.c.l.b16 %v4288
    %v4306 = vpack.c.b16 %v4299, %v4298
    %v4307 = vpack.c.b16 %v4301, %v4300
    %v4308 = vpack.c.b16 %v4303, %v4302
    %v4309 = vpack.c.b16 %v4305, %v4304
    %v4315 = vsel %vm1545, %v4280, 0
    %4317 = vmatpush.bf16.msra.mxu0 0
    %4318 = vmatpush.bf16.msra.mxu0 0
    %4319 = vmatpush.bf16.msra.mxu0 0
    %4320 = vmatpush.bf16.msra.mxu0 0
    %4321 = vmatpush.bf16.msra.mxu0 %v4309
    %4322 = vmatpush.bf16.msra.mxu0 %v4308
    %4323 = vmatpush.bf16.msra.mxu0 %v4307
    %4324 = vmatpush.bf16.msra.mxu0 %v4306
    %4325 = vmatmul.bf16.gmra.mxu0 %v4315
    %v4326 = vpop.f32.mrf.mxu0
    %v4327 = vadd.f32 %v4289, %v4326
    %v4328 = vpop.f32.mrf.mxu0
    %4329 = vdwg.mxu0
    %v4330 = vmax.f32 %v4327, 0.0
    %v4331 = vpack.c.bf16 %v4330, %v4330
    %v4332 = vld [vmem:[%s13] sm:$0xf]
    %v4333 = vld [vmem:[%s13 + $0x4] sm:$0xf]
    %v4334 = vld [vmem:[%s13 + $0x8] sm:$0xf]
    %v4335 = vld [vmem:[%s13 + $0xc] sm:$0xf]
    %v4336 = vld [vmem:[%s14] sm:$0x1]
    %v4341 = vunpack.c.l.b16 %v4332
    %v4342 = vunpack.c.l.b16 %v4333
    %v4343 = vunpack.c.l.b16 %v4334
    %v4344 = vunpack.c.l.b16 %v4335
    %v4345 = vpack.c.b16 %v4342, %v4341
    %v4346 = vpack.c.b16 %v4344, %v4343
    %v4350 = vsel %vm1148, %v4331, 0
    %4352 = vmatpush.bf16.msra.mxu0 0
    %4353 = vmatpush.bf16.msra.mxu0 0
    %4354 = vmatpush.bf16.msra.mxu0 0
    %4355 = vmatpush.bf16.msra.mxu0 0
    %4356 = vmatpush.bf16.msra.mxu0 0
    %4357 = vmatpush.bf16.msra.mxu0 0
    %4358 = vmatpush.bf16.msra.mxu0 %v4346
    %4359 = vmatpush.bf16.msra.mxu0 %v4345
    %4360 = vmatmul.bf16.gmra.mxu0 %v4350
    %v4361 = vpop.f32.mrf.mxu0
    %v4362 = vadd.f32 %v4336, %v4361
    %v4363 = vpop.f32.mrf.mxu0
    %4364 = vdwg.mxu0
    %vm4365 = vcmp.lt.s32.totalorder %v73, 2
    %v4366 = vtanh.pop %v4362
    %v4367 = vxor.u32 %v4362, 2147483648
    %v4368 = vmul.f32 %v4367, 1.442695
    %v4369 = vpow.pop %v4368
    %v4370 = vadd.f32 %v4369, 1.0
    %v4371 = vrcp.pop %v4370
    %v4372 = vmul.f32 %v4370, %v4371
    %v4373 = vsub.f32 1.0, %v4372
    %v4374 = vmul.f32 %v4371, %v4373
    %v4375 = vadd.f32 %v4371, %v4374
    %vm4376 = vweird.f32 %v4370
    %vm4377 = vweird.f32 %v4371
    %vm4378 = vmor %vm4376, %vm4377
    %v4379 = vsel %vm4378, %v4371, %v4375
    %v4380 = vand.u32 2147483647, %v4370
    %vm4381 = vcmp.eq.f32.partialorder %v4380, 8.507059e+37
    %v4382 = vand.u32 %v4370, 2147483648
    %v4383 = vor.u32 1.1754944e-38, %v4382
    %v4384 = vsel %vm4381, %v4383, %v4379
    %v4385 = vmul.f32 1.0, %v4384
    %v4386 = vsel %vm4365, %v4366, %v4385
    %vm4387 = vcmask 24576
    %4388 = vst.msk [vmem:[#allocation5] sm:$0x1] %vm4387, %v4386
    // Predicated region
    $region62: #{_forward_core.1} parent=1 // pred_check
      _
    $region63: #{_forward_core.1} parent=1 // pred_check_branch
      %4390 = sbr.rel (0) target = $region65
    $region64: #{_forward_core.1} parent=1 // pred_region
      %4392 = vsyncadd [#allocation6], 0
      %s4394 = sshll.u32 [#allocation5], 4
      %s4395 = int_to_ptr.vmem [resolvable:$true] %s4394
      %s4396 = sshll.u32 %s15, 4
      %s4397 = int_to_ptr.hbm [resolvable:$true] %s4396
      %4399 = dma.vmem_to_hbm [thread:$0]  %s4395, 16, %s4397, [#allocation6]
    $region65: #{_forward_core.1} parent=1 // pred_fallthru
      _
    // Predicated region
    $region66: #{_forward_core.1} parent=1 // pred_check
      _
    $region67: #{_forward_core.1} parent=1 // pred_check_branch
      %4401 = sbr.rel (0) target = $region69
    $region68: #{_forward_core.1} parent=1 // pred_region
      %4403 = dma.done [#allocation6], 16
    $region69: #{_forward_core.1} parent=1 // pred_fallthru
      _
    %4404 = vsyncpa [#allocation6], 1

</llo_original>
